<compile_context>
chip_gen: v7x
topology: tpu7x:2x2x1
jax: 0.10.0
libtpu: 0.0.40
codegen_flags: <defaults>
</compile_context>

<pallas_src>
import functools

import jax
import jax.numpy as jnp
from jax.experimental import pallas as pl
from jax.experimental.pallas import tpu as pltpu


# ----------------------------------------------------------------------------
# In-kernel math helpers (exact-erf GELU, Eigen/XLA f32 rational erf)
# ----------------------------------------------------------------------------
_ERF_ALPHA = (-2.72614225801306e-10, 2.77068142495902e-08,
              -2.10102402082508e-06, -5.69250639462346e-05,
              -7.34990630326855e-04, -2.95459980854025e-03,
              -1.60960333262415e-02)
_ERF_BETA = (-1.45660718464996e-05, -2.13374055278905e-04,
             -1.68282697438203e-03, -7.37332916720468e-03,
             -1.42647390514189e-02)


def _polyval(x, coeffs):
    acc = jnp.full_like(x, coeffs[0])
    for c in coeffs[1:]:
        acc = acc * x + c
    return acc


def _erf(x):
    # Eigen/XLA fast f32 erf: x * P(x^2) / Q(x^2), x clamped.
    xc = jnp.clip(x, -3.925, 3.925)
    x2 = xc * xc
    num = _polyval(x2, _ERF_ALPHA)
    den = _polyval(x2, _ERF_BETA)
    return xc * num / den


def _gelu_exact(x):
    return 0.5 * x * (1.0 + _erf(x * 0.7071067811865476))


# ----------------------------------------------------------------------------
# Fused encoder kernel (whole network, one image per grid step)
# ----------------------------------------------------------------------------
def _make_fused_encoder_kernel(W, HW, C, num_bits, num_blocks, cin_list,
                               last_tanh):
    taps = [(dy, dx) for dy in (-1, 0, 1) for dx in (-1, 0, 1)]

    def kernel(msgs_ref, imgs_ref, masks_ref, w_ref, scale_ref, shift_ref,
               wfin_ref, bfin_ref, out_ref, col_ref):
        # msgs_ref  : (1, num_bits, 1)         message bits of this image
        # imgs_ref  : (1, 3, HW)               NCHW-flat image (channels-major)
        # masks_ref : (9, HW)                  {0,1} border-validity per tap
        # w_ref     : (L, C, KPAD)             packed 3x3 weights (Cout, 9*Cin)
        # scale/shift_ref : (L, C, 1)          folded BN (+conv bias)
        # wfin_ref  : (8, C), bfin_ref: (8, 1) final 1x1 (rows >=3 are zero pad)
        # out_ref   : (1, 3, HW)               NCHW-flat output
        # col_ref   : VMEM scratch (KPAD, HW)  im2col buffer (channels-major)
        masks_all = masks_ref[...]                        # (9, HW)

        def conv3x3_bn_gelu(src, cin, layer):
            # src: (cin, HW) f32, channels-major.  Build im2col rows
            # [t*cin + c] = mask_t * roll(src, -(dy*W+dx))[c], then one matmul.
            for t, (dy, dx) in enumerate(taps):
                s = dy * W + dx
                shifted = src if s == 0 else pltpu.roll(src, (-s) % HW, axis=1)
                if not (dy == 0 and dx == 0):
                    shifted = shifted * masks_all[t:t + 1, :]
                col_ref[t * cin:(t + 1) * cin, :] = shifted
            k = 9 * cin
            y = jnp.dot(w_ref[layer, :, :k], col_ref[:k, :],
                        preferred_element_type=jnp.float32)   # (C, HW)
            z = y * scale_ref[layer] + shift_ref[layer]
            return _gelu_exact(z)

        img = imgs_ref[0]                                  # (3, HW)
        x = conv3x3_bn_gelu(img, cin_list[0], 0)           # (C, HW)
        for i in range(1, num_blocks):
            x = conv3x3_bn_gelu(x, cin_list[i], i)

        # torch.cat([msgs, encoded, imgs], dim=1) -- built entirely in VMEM.
        msgs_b = jnp.broadcast_to(msgs_ref[0], (num_bits, HW))
        concat = jnp.concatenate([msgs_b, x, img], axis=0)  # (nb+C+3, HW)
        x = conv3x3_bn_gelu(concat, cin_list[num_blocks], num_blocks)

        # Final 1x1 conv (+ optional tanh), emitted channels-major (lane-dense).
        y = jnp.dot(wfin_ref[...], x, preferred_element_type=jnp.float32)
        y = y + bfin_ref[...]
        if last_tanh:
            y = jnp.tanh(y)
        out_ref[0] = y[:3, :]

    return kernel


def _make_tap_masks(H, W):
    """(9, H*W) {0,1} masks: 1 where the shifted tap stays inside the image."""
    ys = jnp.arange(H, dtype=jnp.int32)[:, None]
    xs = jnp.arange(W, dtype=jnp.int32)[None, :]
    rows = []
    for dy in (-1, 0, 1):
        for dx in (-1, 0, 1):
            valid = ((ys + dy >= 0) & (ys + dy < H) &
                     (xs + dx >= 0) & (xs + dx < W))
            rows.append(valid.reshape(-1))
    return jnp.stack(rows).astype(jnp.float32)


# ----------------------------------------------------------------------------
# Forward pass (mirrors HiddenEncoder.forward), single pallas_call
# ----------------------------------------------------------------------------
@functools.partial(jax.jit, static_argnames=("last_tanh",))
def hidden_encoder_forward(params, imgs_nchw, msgs, last_tanh=True):
    # imgs_nchw: (N, 3, H, W) f32; msgs: (N, num_bits) f32
    N, _, H, W = imgs_nchw.shape
    HW = H * W
    num_bits = msgs.shape[1]
    conv_bns = list(params["conv_bns"])
    num_blocks = len(conv_bns)
    C = conv_bns[0]["w"].shape[-1]
    L = num_blocks + 1
    cin_list = [3] + [C] * (num_blocks - 1) + [num_bits + C + 3]
    KPAD = ((9 * max(cin_list) + 7) // 8) * 8

    # --- pack weights: (Cout, 9*Cin) rows ordered [tap, cin], zero-pad to KPAD.
    w_list, sc_list, sh_list = [], [], []
    for lyr, cin in zip(conv_bns + [params["after_concat"]], cin_list):
        w9 = jnp.transpose(lyr["w"], (3, 0, 1, 2)).reshape(C, 9 * cin)
        w9 = jnp.pad(w9, ((0, 0), (0, KPAD - 9 * cin)))
        w_list.append(w9.astype(jnp.float32))
        sc_list.append(lyr["scale"].reshape(C, 1).astype(jnp.float32))
        sh_list.append(lyr["shift"].reshape(C, 1).astype(jnp.float32))
    w_stack = jnp.stack(w_list)          # (L, C, KPAD)
    scale_stack = jnp.stack(sc_list)     # (L, C, 1)
    shift_stack = jnp.stack(sh_list)     # (L, C, 1)

    wfin = jnp.zeros((8, C), jnp.float32).at[:3].set(
        params["w_final"].T.astype(jnp.float32))
    bfin = jnp.zeros((8, 1), jnp.float32).at[:3, 0].set(
        params["b_final"].astype(jnp.float32))

    masks = _make_tap_masks(H, W)                          # (9, HW)
    imgs3 = imgs_nchw.reshape(N, 3, HW).astype(jnp.float32)
    msgs3 = msgs.reshape(N, num_bits, 1).astype(jnp.float32)

    kernel = _make_fused_encoder_kernel(W, HW, C, num_bits, num_blocks,
                                        cin_list, last_tanh)

    out = pl.pallas_call(
        kernel,
        out_shape=jax.ShapeDtypeStruct((N, 3, HW), jnp.float32),
        grid_spec=pltpu.PrefetchScalarGridSpec(
            num_scalar_prefetch=0,
            grid=(N,),
            in_specs=[
                pl.BlockSpec((1, num_bits, 1), lambda n: (n, 0, 0)),
                pl.BlockSpec((1, 3, HW), lambda n: (n, 0, 0)),
                pl.BlockSpec((9, HW), lambda n: (0, 0)),
                pl.BlockSpec((L, C, KPAD), lambda n: (0, 0, 0)),
                pl.BlockSpec((L, C, 1), lambda n: (0, 0, 0)),
                pl.BlockSpec((L, C, 1), lambda n: (0, 0, 0)),
                pl.BlockSpec((8, C), lambda n: (0, 0)),
                pl.BlockSpec((8, 1), lambda n: (0, 0)),
            ],
            out_specs=pl.BlockSpec((1, 3, HW), lambda n: (n, 0, 0)),
            scratch_shapes=[pltpu.VMEM((KPAD, HW), jnp.float32)],
        ),
        compiler_params=pltpu.CompilerParams(
            dimension_semantics=("parallel",)),
    )(msgs3, imgs3, masks, w_stack, scale_stack, shift_stack, wfin, bfin)

    return out.reshape(N, 3, H, W)


# ----------------------------------------------------------------------------
# Parameter construction (deterministic, synthetic, eval-mode BN folded)
# ----------------------------------------------------------------------------
def _make_convbnrelu_params(key, cin, cout, eps=0.001):
    ks = jax.random.split(key, 6)
    w = 0.1 * jax.random.normal(ks[0], (3, 3, cin, cout), jnp.float32)  # HWIO
    b = 0.05 * jax.random.normal(ks[1], (cout,), jnp.float32)
    gamma = 1.0 + 0.1 * jax.random.normal(ks[2], (cout,), jnp.float32)
    beta = 0.1 * jax.random.normal(ks[3], (cout,), jnp.float32)
    run_mean = 0.1 * jax.random.normal(ks[4], (cout,), jnp.float32)
    run_var = jax.random.uniform(ks[5], (cout,), jnp.float32, 0.5, 1.5)
    s = gamma / jnp.sqrt(run_var + eps)
    return {"w": w, "scale": s, "shift": (b - run_mean) * s + beta}


def make_hidden_encoder_params(key, num_blocks, num_bits, channels):
    keys = jax.random.split(key, num_blocks + 3)
    conv_bns = [_make_convbnrelu_params(keys[0], 3, channels)]
    for i in range(num_blocks - 1):
        conv_bns.append(_make_convbnrelu_params(keys[1 + i], channels, channels))
    after_concat = _make_convbnrelu_params(
        keys[num_blocks], num_bits + channels + 3, channels)
    w_final = 0.1 * jax.random.normal(keys[num_blocks + 1], (channels, 3),
                                      jnp.float32)
    b_final = 0.05 * jax.random.normal(keys[num_blocks + 2], (3,), jnp.float32)
    return {"conv_bns": conv_bns, "after_concat": after_concat,
            "w_final": w_final, "b_final": b_final}


# ----------------------------------------------------------------------------
# Pure-JAX reference (for validation only)
# ----------------------------------------------------------------------------
def _reference_forward(params, imgs_nchw, msgs, last_tanh=True):
    def block(x, lyr):
        y = jax.lax.conv_general_dilated(
            x, lyr["w"], window_strides=(1, 1), padding="SAME",
            dimension_numbers=("NCHW", "HWIO", "NCHW"),
            precision=jax.lax.Precision.HIGHEST)
        y = y * lyr["scale"][None, :, None, None] + lyr["shift"][None, :, None, None]
        return jax.nn.gelu(y, approximate=False)

    imgs = imgs_nchw.astype(jnp.float32)
    x = imgs
    for lyr in params["conv_bns"]:
        x = block(x, lyr)
    N, _, H, W = imgs.shape
    nb = msgs.shape[1]
    msgs_b = jnp.broadcast_to(msgs[:, :, None, None].astype(jnp.float32),
                              (N, nb, H, W))
    concat = jnp.concatenate([msgs_b, x, imgs], axis=1)
    x = block(concat, params["after_concat"])
    y = jnp.einsum("nchw,cd->ndhw", x, params["w_final"],
                   precision=jax.lax.Precision.HIGHEST)
    y = y + params["b_final"][None, :, None, None]
    if last_tanh:
        y = jnp.tanh(y)
    return y


# ----------------------------------------------------------------------------
if __name__ == "__main__":
    num_blocks, num_bits, channels = 4, 8, 16
    N, H, W = 2, 16, 16

    key = jax.random.PRNGKey(0)
    k_params, k_img, k_msg = jax.random.split(key, 3)

    params = make_hidden_encoder_params(k_params, num_blocks, num_bits, channels)
    imgs = jax.random.normal(k_img, (N, 3, H, W), jnp.float32)
    msgs = jax.random.bernoulli(k_msg, 0.5, (N, num_bits)).astype(jnp.float32)

    out = hidden_encoder_forward(params, imgs, msgs, last_tanh=True)
    out = jax.block_until_ready(out)
    assert out.shape == (N, 3, H, W), out.shape
    assert bool(jnp.all(jnp.isfinite(out)))

    ref = _reference_forward(params, imgs, msgs, last_tanh=True)
    err = float(jnp.max(jnp.abs(out - ref)))
    assert err < 3e-2, f"max abs err vs reference: {err}"

    print("KERNEL_OK")
</pallas_src>

<mosaic_0001>
module attributes {stable_mosaic.version = 11 : i64} {
  func.func @kernel(%arg0: i32, %arg1: memref<1x8x1xf32, #tpu.memory_space<vmem>>, %arg2: memref<1x3x256xf32, #tpu.memory_space<vmem>>, %arg3: memref<9x256xf32, #tpu.memory_space<vmem>>, %arg4: memref<5x16x248xf32, #tpu.memory_space<vmem>>, %arg5: memref<5x16x1xf32, #tpu.memory_space<vmem>>, %arg6: memref<5x16x1xf32, #tpu.memory_space<vmem>>, %arg7: memref<8x16xf32, #tpu.memory_space<vmem>>, %arg8: memref<8x1xf32, #tpu.memory_space<vmem>>, %arg9: memref<1x3x256xf32, #tpu.memory_space<vmem>>, %arg10: memref<248x256xf32, #tpu.memory_space<vmem>>) attributes {dimension_semantics = [#tpu.dimension_semantics<parallel>], iteration_bounds = array<i64: 2>, scalar_prefetch = 0 : i64, scratch_operands = 1 : i64, tpu.core_type = #tpu.core_type<tc>, window_params = [{transform_indices = @transform_0, window_bounds = array<i64: 1, 8, 1>}, {transform_indices = @transform_1, window_bounds = array<i64: 1, 3, 256>}, {pipeline_mode = #tpu.pipeline_mode<synchronous>, transform_indices = @transform_2, window_bounds = array<i64: 9, 256>}, {pipeline_mode = #tpu.pipeline_mode<synchronous>, transform_indices = @transform_3, window_bounds = array<i64: 5, 16, 248>}, {pipeline_mode = #tpu.pipeline_mode<synchronous>, transform_indices = @transform_4, window_bounds = array<i64: 5, 16, 1>}, {pipeline_mode = #tpu.pipeline_mode<synchronous>, transform_indices = @transform_5, window_bounds = array<i64: 5, 16, 1>}, {pipeline_mode = #tpu.pipeline_mode<synchronous>, transform_indices = @transform_6, window_bounds = array<i64: 8, 16>}, {pipeline_mode = #tpu.pipeline_mode<synchronous>, transform_indices = @transform_7, window_bounds = array<i64: 8, 1>}, {transform_indices = @transform_8, window_bounds = array<i64: 1, 3, 256>}]} {
    %c0 = arith.constant 0 : index
    %c0_0 = arith.constant 0 : index
    %0 = vector.load %arg3[%c0, %c0_0] : memref<9x256xf32, #tpu.memory_space<vmem>>, vector<9x256xf32>
    %c0_1 = arith.constant 0 : index
    %c0_2 = arith.constant 0 : index
    %c0_3 = arith.constant 0 : index
    %1 = vector.load %arg2[%c0_1, %c0_2, %c0_3] : memref<1x3x256xf32, #tpu.memory_space<vmem>>, vector<1x3x256xf32>
    %2 = vector.shape_cast %1 : vector<1x3x256xf32> to vector<3x256xf32>
    %c17_i32 = arith.constant 17 : i32
    %3 = tpu.dynamic_rotate %2 by %c17_i32 dim 1 : vector<3x256xf32>, i32 -> vector<3x256xf32>
    %4 = vector.extract_strided_slice %0 {offsets = [0, 0], sizes = [1, 256], strides = [1, 1]} : vector<9x256xf32> to vector<1x256xf32>
    %5 = vector.broadcast %4 : vector<1x256xf32> to vector<3x256xf32>
    %6 = arith.mulf %3, %5 : vector<3x256xf32>
    %c0_4 = arith.constant 0 : index
    %c0_5 = arith.constant 0 : index
    %7 = vector.load %arg10[%c0_4, %c0_5] : memref<248x256xf32, #tpu.memory_space<vmem>>, vector<3x256xf32>
    tpu.vector_store %arg10[%c0_4, %c0_5], %6 {strides = array<i32>} : memref<248x256xf32, #tpu.memory_space<vmem>>, vector<3x256xf32>,
    %c16_i32 = arith.constant 16 : i32
    %8 = tpu.dynamic_rotate %2 by %c16_i32 dim 1 : vector<3x256xf32>, i32 -> vector<3x256xf32>
    %9 = vector.extract_strided_slice %0 {offsets = [1, 0], sizes = [1, 256], strides = [1, 1]} : vector<9x256xf32> to vector<1x256xf32>
    %10 = vector.broadcast %9 : vector<1x256xf32> to vector<3x256xf32>
    %11 = arith.mulf %8, %10 : vector<3x256xf32>
    %c3 = arith.constant 3 : index
    %c0_6 = arith.constant 0 : index
    %12 = vector.load %arg10[%c3, %c0_6] : memref<248x256xf32, #tpu.memory_space<vmem>>, vector<3x256xf32>
    tpu.vector_store %arg10[%c3, %c0_6], %11 {strides = array<i32>} : memref<248x256xf32, #tpu.memory_space<vmem>>, vector<3x256xf32>,
    %c15_i32 = arith.constant 15 : i32
    %13 = tpu.dynamic_rotate %2 by %c15_i32 dim 1 : vector<3x256xf32>, i32 -> vector<3x256xf32>
    %14 = vector.extract_strided_slice %0 {offsets = [2, 0], sizes = [1, 256], strides = [1, 1]} : vector<9x256xf32> to vector<1x256xf32>
    %15 = vector.broadcast %14 : vector<1x256xf32> to vector<3x256xf32>
    %16 = arith.mulf %13, %15 : vector<3x256xf32>
    %c6 = arith.constant 6 : index
    %c0_7 = arith.constant 0 : index
    %17 = vector.load %arg10[%c6, %c0_7] : memref<248x256xf32, #tpu.memory_space<vmem>>, vector<3x256xf32>
    tpu.vector_store %arg10[%c6, %c0_7], %16 {strides = array<i32>} : memref<248x256xf32, #tpu.memory_space<vmem>>, vector<3x256xf32>,
    %c1_i32 = arith.constant 1 : i32
    %18 = tpu.dynamic_rotate %2 by %c1_i32 dim 1 : vector<3x256xf32>, i32 -> vector<3x256xf32>
    %19 = vector.extract_strided_slice %0 {offsets = [3, 0], sizes = [1, 256], strides = [1, 1]} : vector<9x256xf32> to vector<1x256xf32>
    %20 = vector.broadcast %19 : vector<1x256xf32> to vector<3x256xf32>
    %21 = arith.mulf %18, %20 : vector<3x256xf32>
    %c9 = arith.constant 9 : index
    %c0_8 = arith.constant 0 : index
    %22 = vector.load %arg10[%c9, %c0_8] : memref<248x256xf32, #tpu.memory_space<vmem>>, vector<3x256xf32>
    tpu.vector_store %arg10[%c9, %c0_8], %21 {strides = array<i32>} : memref<248x256xf32, #tpu.memory_space<vmem>>, vector<3x256xf32>,
    %c12 = arith.constant 12 : index
    %c0_9 = arith.constant 0 : index
    %23 = vector.load %arg10[%c12, %c0_9] : memref<248x256xf32, #tpu.memory_space<vmem>>, vector<3x256xf32>
    tpu.vector_store %arg10[%c12, %c0_9], %2 {strides = array<i32>} : memref<248x256xf32, #tpu.memory_space<vmem>>, vector<3x256xf32>,
    %c255_i32 = arith.constant 255 : i32
    %24 = tpu.dynamic_rotate %2 by %c255_i32 dim 1 : vector<3x256xf32>, i32 -> vector<3x256xf32>
    %25 = vector.extract_strided_slice %0 {offsets = [5, 0], sizes = [1, 256], strides = [1, 1]} : vector<9x256xf32> to vector<1x256xf32>
    %26 = vector.broadcast %25 : vector<1x256xf32> to vector<3x256xf32>
    %27 = arith.mulf %24, %26 : vector<3x256xf32>
    %c15 = arith.constant 15 : index
    %c0_10 = arith.constant 0 : index
    %28 = vector.load %arg10[%c15, %c0_10] : memref<248x256xf32, #tpu.memory_space<vmem>>, vector<3x256xf32>
    tpu.vector_store %arg10[%c15, %c0_10], %27 {strides = array<i32>} : memref<248x256xf32, #tpu.memory_space<vmem>>, vector<3x256xf32>,
    %c241_i32 = arith.constant 241 : i32
    %29 = tpu.dynamic_rotate %2 by %c241_i32 dim 1 : vector<3x256xf32>, i32 -> vector<3x256xf32>
    %30 = vector.extract_strided_slice %0 {offsets = [6, 0], sizes = [1, 256], strides = [1, 1]} : vector<9x256xf32> to vector<1x256xf32>
    %31 = vector.broadcast %30 : vector<1x256xf32> to vector<3x256xf32>
    %32 = arith.mulf %29, %31 : vector<3x256xf32>
    %c18 = arith.constant 18 : index
    %c0_11 = arith.constant 0 : index
    %33 = vector.load %arg10[%c18, %c0_11] : memref<248x256xf32, #tpu.memory_space<vmem>>, vector<3x256xf32>
    tpu.vector_store %arg10[%c18, %c0_11], %32 {strides = array<i32>} : memref<248x256xf32, #tpu.memory_space<vmem>>, vector<3x256xf32>,
    %c240_i32 = arith.constant 240 : i32
    %34 = tpu.dynamic_rotate %2 by %c240_i32 dim 1 : vector<3x256xf32>, i32 -> vector<3x256xf32>
    %35 = vector.extract_strided_slice %0 {offsets = [7, 0], sizes = [1, 256], strides = [1, 1]} : vector<9x256xf32> to vector<1x256xf32>
    %36 = vector.broadcast %35 : vector<1x256xf32> to vector<3x256xf32>
    %37 = arith.mulf %34, %36 : vector<3x256xf32>
    %c21 = arith.constant 21 : index
    %c0_12 = arith.constant 0 : index
    %38 = vector.load %arg10[%c21, %c0_12] : memref<248x256xf32, #tpu.memory_space<vmem>>, vector<3x256xf32>
    tpu.vector_store %arg10[%c21, %c0_12], %37 {strides = array<i32>} : memref<248x256xf32, #tpu.memory_space<vmem>>, vector<3x256xf32>,
    %c239_i32 = arith.constant 239 : i32
    %39 = tpu.dynamic_rotate %2 by %c239_i32 dim 1 : vector<3x256xf32>, i32 -> vector<3x256xf32>
    %40 = vector.extract_strided_slice %0 {offsets = [8, 0], sizes = [1, 256], strides = [1, 1]} : vector<9x256xf32> to vector<1x256xf32>
    %41 = vector.broadcast %40 : vector<1x256xf32> to vector<3x256xf32>
    %42 = arith.mulf %39, %41 : vector<3x256xf32>
    %c24 = arith.constant 24 : index
    %c0_13 = arith.constant 0 : index
    %43 = vector.load %arg10[%c24, %c0_13] : memref<248x256xf32, #tpu.memory_space<vmem>>, vector<3x256xf32>
    tpu.vector_store %arg10[%c24, %c0_13], %42 {strides = array<i32>} : memref<248x256xf32, #tpu.memory_space<vmem>>, vector<3x256xf32>,
    %c0_14 = arith.constant 0 : index
    %c0_15 = arith.constant 0 : index
    %c0_16 = arith.constant 0 : index
    %44 = vector.load %arg4[%c0_14, %c0_15, %c0_16] : memref<5x16x248xf32, #tpu.memory_space<vmem>>, vector<1x16x27xf32>
    %45 = vector.shape_cast %44 : vector<1x16x27xf32> to vector<16x27xf32>
    %c0_17 = arith.constant 0 : index
    %c0_18 = arith.constant 0 : index
    %46 = vector.load %arg10[%c0_17, %c0_18] : memref<248x256xf32, #tpu.memory_space<vmem>>, vector<27x256xf32>
    %cst = arith.constant dense<0.000000e+00> : vector<16x256xf32>
    %47 = tpu.matmul %45, %46, %cst {dimension_numbers = #tpu.dot_dimension_numbers<[1], [0], [0], [1], [0, 0, 1, 1], [], []>} : vector<16x27xf32>, vector<27x256xf32>, vector<16x256xf32> -> vector<16x256xf32>
    %c0_19 = arith.constant 0 : index
    %c0_20 = arith.constant 0 : index
    %c0_21 = arith.constant 0 : index
    %48 = vector.load %arg5[%c0_19, %c0_20, %c0_21] : memref<5x16x1xf32, #tpu.memory_space<vmem>>, vector<1x16x1xf32>
    %49 = vector.shape_cast %48 : vector<1x16x1xf32> to vector<16x1xf32>
    %50 = vector.broadcast %49 : vector<16x1xf32> to vector<16x256xf32>
    %51 = arith.mulf %47, %50 : vector<16x256xf32>
    %c0_22 = arith.constant 0 : index
    %c0_23 = arith.constant 0 : index
    %c0_24 = arith.constant 0 : index
    %52 = vector.load %arg6[%c0_22, %c0_23, %c0_24] : memref<5x16x1xf32, #tpu.memory_space<vmem>>, vector<1x16x1xf32>
    %53 = vector.shape_cast %52 : vector<1x16x1xf32> to vector<16x1xf32>
    %54 = vector.broadcast %53 : vector<16x1xf32> to vector<16x256xf32>
    %55 = arith.addf %51, %54 : vector<16x256xf32>
    %cst_25 = arith.constant 5.000000e-01 : f32
    %56 = vector.broadcast %cst_25 : f32 to vector<16x256xf32>
    %57 = arith.mulf %56, %55 : vector<16x256xf32>
    %cst_26 = arith.constant 0.707106769 : f32
    %58 = vector.broadcast %cst_26 : f32 to vector<16x256xf32>
    %59 = arith.mulf %55, %58 : vector<16x256xf32>
    %cst_27 = arith.constant -3.925000e+00 : f32
    %cst_28 = arith.constant 3.925000e+00 : f32
    %60 = vector.broadcast %cst_27 : f32 to vector<16x256xf32>
    %61 = arith.maximumf %60, %59 : vector<16x256xf32>
    %62 = vector.broadcast %cst_28 : f32 to vector<16x256xf32>
    %63 = arith.minimumf %62, %61 : vector<16x256xf32>
    %64 = arith.mulf %63, %63 : vector<16x256xf32>
    %cst_29 = arith.constant -2.72614237E-10 : f32
    %65 = vector.broadcast %cst_29 : f32 to vector<16x256xf32>
    %66 = arith.mulf %65, %64 : vector<16x256xf32>
    %cst_30 = arith.constant 2.77068146E-8 : f32
    %67 = vector.broadcast %cst_30 : f32 to vector<16x256xf32>
    %68 = arith.addf %66, %67 : vector<16x256xf32>
    %69 = arith.mulf %68, %64 : vector<16x256xf32>
    %cst_31 = arith.constant -2.10102394E-6 : f32
    %70 = vector.broadcast %cst_31 : f32 to vector<16x256xf32>
    %71 = arith.addf %69, %70 : vector<16x256xf32>
    %72 = arith.mulf %71, %64 : vector<16x256xf32>
    %cst_32 = arith.constant -5.69250624E-5 : f32
    %73 = vector.broadcast %cst_32 : f32 to vector<16x256xf32>
    %74 = arith.addf %72, %73 : vector<16x256xf32>
    %75 = arith.mulf %74, %64 : vector<16x256xf32>
    %cst_33 = arith.constant -7.34990637E-4 : f32
    %76 = vector.broadcast %cst_33 : f32 to vector<16x256xf32>
    %77 = arith.addf %75, %76 : vector<16x256xf32>
    %78 = arith.mulf %77, %64 : vector<16x256xf32>
    %cst_34 = arith.constant -2.954600e-03 : f32
    %79 = vector.broadcast %cst_34 : f32 to vector<16x256xf32>
    %80 = arith.addf %78, %79 : vector<16x256xf32>
    %81 = arith.mulf %80, %64 : vector<16x256xf32>
    %cst_35 = arith.constant -0.0160960332 : f32
    %82 = vector.broadcast %cst_35 : f32 to vector<16x256xf32>
    %83 = arith.addf %81, %82 : vector<16x256xf32>
    %cst_36 = arith.constant -1.45660715E-5 : f32
    %84 = vector.broadcast %cst_36 : f32 to vector<16x256xf32>
    %85 = arith.mulf %84, %64 : vector<16x256xf32>
    %cst_37 = arith.constant -2.13374049E-4 : f32
    %86 = vector.broadcast %cst_37 : f32 to vector<16x256xf32>
    %87 = arith.addf %85, %86 : vector<16x256xf32>
    %88 = arith.mulf %87, %64 : vector<16x256xf32>
    %cst_38 = arith.constant -0.00168282702 : f32
    %89 = vector.broadcast %cst_38 : f32 to vector<16x256xf32>
    %90 = arith.addf %88, %89 : vector<16x256xf32>
    %91 = arith.mulf %90, %64 : vector<16x256xf32>
    %cst_39 = arith.constant -0.00737332925 : f32
    %92 = vector.broadcast %cst_39 : f32 to vector<16x256xf32>
    %93 = arith.addf %91, %92 : vector<16x256xf32>
    %94 = arith.mulf %93, %64 : vector<16x256xf32>
    %cst_40 = arith.constant -0.0142647391 : f32
    %95 = vector.broadcast %cst_40 : f32 to vector<16x256xf32>
    %96 = arith.addf %94, %95 : vector<16x256xf32>
    %97 = arith.mulf %63, %83 : vector<16x256xf32>
    %98 = arith.divf %97, %96 : vector<16x256xf32>
    %cst_41 = arith.constant 1.000000e+00 : f32
    %99 = vector.broadcast %cst_41 : f32 to vector<16x256xf32>
    %100 = arith.addf %99, %98 : vector<16x256xf32>
    %101 = arith.mulf %57, %100 : vector<16x256xf32>
    %c17_i32_42 = arith.constant 17 : i32
    %102 = tpu.dynamic_rotate %101 by %c17_i32_42 dim 1 : vector<16x256xf32>, i32 -> vector<16x256xf32>
    %103 = vector.extract_strided_slice %0 {offsets = [0, 0], sizes = [1, 256], strides = [1, 1]} : vector<9x256xf32> to vector<1x256xf32>
    %104 = vector.broadcast %103 : vector<1x256xf32> to vector<16x256xf32>
    %105 = arith.mulf %102, %104 : vector<16x256xf32>
    %c0_43 = arith.constant 0 : index
    %c0_44 = arith.constant 0 : index
    %106 = vector.load %arg10[%c0_43, %c0_44] : memref<248x256xf32, #tpu.memory_space<vmem>>, vector<16x256xf32>
    tpu.vector_store %arg10[%c0_43, %c0_44], %105 {strides = array<i32>} : memref<248x256xf32, #tpu.memory_space<vmem>>, vector<16x256xf32>,
    %c16_i32_45 = arith.constant 16 : i32
    %107 = tpu.dynamic_rotate %101 by %c16_i32_45 dim 1 : vector<16x256xf32>, i32 -> vector<16x256xf32>
    %108 = vector.extract_strided_slice %0 {offsets = [1, 0], sizes = [1, 256], strides = [1, 1]} : vector<9x256xf32> to vector<1x256xf32>
    %109 = vector.broadcast %108 : vector<1x256xf32> to vector<16x256xf32>
    %110 = arith.mulf %107, %109 : vector<16x256xf32>
    %c16 = arith.constant 16 : index
    %c0_46 = arith.constant 0 : index
    %111 = vector.load %arg10[%c16, %c0_46] : memref<248x256xf32, #tpu.memory_space<vmem>>, vector<16x256xf32>
    tpu.vector_store %arg10[%c16, %c0_46], %110 {strides = array<i32>} : memref<248x256xf32, #tpu.memory_space<vmem>>, vector<16x256xf32>,
    %c15_i32_47 = arith.constant 15 : i32
    %112 = tpu.dynamic_rotate %101 by %c15_i32_47 dim 1 : vector<16x256xf32>, i32 -> vector<16x256xf32>
    %113 = vector.extract_strided_slice %0 {offsets = [2, 0], sizes = [1, 256], strides = [1, 1]} : vector<9x256xf32> to vector<1x256xf32>
    %114 = vector.broadcast %113 : vector<1x256xf32> to vector<16x256xf32>
    %115 = arith.mulf %112, %114 : vector<16x256xf32>
    %c32 = arith.constant 32 : index
    %c0_48 = arith.constant 0 : index
    %116 = vector.load %arg10[%c32, %c0_48] : memref<248x256xf32, #tpu.memory_space<vmem>>, vector<16x256xf32>
    tpu.vector_store %arg10[%c32, %c0_48], %115 {strides = array<i32>} : memref<248x256xf32, #tpu.memory_space<vmem>>, vector<16x256xf32>,
    %c1_i32_49 = arith.constant 1 : i32
    %117 = tpu.dynamic_rotate %101 by %c1_i32_49 dim 1 : vector<16x256xf32>, i32 -> vector<16x256xf32>
    %118 = vector.extract_strided_slice %0 {offsets = [3, 0], sizes = [1, 256], strides = [1, 1]} : vector<9x256xf32> to vector<1x256xf32>
    %119 = vector.broadcast %118 : vector<1x256xf32> to vector<16x256xf32>
    %120 = arith.mulf %117, %119 : vector<16x256xf32>
    %c48 = arith.constant 48 : index
    %c0_50 = arith.constant 0 : index
    %121 = vector.load %arg10[%c48, %c0_50] : memref<248x256xf32, #tpu.memory_space<vmem>>, vector<16x256xf32>
    tpu.vector_store %arg10[%c48, %c0_50], %120 {strides = array<i32>} : memref<248x256xf32, #tpu.memory_space<vmem>>, vector<16x256xf32>,
    %c64 = arith.constant 64 : index
    %c0_51 = arith.constant 0 : index
    %122 = vector.load %arg10[%c64, %c0_51] : memref<248x256xf32, #tpu.memory_space<vmem>>, vector<16x256xf32>
    tpu.vector_store %arg10[%c64, %c0_51], %101 {strides = array<i32>} : memref<248x256xf32, #tpu.memory_space<vmem>>, vector<16x256xf32>,
    %c255_i32_52 = arith.constant 255 : i32
    %123 = tpu.dynamic_rotate %101 by %c255_i32_52 dim 1 : vector<16x256xf32>, i32 -> vector<16x256xf32>
    %124 = vector.extract_strided_slice %0 {offsets = [5, 0], sizes = [1, 256], strides = [1, 1]} : vector<9x256xf32> to vector<1x256xf32>
    %125 = vector.broadcast %124 : vector<1x256xf32> to vector<16x256xf32>
    %126 = arith.mulf %123, %125 : vector<16x256xf32>
    %c80 = arith.constant 80 : index
    %c0_53 = arith.constant 0 : index
    %127 = vector.load %arg10[%c80, %c0_53] : memref<248x256xf32, #tpu.memory_space<vmem>>, vector<16x256xf32>
    tpu.vector_store %arg10[%c80, %c0_53], %126 {strides = array<i32>} : memref<248x256xf32, #tpu.memory_space<vmem>>, vector<16x256xf32>,
    %c241_i32_54 = arith.constant 241 : i32
    %128 = tpu.dynamic_rotate %101 by %c241_i32_54 dim 1 : vector<16x256xf32>, i32 -> vector<16x256xf32>
    %129 = vector.extract_strided_slice %0 {offsets = [6, 0], sizes = [1, 256], strides = [1, 1]} : vector<9x256xf32> to vector<1x256xf32>
    %130 = vector.broadcast %129 : vector<1x256xf32> to vector<16x256xf32>
    %131 = arith.mulf %128, %130 : vector<16x256xf32>
    %c96 = arith.constant 96 : index
    %c0_55 = arith.constant 0 : index
    %132 = vector.load %arg10[%c96, %c0_55] : memref<248x256xf32, #tpu.memory_space<vmem>>, vector<16x256xf32>
    tpu.vector_store %arg10[%c96, %c0_55], %131 {strides = array<i32>} : memref<248x256xf32, #tpu.memory_space<vmem>>, vector<16x256xf32>,
    %c240_i32_56 = arith.constant 240 : i32
    %133 = tpu.dynamic_rotate %101 by %c240_i32_56 dim 1 : vector<16x256xf32>, i32 -> vector<16x256xf32>
    %134 = vector.extract_strided_slice %0 {offsets = [7, 0], sizes = [1, 256], strides = [1, 1]} : vector<9x256xf32> to vector<1x256xf32>
    %135 = vector.broadcast %134 : vector<1x256xf32> to vector<16x256xf32>
    %136 = arith.mulf %133, %135 : vector<16x256xf32>
    %c112 = arith.constant 112 : index
    %c0_57 = arith.constant 0 : index
    %137 = vector.load %arg10[%c112, %c0_57] : memref<248x256xf32, #tpu.memory_space<vmem>>, vector<16x256xf32>
    tpu.vector_store %arg10[%c112, %c0_57], %136 {strides = array<i32>} : memref<248x256xf32, #tpu.memory_space<vmem>>, vector<16x256xf32>,
    %c239_i32_58 = arith.constant 239 : i32
    %138 = tpu.dynamic_rotate %101 by %c239_i32_58 dim 1 : vector<16x256xf32>, i32 -> vector<16x256xf32>
    %139 = vector.extract_strided_slice %0 {offsets = [8, 0], sizes = [1, 256], strides = [1, 1]} : vector<9x256xf32> to vector<1x256xf32>
    %140 = vector.broadcast %139 : vector<1x256xf32> to vector<16x256xf32>
    %141 = arith.mulf %138, %140 : vector<16x256xf32>
    %c128 = arith.constant 128 : index
    %c0_59 = arith.constant 0 : index
    %142 = vector.load %arg10[%c128, %c0_59] : memref<248x256xf32, #tpu.memory_space<vmem>>, vector<16x256xf32>
    tpu.vector_store %arg10[%c128, %c0_59], %141 {strides = array<i32>} : memref<248x256xf32, #tpu.memory_space<vmem>>, vector<16x256xf32>,
    %c1 = arith.constant 1 : index
    %c0_60 = arith.constant 0 : index
    %c0_61 = arith.constant 0 : index
    %143 = vector.load %arg4[%c1, %c0_60, %c0_61] : memref<5x16x248xf32, #tpu.memory_space<vmem>>, vector<1x16x144xf32>
    %144 = vector.shape_cast %143 : vector<1x16x144xf32> to vector<16x144xf32>
    %c0_62 = arith.constant 0 : index
    %c0_63 = arith.constant 0 : index
    %145 = vector.load %arg10[%c0_62, %c0_63] : memref<248x256xf32, #tpu.memory_space<vmem>>, vector<144x256xf32>
    %cst_64 = arith.constant dense<0.000000e+00> : vector<16x256xf32>
    %146 = tpu.matmul %144, %145, %cst_64 {dimension_numbers = #tpu.dot_dimension_numbers<[1], [0], [0], [1], [0, 0, 1, 1], [], []>} : vector<16x144xf32>, vector<144x256xf32>, vector<16x256xf32> -> vector<16x256xf32>
    %c1_65 = arith.constant 1 : index
    %c0_66 = arith.constant 0 : index
    %c0_67 = arith.constant 0 : index
    %147 = vector.load %arg5[%c1_65, %c0_66, %c0_67] : memref<5x16x1xf32, #tpu.memory_space<vmem>>, vector<1x16x1xf32>
    %148 = vector.shape_cast %147 : vector<1x16x1xf32> to vector<16x1xf32>
    %149 = vector.broadcast %148 : vector<16x1xf32> to vector<16x256xf32>
    %150 = arith.mulf %146, %149 : vector<16x256xf32>
    %c1_68 = arith.constant 1 : index
    %c0_69 = arith.constant 0 : index
    %c0_70 = arith.constant 0 : index
    %151 = vector.load %arg6[%c1_68, %c0_69, %c0_70] : memref<5x16x1xf32, #tpu.memory_space<vmem>>, vector<1x16x1xf32>
    %152 = vector.shape_cast %151 : vector<1x16x1xf32> to vector<16x1xf32>
    %153 = vector.broadcast %152 : vector<16x1xf32> to vector<16x256xf32>
    %154 = arith.addf %150, %153 : vector<16x256xf32>
    %cst_71 = arith.constant 5.000000e-01 : f32
    %155 = vector.broadcast %cst_71 : f32 to vector<16x256xf32>
    %156 = arith.mulf %155, %154 : vector<16x256xf32>
    %cst_72 = arith.constant 0.707106769 : f32
    %157 = vector.broadcast %cst_72 : f32 to vector<16x256xf32>
    %158 = arith.mulf %154, %157 : vector<16x256xf32>
    %cst_73 = arith.constant -3.925000e+00 : f32
    %cst_74 = arith.constant 3.925000e+00 : f32
    %159 = vector.broadcast %cst_73 : f32 to vector<16x256xf32>
    %160 = arith.maximumf %159, %158 : vector<16x256xf32>
    %161 = vector.broadcast %cst_74 : f32 to vector<16x256xf32>
    %162 = arith.minimumf %161, %160 : vector<16x256xf32>
    %163 = arith.mulf %162, %162 : vector<16x256xf32>
    %cst_75 = arith.constant -2.72614237E-10 : f32
    %164 = vector.broadcast %cst_75 : f32 to vector<16x256xf32>
    %165 = arith.mulf %164, %163 : vector<16x256xf32>
    %cst_76 = arith.constant 2.77068146E-8 : f32
    %166 = vector.broadcast %cst_76 : f32 to vector<16x256xf32>
    %167 = arith.addf %165, %166 : vector<16x256xf32>
    %168 = arith.mulf %167, %163 : vector<16x256xf32>
    %cst_77 = arith.constant -2.10102394E-6 : f32
    %169 = vector.broadcast %cst_77 : f32 to vector<16x256xf32>
    %170 = arith.addf %168, %169 : vector<16x256xf32>
    %171 = arith.mulf %170, %163 : vector<16x256xf32>
    %cst_78 = arith.constant -5.69250624E-5 : f32
    %172 = vector.broadcast %cst_78 : f32 to vector<16x256xf32>
    %173 = arith.addf %171, %172 : vector<16x256xf32>
    %174 = arith.mulf %173, %163 : vector<16x256xf32>
    %cst_79 = arith.constant -7.34990637E-4 : f32
    %175 = vector.broadcast %cst_79 : f32 to vector<16x256xf32>
    %176 = arith.addf %174, %175 : vector<16x256xf32>
    %177 = arith.mulf %176, %163 : vector<16x256xf32>
    %cst_80 = arith.constant -2.954600e-03 : f32
    %178 = vector.broadcast %cst_80 : f32 to vector<16x256xf32>
    %179 = arith.addf %177, %178 : vector<16x256xf32>
    %180 = arith.mulf %179, %163 : vector<16x256xf32>
    %cst_81 = arith.constant -0.0160960332 : f32
    %181 = vector.broadcast %cst_81 : f32 to vector<16x256xf32>
    %182 = arith.addf %180, %181 : vector<16x256xf32>
    %cst_82 = arith.constant -1.45660715E-5 : f32
    %183 = vector.broadcast %cst_82 : f32 to vector<16x256xf32>
    %184 = arith.mulf %183, %163 : vector<16x256xf32>
    %cst_83 = arith.constant -2.13374049E-4 : f32
    %185 = vector.broadcast %cst_83 : f32 to vector<16x256xf32>
    %186 = arith.addf %184, %185 : vector<16x256xf32>
    %187 = arith.mulf %186, %163 : vector<16x256xf32>
    %cst_84 = arith.constant -0.00168282702 : f32
    %188 = vector.broadcast %cst_84 : f32 to vector<16x256xf32>
    %189 = arith.addf %187, %188 : vector<16x256xf32>
    %190 = arith.mulf %189, %163 : vector<16x256xf32>
    %cst_85 = arith.constant -0.00737332925 : f32
    %191 = vector.broadcast %cst_85 : f32 to vector<16x256xf32>
    %192 = arith.addf %190, %191 : vector<16x256xf32>
    %193 = arith.mulf %192, %163 : vector<16x256xf32>
    %cst_86 = arith.constant -0.0142647391 : f32
    %194 = vector.broadcast %cst_86 : f32 to vector<16x256xf32>
    %195 = arith.addf %193, %194 : vector<16x256xf32>
    %196 = arith.mulf %162, %182 : vector<16x256xf32>
    %197 = arith.divf %196, %195 : vector<16x256xf32>
    %cst_87 = arith.constant 1.000000e+00 : f32
    %198 = vector.broadcast %cst_87 : f32 to vector<16x256xf32>
    %199 = arith.addf %198, %197 : vector<16x256xf32>
    %200 = arith.mulf %156, %199 : vector<16x256xf32>
    %c17_i32_88 = arith.constant 17 : i32
    %201 = tpu.dynamic_rotate %200 by %c17_i32_88 dim 1 : vector<16x256xf32>, i32 -> vector<16x256xf32>
    %202 = vector.extract_strided_slice %0 {offsets = [0, 0], sizes = [1, 256], strides = [1, 1]} : vector<9x256xf32> to vector<1x256xf32>
    %203 = vector.broadcast %202 : vector<1x256xf32> to vector<16x256xf32>
    %204 = arith.mulf %201, %203 : vector<16x256xf32>
    %c0_89 = arith.constant 0 : index
    %c0_90 = arith.constant 0 : index
    %205 = vector.load %arg10[%c0_89, %c0_90] : memref<248x256xf32, #tpu.memory_space<vmem>>, vector<16x256xf32>
    tpu.vector_store %arg10[%c0_89, %c0_90], %204 {strides = array<i32>} : memref<248x256xf32, #tpu.memory_space<vmem>>, vector<16x256xf32>,
    %c16_i32_91 = arith.constant 16 : i32
    %206 = tpu.dynamic_rotate %200 by %c16_i32_91 dim 1 : vector<16x256xf32>, i32 -> vector<16x256xf32>
    %207 = vector.extract_strided_slice %0 {offsets = [1, 0], sizes = [1, 256], strides = [1, 1]} : vector<9x256xf32> to vector<1x256xf32>
    %208 = vector.broadcast %207 : vector<1x256xf32> to vector<16x256xf32>
    %209 = arith.mulf %206, %208 : vector<16x256xf32>
    %c16_92 = arith.constant 16 : index
    %c0_93 = arith.constant 0 : index
    %210 = vector.load %arg10[%c16_92, %c0_93] : memref<248x256xf32, #tpu.memory_space<vmem>>, vector<16x256xf32>
    tpu.vector_store %arg10[%c16_92, %c0_93], %209 {strides = array<i32>} : memref<248x256xf32, #tpu.memory_space<vmem>>, vector<16x256xf32>,
    %c15_i32_94 = arith.constant 15 : i32
    %211 = tpu.dynamic_rotate %200 by %c15_i32_94 dim 1 : vector<16x256xf32>, i32 -> vector<16x256xf32>
    %212 = vector.extract_strided_slice %0 {offsets = [2, 0], sizes = [1, 256], strides = [1, 1]} : vector<9x256xf32> to vector<1x256xf32>
    %213 = vector.broadcast %212 : vector<1x256xf32> to vector<16x256xf32>
    %214 = arith.mulf %211, %213 : vector<16x256xf32>
    %c32_95 = arith.constant 32 : index
    %c0_96 = arith.constant 0 : index
    %215 = vector.load %arg10[%c32_95, %c0_96] : memref<248x256xf32, #tpu.memory_space<vmem>>, vector<16x256xf32>
    tpu.vector_store %arg10[%c32_95, %c0_96], %214 {strides = array<i32>} : memref<248x256xf32, #tpu.memory_space<vmem>>, vector<16x256xf32>,
    %c1_i32_97 = arith.constant 1 : i32
    %216 = tpu.dynamic_rotate %200 by %c1_i32_97 dim 1 : vector<16x256xf32>, i32 -> vector<16x256xf32>
    %217 = vector.extract_strided_slice %0 {offsets = [3, 0], sizes = [1, 256], strides = [1, 1]} : vector<9x256xf32> to vector<1x256xf32>
    %218 = vector.broadcast %217 : vector<1x256xf32> to vector<16x256xf32>
    %219 = arith.mulf %216, %218 : vector<16x256xf32>
    %c48_98 = arith.constant 48 : index
    %c0_99 = arith.constant 0 : index
    %220 = vector.load %arg10[%c48_98, %c0_99] : memref<248x256xf32, #tpu.memory_space<vmem>>, vector<16x256xf32>
    tpu.vector_store %arg10[%c48_98, %c0_99], %219 {strides = array<i32>} : memref<248x256xf32, #tpu.memory_space<vmem>>, vector<16x256xf32>,
    %c64_100 = arith.constant 64 : index
    %c0_101 = arith.constant 0 : index
    %221 = vector.load %arg10[%c64_100, %c0_101] : memref<248x256xf32, #tpu.memory_space<vmem>>, vector<16x256xf32>
    tpu.vector_store %arg10[%c64_100, %c0_101], %200 {strides = array<i32>} : memref<248x256xf32, #tpu.memory_space<vmem>>, vector<16x256xf32>,
    %c255_i32_102 = arith.constant 255 : i32
    %222 = tpu.dynamic_rotate %200 by %c255_i32_102 dim 1 : vector<16x256xf32>, i32 -> vector<16x256xf32>
    %223 = vector.extract_strided_slice %0 {offsets = [5, 0], sizes = [1, 256], strides = [1, 1]} : vector<9x256xf32> to vector<1x256xf32>
    %224 = vector.broadcast %223 : vector<1x256xf32> to vector<16x256xf32>
    %225 = arith.mulf %222, %224 : vector<16x256xf32>
    %c80_103 = arith.constant 80 : index
    %c0_104 = arith.constant 0 : index
    %226 = vector.load %arg10[%c80_103, %c0_104] : memref<248x256xf32, #tpu.memory_space<vmem>>, vector<16x256xf32>
    tpu.vector_store %arg10[%c80_103, %c0_104], %225 {strides = array<i32>} : memref<248x256xf32, #tpu.memory_space<vmem>>, vector<16x256xf32>,
    %c241_i32_105 = arith.constant 241 : i32
    %227 = tpu.dynamic_rotate %200 by %c241_i32_105 dim 1 : vector<16x256xf32>, i32 -> vector<16x256xf32>
    %228 = vector.extract_strided_slice %0 {offsets = [6, 0], sizes = [1, 256], strides = [1, 1]} : vector<9x256xf32> to vector<1x256xf32>
    %229 = vector.broadcast %228 : vector<1x256xf32> to vector<16x256xf32>
    %230 = arith.mulf %227, %229 : vector<16x256xf32>
    %c96_106 = arith.constant 96 : index
    %c0_107 = arith.constant 0 : index
    %231 = vector.load %arg10[%c96_106, %c0_107] : memref<248x256xf32, #tpu.memory_space<vmem>>, vector<16x256xf32>
    tpu.vector_store %arg10[%c96_106, %c0_107], %230 {strides = array<i32>} : memref<248x256xf32, #tpu.memory_space<vmem>>, vector<16x256xf32>,
    %c240_i32_108 = arith.constant 240 : i32
    %232 = tpu.dynamic_rotate %200 by %c240_i32_108 dim 1 : vector<16x256xf32>, i32 -> vector<16x256xf32>
    %233 = vector.extract_strided_slice %0 {offsets = [7, 0], sizes = [1, 256], strides = [1, 1]} : vector<9x256xf32> to vector<1x256xf32>
    %234 = vector.broadcast %233 : vector<1x256xf32> to vector<16x256xf32>
    %235 = arith.mulf %232, %234 : vector<16x256xf32>
    %c112_109 = arith.constant 112 : index
    %c0_110 = arith.constant 0 : index
    %236 = vector.load %arg10[%c112_109, %c0_110] : memref<248x256xf32, #tpu.memory_space<vmem>>, vector<16x256xf32>
    tpu.vector_store %arg10[%c112_109, %c0_110], %235 {strides = array<i32>} : memref<248x256xf32, #tpu.memory_space<vmem>>, vector<16x256xf32>,
    %c239_i32_111 = arith.constant 239 : i32
    %237 = tpu.dynamic_rotate %200 by %c239_i32_111 dim 1 : vector<16x256xf32>, i32 -> vector<16x256xf32>
    %238 = vector.extract_strided_slice %0 {offsets = [8, 0], sizes = [1, 256], strides = [1, 1]} : vector<9x256xf32> to vector<1x256xf32>
    %239 = vector.broadcast %238 : vector<1x256xf32> to vector<16x256xf32>
    %240 = arith.mulf %237, %239 : vector<16x256xf32>
    %c128_112 = arith.constant 128 : index
    %c0_113 = arith.constant 0 : index
    %241 = vector.load %arg10[%c128_112, %c0_113] : memref<248x256xf32, #tpu.memory_space<vmem>>, vector<16x256xf32>
    tpu.vector_store %arg10[%c128_112, %c0_113], %240 {strides = array<i32>} : memref<248x256xf32, #tpu.memory_space<vmem>>, vector<16x256xf32>,
    %c2 = arith.constant 2 : index
    %c0_114 = arith.constant 0 : index
    %c0_115 = arith.constant 0 : index
    %242 = vector.load %arg4[%c2, %c0_114, %c0_115] : memref<5x16x248xf32, #tpu.memory_space<vmem>>, vector<1x16x144xf32>
    %243 = vector.shape_cast %242 : vector<1x16x144xf32> to vector<16x144xf32>
    %c0_116 = arith.constant 0 : index
    %c0_117 = arith.constant 0 : index
    %244 = vector.load %arg10[%c0_116, %c0_117] : memref<248x256xf32, #tpu.memory_space<vmem>>, vector<144x256xf32>
    %cst_118 = arith.constant dense<0.000000e+00> : vector<16x256xf32>
    %245 = tpu.matmul %243, %244, %cst_118 {dimension_numbers = #tpu.dot_dimension_numbers<[1], [0], [0], [1], [0, 0, 1, 1], [], []>} : vector<16x144xf32>, vector<144x256xf32>, vector<16x256xf32> -> vector<16x256xf32>
    %c2_119 = arith.constant 2 : index
    %c0_120 = arith.constant 0 : index
    %c0_121 = arith.constant 0 : index
    %246 = vector.load %arg5[%c2_119, %c0_120, %c0_121] : memref<5x16x1xf32, #tpu.memory_space<vmem>>, vector<1x16x1xf32>
    %247 = vector.shape_cast %246 : vector<1x16x1xf32> to vector<16x1xf32>
    %248 = vector.broadcast %247 : vector<16x1xf32> to vector<16x256xf32>
    %249 = arith.mulf %245, %248 : vector<16x256xf32>
    %c2_122 = arith.constant 2 : index
    %c0_123 = arith.constant 0 : index
    %c0_124 = arith.constant 0 : index
    %250 = vector.load %arg6[%c2_122, %c0_123, %c0_124] : memref<5x16x1xf32, #tpu.memory_space<vmem>>, vector<1x16x1xf32>
    %251 = vector.shape_cast %250 : vector<1x16x1xf32> to vector<16x1xf32>
    %252 = vector.broadcast %251 : vector<16x1xf32> to vector<16x256xf32>
    %253 = arith.addf %249, %252 : vector<16x256xf32>
    %cst_125 = arith.constant 5.000000e-01 : f32
    %254 = vector.broadcast %cst_125 : f32 to vector<16x256xf32>
    %255 = arith.mulf %254, %253 : vector<16x256xf32>
    %cst_126 = arith.constant 0.707106769 : f32
    %256 = vector.broadcast %cst_126 : f32 to vector<16x256xf32>
    %257 = arith.mulf %253, %256 : vector<16x256xf32>
    %cst_127 = arith.constant -3.925000e+00 : f32
    %cst_128 = arith.constant 3.925000e+00 : f32
    %258 = vector.broadcast %cst_127 : f32 to vector<16x256xf32>
    %259 = arith.maximumf %258, %257 : vector<16x256xf32>
    %260 = vector.broadcast %cst_128 : f32 to vector<16x256xf32>
    %261 = arith.minimumf %260, %259 : vector<16x256xf32>
    %262 = arith.mulf %261, %261 : vector<16x256xf32>
    %cst_129 = arith.constant -2.72614237E-10 : f32
    %263 = vector.broadcast %cst_129 : f32 to vector<16x256xf32>
    %264 = arith.mulf %263, %262 : vector<16x256xf32>
    %cst_130 = arith.constant 2.77068146E-8 : f32
    %265 = vector.broadcast %cst_130 : f32 to vector<16x256xf32>
    %266 = arith.addf %264, %265 : vector<16x256xf32>
    %267 = arith.mulf %266, %262 : vector<16x256xf32>
    %cst_131 = arith.constant -2.10102394E-6 : f32
    %268 = vector.broadcast %cst_131 : f32 to vector<16x256xf32>
    %269 = arith.addf %267, %268 : vector<16x256xf32>
    %270 = arith.mulf %269, %262 : vector<16x256xf32>
    %cst_132 = arith.constant -5.69250624E-5 : f32
    %271 = vector.broadcast %cst_132 : f32 to vector<16x256xf32>
    %272 = arith.addf %270, %271 : vector<16x256xf32>
    %273 = arith.mulf %272, %262 : vector<16x256xf32>
    %cst_133 = arith.constant -7.34990637E-4 : f32
    %274 = vector.broadcast %cst_133 : f32 to vector<16x256xf32>
    %275 = arith.addf %273, %274 : vector<16x256xf32>
    %276 = arith.mulf %275, %262 : vector<16x256xf32>
    %cst_134 = arith.constant -2.954600e-03 : f32
    %277 = vector.broadcast %cst_134 : f32 to vector<16x256xf32>
    %278 = arith.addf %276, %277 : vector<16x256xf32>
    %279 = arith.mulf %278, %262 : vector<16x256xf32>
    %cst_135 = arith.constant -0.0160960332 : f32
    %280 = vector.broadcast %cst_135 : f32 to vector<16x256xf32>
    %281 = arith.addf %279, %280 : vector<16x256xf32>
    %cst_136 = arith.constant -1.45660715E-5 : f32
    %282 = vector.broadcast %cst_136 : f32 to vector<16x256xf32>
    %283 = arith.mulf %282, %262 : vector<16x256xf32>
    %cst_137 = arith.constant -2.13374049E-4 : f32
    %284 = vector.broadcast %cst_137 : f32 to vector<16x256xf32>
    %285 = arith.addf %283, %284 : vector<16x256xf32>
    %286 = arith.mulf %285, %262 : vector<16x256xf32>
    %cst_138 = arith.constant -0.00168282702 : f32
    %287 = vector.broadcast %cst_138 : f32 to vector<16x256xf32>
    %288 = arith.addf %286, %287 : vector<16x256xf32>
    %289 = arith.mulf %288, %262 : vector<16x256xf32>
    %cst_139 = arith.constant -0.00737332925 : f32
    %290 = vector.broadcast %cst_139 : f32 to vector<16x256xf32>
    %291 = arith.addf %289, %290 : vector<16x256xf32>
    %292 = arith.mulf %291, %262 : vector<16x256xf32>
    %cst_140 = arith.constant -0.0142647391 : f32
    %293 = vector.broadcast %cst_140 : f32 to vector<16x256xf32>
    %294 = arith.addf %292, %293 : vector<16x256xf32>
    %295 = arith.mulf %261, %281 : vector<16x256xf32>
    %296 = arith.divf %295, %294 : vector<16x256xf32>
    %cst_141 = arith.constant 1.000000e+00 : f32
    %297 = vector.broadcast %cst_141 : f32 to vector<16x256xf32>
    %298 = arith.addf %297, %296 : vector<16x256xf32>
    %299 = arith.mulf %255, %298 : vector<16x256xf32>
    %c17_i32_142 = arith.constant 17 : i32
    %300 = tpu.dynamic_rotate %299 by %c17_i32_142 dim 1 : vector<16x256xf32>, i32 -> vector<16x256xf32>
    %301 = vector.extract_strided_slice %0 {offsets = [0, 0], sizes = [1, 256], strides = [1, 1]} : vector<9x256xf32> to vector<1x256xf32>
    %302 = vector.broadcast %301 : vector<1x256xf32> to vector<16x256xf32>
    %303 = arith.mulf %300, %302 : vector<16x256xf32>
    %c0_143 = arith.constant 0 : index
    %c0_144 = arith.constant 0 : index
    %304 = vector.load %arg10[%c0_143, %c0_144] : memref<248x256xf32, #tpu.memory_space<vmem>>, vector<16x256xf32>
    tpu.vector_store %arg10[%c0_143, %c0_144], %303 {strides = array<i32>} : memref<248x256xf32, #tpu.memory_space<vmem>>, vector<16x256xf32>,
    %c16_i32_145 = arith.constant 16 : i32
    %305 = tpu.dynamic_rotate %299 by %c16_i32_145 dim 1 : vector<16x256xf32>, i32 -> vector<16x256xf32>
    %306 = vector.extract_strided_slice %0 {offsets = [1, 0], sizes = [1, 256], strides = [1, 1]} : vector<9x256xf32> to vector<1x256xf32>
    %307 = vector.broadcast %306 : vector<1x256xf32> to vector<16x256xf32>
    %308 = arith.mulf %305, %307 : vector<16x256xf32>
    %c16_146 = arith.constant 16 : index
    %c0_147 = arith.constant 0 : index
    %309 = vector.load %arg10[%c16_146, %c0_147] : memref<248x256xf32, #tpu.memory_space<vmem>>, vector<16x256xf32>
    tpu.vector_store %arg10[%c16_146, %c0_147], %308 {strides = array<i32>} : memref<248x256xf32, #tpu.memory_space<vmem>>, vector<16x256xf32>,
    %c15_i32_148 = arith.constant 15 : i32
    %310 = tpu.dynamic_rotate %299 by %c15_i32_148 dim 1 : vector<16x256xf32>, i32 -> vector<16x256xf32>
    %311 = vector.extract_strided_slice %0 {offsets = [2, 0], sizes = [1, 256], strides = [1, 1]} : vector<9x256xf32> to vector<1x256xf32>
    %312 = vector.broadcast %311 : vector<1x256xf32> to vector<16x256xf32>
    %313 = arith.mulf %310, %312 : vector<16x256xf32>
    %c32_149 = arith.constant 32 : index
    %c0_150 = arith.constant 0 : index
    %314 = vector.load %arg10[%c32_149, %c0_150] : memref<248x256xf32, #tpu.memory_space<vmem>>, vector<16x256xf32>
    tpu.vector_store %arg10[%c32_149, %c0_150], %313 {strides = array<i32>} : memref<248x256xf32, #tpu.memory_space<vmem>>, vector<16x256xf32>,
    %c1_i32_151 = arith.constant 1 : i32
    %315 = tpu.dynamic_rotate %299 by %c1_i32_151 dim 1 : vector<16x256xf32>, i32 -> vector<16x256xf32>
    %316 = vector.extract_strided_slice %0 {offsets = [3, 0], sizes = [1, 256], strides = [1, 1]} : vector<9x256xf32> to vector<1x256xf32>
    %317 = vector.broadcast %316 : vector<1x256xf32> to vector<16x256xf32>
    %318 = arith.mulf %315, %317 : vector<16x256xf32>
    %c48_152 = arith.constant 48 : index
    %c0_153 = arith.constant 0 : index
    %319 = vector.load %arg10[%c48_152, %c0_153] : memref<248x256xf32, #tpu.memory_space<vmem>>, vector<16x256xf32>
    tpu.vector_store %arg10[%c48_152, %c0_153], %318 {strides = array<i32>} : memref<248x256xf32, #tpu.memory_space<vmem>>, vector<16x256xf32>,
    %c64_154 = arith.constant 64 : index
    %c0_155 = arith.constant 0 : index
    %320 = vector.load %arg10[%c64_154, %c0_155] : memref<248x256xf32, #tpu.memory_space<vmem>>, vector<16x256xf32>
    tpu.vector_store %arg10[%c64_154, %c0_155], %299 {strides = array<i32>} : memref<248x256xf32, #tpu.memory_space<vmem>>, vector<16x256xf32>,
    %c255_i32_156 = arith.constant 255 : i32
    %321 = tpu.dynamic_rotate %299 by %c255_i32_156 dim 1 : vector<16x256xf32>, i32 -> vector<16x256xf32>
    %322 = vector.extract_strided_slice %0 {offsets = [5, 0], sizes = [1, 256], strides = [1, 1]} : vector<9x256xf32> to vector<1x256xf32>
    %323 = vector.broadcast %322 : vector<1x256xf32> to vector<16x256xf32>
    %324 = arith.mulf %321, %323 : vector<16x256xf32>
    %c80_157 = arith.constant 80 : index
    %c0_158 = arith.constant 0 : index
    %325 = vector.load %arg10[%c80_157, %c0_158] : memref<248x256xf32, #tpu.memory_space<vmem>>, vector<16x256xf32>
    tpu.vector_store %arg10[%c80_157, %c0_158], %324 {strides = array<i32>} : memref<248x256xf32, #tpu.memory_space<vmem>>, vector<16x256xf32>,
    %c241_i32_159 = arith.constant 241 : i32
    %326 = tpu.dynamic_rotate %299 by %c241_i32_159 dim 1 : vector<16x256xf32>, i32 -> vector<16x256xf32>
    %327 = vector.extract_strided_slice %0 {offsets = [6, 0], sizes = [1, 256], strides = [1, 1]} : vector<9x256xf32> to vector<1x256xf32>
    %328 = vector.broadcast %327 : vector<1x256xf32> to vector<16x256xf32>
    %329 = arith.mulf %326, %328 : vector<16x256xf32>
    %c96_160 = arith.constant 96 : index
    %c0_161 = arith.constant 0 : index
    %330 = vector.load %arg10[%c96_160, %c0_161] : memref<248x256xf32, #tpu.memory_space<vmem>>, vector<16x256xf32>
    tpu.vector_store %arg10[%c96_160, %c0_161], %329 {strides = array<i32>} : memref<248x256xf32, #tpu.memory_space<vmem>>, vector<16x256xf32>,
    %c240_i32_162 = arith.constant 240 : i32
    %331 = tpu.dynamic_rotate %299 by %c240_i32_162 dim 1 : vector<16x256xf32>, i32 -> vector<16x256xf32>
    %332 = vector.extract_strided_slice %0 {offsets = [7, 0], sizes = [1, 256], strides = [1, 1]} : vector<9x256xf32> to vector<1x256xf32>
    %333 = vector.broadcast %332 : vector<1x256xf32> to vector<16x256xf32>
    %334 = arith.mulf %331, %333 : vector<16x256xf32>
    %c112_163 = arith.constant 112 : index
    %c0_164 = arith.constant 0 : index
    %335 = vector.load %arg10[%c112_163, %c0_164] : memref<248x256xf32, #tpu.memory_space<vmem>>, vector<16x256xf32>
    tpu.vector_store %arg10[%c112_163, %c0_164], %334 {strides = array<i32>} : memref<248x256xf32, #tpu.memory_space<vmem>>, vector<16x256xf32>,
    %c239_i32_165 = arith.constant 239 : i32
    %336 = tpu.dynamic_rotate %299 by %c239_i32_165 dim 1 : vector<16x256xf32>, i32 -> vector<16x256xf32>
    %337 = vector.extract_strided_slice %0 {offsets = [8, 0], sizes = [1, 256], strides = [1, 1]} : vector<9x256xf32> to vector<1x256xf32>
    %338 = vector.broadcast %337 : vector<1x256xf32> to vector<16x256xf32>
    %339 = arith.mulf %336, %338 : vector<16x256xf32>
    %c128_166 = arith.constant 128 : index
    %c0_167 = arith.constant 0 : index
    %340 = vector.load %arg10[%c128_166, %c0_167] : memref<248x256xf32, #tpu.memory_space<vmem>>, vector<16x256xf32>
    tpu.vector_store %arg10[%c128_166, %c0_167], %339 {strides = array<i32>} : memref<248x256xf32, #tpu.memory_space<vmem>>, vector<16x256xf32>,
    %c3_168 = arith.constant 3 : index
    %c0_169 = arith.constant 0 : index
    %c0_170 = arith.constant 0 : index
    %341 = vector.load %arg4[%c3_168, %c0_169, %c0_170] : memref<5x16x248xf32, #tpu.memory_space<vmem>>, vector<1x16x144xf32>
    %342 = vector.shape_cast %341 : vector<1x16x144xf32> to vector<16x144xf32>
    %c0_171 = arith.constant 0 : index
    %c0_172 = arith.constant 0 : index
    %343 = vector.load %arg10[%c0_171, %c0_172] : memref<248x256xf32, #tpu.memory_space<vmem>>, vector<144x256xf32>
    %cst_173 = arith.constant dense<0.000000e+00> : vector<16x256xf32>
    %344 = tpu.matmul %342, %343, %cst_173 {dimension_numbers = #tpu.dot_dimension_numbers<[1], [0], [0], [1], [0, 0, 1, 1], [], []>} : vector<16x144xf32>, vector<144x256xf32>, vector<16x256xf32> -> vector<16x256xf32>
    %c3_174 = arith.constant 3 : index
    %c0_175 = arith.constant 0 : index
    %c0_176 = arith.constant 0 : index
    %345 = vector.load %arg5[%c3_174, %c0_175, %c0_176] : memref<5x16x1xf32, #tpu.memory_space<vmem>>, vector<1x16x1xf32>
    %346 = vector.shape_cast %345 : vector<1x16x1xf32> to vector<16x1xf32>
    %347 = vector.broadcast %346 : vector<16x1xf32> to vector<16x256xf32>
    %348 = arith.mulf %344, %347 : vector<16x256xf32>
    %c3_177 = arith.constant 3 : index
    %c0_178 = arith.constant 0 : index
    %c0_179 = arith.constant 0 : index
    %349 = vector.load %arg6[%c3_177, %c0_178, %c0_179] : memref<5x16x1xf32, #tpu.memory_space<vmem>>, vector<1x16x1xf32>
    %350 = vector.shape_cast %349 : vector<1x16x1xf32> to vector<16x1xf32>
    %351 = vector.broadcast %350 : vector<16x1xf32> to vector<16x256xf32>
    %352 = arith.addf %348, %351 : vector<16x256xf32>
    %cst_180 = arith.constant 5.000000e-01 : f32
    %353 = vector.broadcast %cst_180 : f32 to vector<16x256xf32>
    %354 = arith.mulf %353, %352 : vector<16x256xf32>
    %cst_181 = arith.constant 0.707106769 : f32
    %355 = vector.broadcast %cst_181 : f32 to vector<16x256xf32>
    %356 = arith.mulf %352, %355 : vector<16x256xf32>
    %cst_182 = arith.constant -3.925000e+00 : f32
    %cst_183 = arith.constant 3.925000e+00 : f32
    %357 = vector.broadcast %cst_182 : f32 to vector<16x256xf32>
    %358 = arith.maximumf %357, %356 : vector<16x256xf32>
    %359 = vector.broadcast %cst_183 : f32 to vector<16x256xf32>
    %360 = arith.minimumf %359, %358 : vector<16x256xf32>
    %361 = arith.mulf %360, %360 : vector<16x256xf32>
    %cst_184 = arith.constant -2.72614237E-10 : f32
    %362 = vector.broadcast %cst_184 : f32 to vector<16x256xf32>
    %363 = arith.mulf %362, %361 : vector<16x256xf32>
    %cst_185 = arith.constant 2.77068146E-8 : f32
    %364 = vector.broadcast %cst_185 : f32 to vector<16x256xf32>
    %365 = arith.addf %363, %364 : vector<16x256xf32>
    %366 = arith.mulf %365, %361 : vector<16x256xf32>
    %cst_186 = arith.constant -2.10102394E-6 : f32
    %367 = vector.broadcast %cst_186 : f32 to vector<16x256xf32>
    %368 = arith.addf %366, %367 : vector<16x256xf32>
    %369 = arith.mulf %368, %361 : vector<16x256xf32>
    %cst_187 = arith.constant -5.69250624E-5 : f32
    %370 = vector.broadcast %cst_187 : f32 to vector<16x256xf32>
    %371 = arith.addf %369, %370 : vector<16x256xf32>
    %372 = arith.mulf %371, %361 : vector<16x256xf32>
    %cst_188 = arith.constant -7.34990637E-4 : f32
    %373 = vector.broadcast %cst_188 : f32 to vector<16x256xf32>
    %374 = arith.addf %372, %373 : vector<16x256xf32>
    %375 = arith.mulf %374, %361 : vector<16x256xf32>
    %cst_189 = arith.constant -2.954600e-03 : f32
    %376 = vector.broadcast %cst_189 : f32 to vector<16x256xf32>
    %377 = arith.addf %375, %376 : vector<16x256xf32>
    %378 = arith.mulf %377, %361 : vector<16x256xf32>
    %cst_190 = arith.constant -0.0160960332 : f32
    %379 = vector.broadcast %cst_190 : f32 to vector<16x256xf32>
    %380 = arith.addf %378, %379 : vector<16x256xf32>
    %cst_191 = arith.constant -1.45660715E-5 : f32
    %381 = vector.broadcast %cst_191 : f32 to vector<16x256xf32>
    %382 = arith.mulf %381, %361 : vector<16x256xf32>
    %cst_192 = arith.constant -2.13374049E-4 : f32
    %383 = vector.broadcast %cst_192 : f32 to vector<16x256xf32>
    %384 = arith.addf %382, %383 : vector<16x256xf32>
    %385 = arith.mulf %384, %361 : vector<16x256xf32>
    %cst_193 = arith.constant -0.00168282702 : f32
    %386 = vector.broadcast %cst_193 : f32 to vector<16x256xf32>
    %387 = arith.addf %385, %386 : vector<16x256xf32>
    %388 = arith.mulf %387, %361 : vector<16x256xf32>
    %cst_194 = arith.constant -0.00737332925 : f32
    %389 = vector.broadcast %cst_194 : f32 to vector<16x256xf32>
    %390 = arith.addf %388, %389 : vector<16x256xf32>
    %391 = arith.mulf %390, %361 : vector<16x256xf32>
    %cst_195 = arith.constant -0.0142647391 : f32
    %392 = vector.broadcast %cst_195 : f32 to vector<16x256xf32>
    %393 = arith.addf %391, %392 : vector<16x256xf32>
    %394 = arith.mulf %360, %380 : vector<16x256xf32>
    %395 = arith.divf %394, %393 : vector<16x256xf32>
    %cst_196 = arith.constant 1.000000e+00 : f32
    %396 = vector.broadcast %cst_196 : f32 to vector<16x256xf32>
    %397 = arith.addf %396, %395 : vector<16x256xf32>
    %398 = arith.mulf %354, %397 : vector<16x256xf32>
    %c0_197 = arith.constant 0 : index
    %c0_198 = arith.constant 0 : index
    %c0_199 = arith.constant 0 : index
    %399 = vector.load %arg1[%c0_197, %c0_198, %c0_199] : memref<1x8x1xf32, #tpu.memory_space<vmem>>, vector<1x8x1xf32>
    %400 = vector.shape_cast %399 : vector<1x8x1xf32> to vector<8x1xf32>
    %401 = vector.shape_cast %400 : vector<8x1xf32> to vector<8x1xf32>
    %402 = vector.broadcast %401 : vector<8x1xf32> to vector<8x256xf32>
    %403 = tpu.concatenate %402, %398, %2 in 0 : vector<8x256xf32>, vector<16x256xf32>, vector<3x256xf32> -> vector<27x256xf32>
    %c17_i32_200 = arith.constant 17 : i32
    %404 = tpu.dynamic_rotate %403 by %c17_i32_200 dim 1 : vector<27x256xf32>, i32 -> vector<27x256xf32>
    %405 = vector.extract_strided_slice %0 {offsets = [0, 0], sizes = [1, 256], strides = [1, 1]} : vector<9x256xf32> to vector<1x256xf32>
    %406 = vector.broadcast %405 : vector<1x256xf32> to vector<27x256xf32>
    %407 = arith.mulf %404, %406 : vector<27x256xf32>
    %c0_201 = arith.constant 0 : index
    %c0_202 = arith.constant 0 : index
    %408 = vector.load %arg10[%c0_201, %c0_202] : memref<248x256xf32, #tpu.memory_space<vmem>>, vector<27x256xf32>
    tpu.vector_store %arg10[%c0_201, %c0_202], %407 {strides = array<i32>} : memref<248x256xf32, #tpu.memory_space<vmem>>, vector<27x256xf32>,
    %c16_i32_203 = arith.constant 16 : i32
    %409 = tpu.dynamic_rotate %403 by %c16_i32_203 dim 1 : vector<27x256xf32>, i32 -> vector<27x256xf32>
    %410 = vector.extract_strided_slice %0 {offsets = [1, 0], sizes = [1, 256], strides = [1, 1]} : vector<9x256xf32> to vector<1x256xf32>
    %411 = vector.broadcast %410 : vector<1x256xf32> to vector<27x256xf32>
    %412 = arith.mulf %409, %411 : vector<27x256xf32>
    %c27 = arith.constant 27 : index
    %c0_204 = arith.constant 0 : index
    %413 = vector.load %arg10[%c27, %c0_204] : memref<248x256xf32, #tpu.memory_space<vmem>>, vector<27x256xf32>
    tpu.vector_store %arg10[%c27, %c0_204], %412 {strides = array<i32>} : memref<248x256xf32, #tpu.memory_space<vmem>>, vector<27x256xf32>,
    %c15_i32_205 = arith.constant 15 : i32
    %414 = tpu.dynamic_rotate %403 by %c15_i32_205 dim 1 : vector<27x256xf32>, i32 -> vector<27x256xf32>
    %415 = vector.extract_strided_slice %0 {offsets = [2, 0], sizes = [1, 256], strides = [1, 1]} : vector<9x256xf32> to vector<1x256xf32>
    %416 = vector.broadcast %415 : vector<1x256xf32> to vector<27x256xf32>
    %417 = arith.mulf %414, %416 : vector<27x256xf32>
    %c54 = arith.constant 54 : index
    %c0_206 = arith.constant 0 : index
    %418 = vector.load %arg10[%c54, %c0_206] : memref<248x256xf32, #tpu.memory_space<vmem>>, vector<27x256xf32>
    tpu.vector_store %arg10[%c54, %c0_206], %417 {strides = array<i32>} : memref<248x256xf32, #tpu.memory_space<vmem>>, vector<27x256xf32>,
    %c1_i32_207 = arith.constant 1 : i32
    %419 = tpu.dynamic_rotate %403 by %c1_i32_207 dim 1 : vector<27x256xf32>, i32 -> vector<27x256xf32>
    %420 = vector.extract_strided_slice %0 {offsets = [3, 0], sizes = [1, 256], strides = [1, 1]} : vector<9x256xf32> to vector<1x256xf32>
    %421 = vector.broadcast %420 : vector<1x256xf32> to vector<27x256xf32>
    %422 = arith.mulf %419, %421 : vector<27x256xf32>
    %c81 = arith.constant 81 : index
    %c0_208 = arith.constant 0 : index
    %423 = vector.load %arg10[%c81, %c0_208] : memref<248x256xf32, #tpu.memory_space<vmem>>, vector<27x256xf32>
    tpu.vector_store %arg10[%c81, %c0_208], %422 {strides = array<i32>} : memref<248x256xf32, #tpu.memory_space<vmem>>, vector<27x256xf32>,
    %c108 = arith.constant 108 : index
    %c0_209 = arith.constant 0 : index
    %424 = vector.load %arg10[%c108, %c0_209] : memref<248x256xf32, #tpu.memory_space<vmem>>, vector<27x256xf32>
    tpu.vector_store %arg10[%c108, %c0_209], %403 {strides = array<i32>} : memref<248x256xf32, #tpu.memory_space<vmem>>, vector<27x256xf32>,
    %c255_i32_210 = arith.constant 255 : i32
    %425 = tpu.dynamic_rotate %403 by %c255_i32_210 dim 1 : vector<27x256xf32>, i32 -> vector<27x256xf32>
    %426 = vector.extract_strided_slice %0 {offsets = [5, 0], sizes = [1, 256], strides = [1, 1]} : vector<9x256xf32> to vector<1x256xf32>
    %427 = vector.broadcast %426 : vector<1x256xf32> to vector<27x256xf32>
    %428 = arith.mulf %425, %427 : vector<27x256xf32>
    %c135 = arith.constant 135 : index
    %c0_211 = arith.constant 0 : index
    %429 = vector.load %arg10[%c135, %c0_211] : memref<248x256xf32, #tpu.memory_space<vmem>>, vector<27x256xf32>
    tpu.vector_store %arg10[%c135, %c0_211], %428 {strides = array<i32>} : memref<248x256xf32, #tpu.memory_space<vmem>>, vector<27x256xf32>,
    %c241_i32_212 = arith.constant 241 : i32
    %430 = tpu.dynamic_rotate %403 by %c241_i32_212 dim 1 : vector<27x256xf32>, i32 -> vector<27x256xf32>
    %431 = vector.extract_strided_slice %0 {offsets = [6, 0], sizes = [1, 256], strides = [1, 1]} : vector<9x256xf32> to vector<1x256xf32>
    %432 = vector.broadcast %431 : vector<1x256xf32> to vector<27x256xf32>
    %433 = arith.mulf %430, %432 : vector<27x256xf32>
    %c162 = arith.constant 162 : index
    %c0_213 = arith.constant 0 : index
    %434 = vector.load %arg10[%c162, %c0_213] : memref<248x256xf32, #tpu.memory_space<vmem>>, vector<27x256xf32>
    tpu.vector_store %arg10[%c162, %c0_213], %433 {strides = array<i32>} : memref<248x256xf32, #tpu.memory_space<vmem>>, vector<27x256xf32>,
    %c240_i32_214 = arith.constant 240 : i32
    %435 = tpu.dynamic_rotate %403 by %c240_i32_214 dim 1 : vector<27x256xf32>, i32 -> vector<27x256xf32>
    %436 = vector.extract_strided_slice %0 {offsets = [7, 0], sizes = [1, 256], strides = [1, 1]} : vector<9x256xf32> to vector<1x256xf32>
    %437 = vector.broadcast %436 : vector<1x256xf32> to vector<27x256xf32>
    %438 = arith.mulf %435, %437 : vector<27x256xf32>
    %c189 = arith.constant 189 : index
    %c0_215 = arith.constant 0 : index
    %439 = vector.load %arg10[%c189, %c0_215] : memref<248x256xf32, #tpu.memory_space<vmem>>, vector<27x256xf32>
    tpu.vector_store %arg10[%c189, %c0_215], %438 {strides = array<i32>} : memref<248x256xf32, #tpu.memory_space<vmem>>, vector<27x256xf32>,
    %c239_i32_216 = arith.constant 239 : i32
    %440 = tpu.dynamic_rotate %403 by %c239_i32_216 dim 1 : vector<27x256xf32>, i32 -> vector<27x256xf32>
    %441 = vector.extract_strided_slice %0 {offsets = [8, 0], sizes = [1, 256], strides = [1, 1]} : vector<9x256xf32> to vector<1x256xf32>
    %442 = vector.broadcast %441 : vector<1x256xf32> to vector<27x256xf32>
    %443 = arith.mulf %440, %442 : vector<27x256xf32>
    %c216 = arith.constant 216 : index
    %c0_217 = arith.constant 0 : index
    %444 = vector.load %arg10[%c216, %c0_217] : memref<248x256xf32, #tpu.memory_space<vmem>>, vector<27x256xf32>
    tpu.vector_store %arg10[%c216, %c0_217], %443 {strides = array<i32>} : memref<248x256xf32, #tpu.memory_space<vmem>>, vector<27x256xf32>,
    %c4 = arith.constant 4 : index
    %c0_218 = arith.constant 0 : index
    %c0_219 = arith.constant 0 : index
    %445 = vector.load %arg4[%c4, %c0_218, %c0_219] : memref<5x16x248xf32, #tpu.memory_space<vmem>>, vector<1x16x243xf32>
    %446 = vector.shape_cast %445 : vector<1x16x243xf32> to vector<16x243xf32>
    %c0_220 = arith.constant 0 : index
    %c0_221 = arith.constant 0 : index
    %447 = vector.load %arg10[%c0_220, %c0_221] : memref<248x256xf32, #tpu.memory_space<vmem>>, vector<243x256xf32>
    %cst_222 = arith.constant dense<0.000000e+00> : vector<16x256xf32>
    %448 = tpu.matmul %446, %447, %cst_222 {dimension_numbers = #tpu.dot_dimension_numbers<[1], [0], [0], [1], [0, 0, 1, 1], [], []>} : vector<16x243xf32>, vector<243x256xf32>, vector<16x256xf32> -> vector<16x256xf32>
    %c4_223 = arith.constant 4 : index
    %c0_224 = arith.constant 0 : index
    %c0_225 = arith.constant 0 : index
    %449 = vector.load %arg5[%c4_223, %c0_224, %c0_225] : memref<5x16x1xf32, #tpu.memory_space<vmem>>, vector<1x16x1xf32>
    %450 = vector.shape_cast %449 : vector<1x16x1xf32> to vector<16x1xf32>
    %451 = vector.broadcast %450 : vector<16x1xf32> to vector<16x256xf32>
    %452 = arith.mulf %448, %451 : vector<16x256xf32>
    %c4_226 = arith.constant 4 : index
    %c0_227 = arith.constant 0 : index
    %c0_228 = arith.constant 0 : index
    %453 = vector.load %arg6[%c4_226, %c0_227, %c0_228] : memref<5x16x1xf32, #tpu.memory_space<vmem>>, vector<1x16x1xf32>
    %454 = vector.shape_cast %453 : vector<1x16x1xf32> to vector<16x1xf32>
    %455 = vector.broadcast %454 : vector<16x1xf32> to vector<16x256xf32>
    %456 = arith.addf %452, %455 : vector<16x256xf32>
    %cst_229 = arith.constant 5.000000e-01 : f32
    %457 = vector.broadcast %cst_229 : f32 to vector<16x256xf32>
    %458 = arith.mulf %457, %456 : vector<16x256xf32>
    %cst_230 = arith.constant 0.707106769 : f32
    %459 = vector.broadcast %cst_230 : f32 to vector<16x256xf32>
    %460 = arith.mulf %456, %459 : vector<16x256xf32>
    %cst_231 = arith.constant -3.925000e+00 : f32
    %cst_232 = arith.constant 3.925000e+00 : f32
    %461 = vector.broadcast %cst_231 : f32 to vector<16x256xf32>
    %462 = arith.maximumf %461, %460 : vector<16x256xf32>
    %463 = vector.broadcast %cst_232 : f32 to vector<16x256xf32>
    %464 = arith.minimumf %463, %462 : vector<16x256xf32>
    %465 = arith.mulf %464, %464 : vector<16x256xf32>
    %cst_233 = arith.constant -2.72614237E-10 : f32
    %466 = vector.broadcast %cst_233 : f32 to vector<16x256xf32>
    %467 = arith.mulf %466, %465 : vector<16x256xf32>
    %cst_234 = arith.constant 2.77068146E-8 : f32
    %468 = vector.broadcast %cst_234 : f32 to vector<16x256xf32>
    %469 = arith.addf %467, %468 : vector<16x256xf32>
    %470 = arith.mulf %469, %465 : vector<16x256xf32>
    %cst_235 = arith.constant -2.10102394E-6 : f32
    %471 = vector.broadcast %cst_235 : f32 to vector<16x256xf32>
    %472 = arith.addf %470, %471 : vector<16x256xf32>
    %473 = arith.mulf %472, %465 : vector<16x256xf32>
    %cst_236 = arith.constant -5.69250624E-5 : f32
    %474 = vector.broadcast %cst_236 : f32 to vector<16x256xf32>
    %475 = arith.addf %473, %474 : vector<16x256xf32>
    %476 = arith.mulf %475, %465 : vector<16x256xf32>
    %cst_237 = arith.constant -7.34990637E-4 : f32
    %477 = vector.broadcast %cst_237 : f32 to vector<16x256xf32>
    %478 = arith.addf %476, %477 : vector<16x256xf32>
    %479 = arith.mulf %478, %465 : vector<16x256xf32>
    %cst_238 = arith.constant -2.954600e-03 : f32
    %480 = vector.broadcast %cst_238 : f32 to vector<16x256xf32>
    %481 = arith.addf %479, %480 : vector<16x256xf32>
    %482 = arith.mulf %481, %465 : vector<16x256xf32>
    %cst_239 = arith.constant -0.0160960332 : f32
    %483 = vector.broadcast %cst_239 : f32 to vector<16x256xf32>
    %484 = arith.addf %482, %483 : vector<16x256xf32>
    %cst_240 = arith.constant -1.45660715E-5 : f32
    %485 = vector.broadcast %cst_240 : f32 to vector<16x256xf32>
    %486 = arith.mulf %485, %465 : vector<16x256xf32>
    %cst_241 = arith.constant -2.13374049E-4 : f32
    %487 = vector.broadcast %cst_241 : f32 to vector<16x256xf32>
    %488 = arith.addf %486, %487 : vector<16x256xf32>
    %489 = arith.mulf %488, %465 : vector<16x256xf32>
    %cst_242 = arith.constant -0.00168282702 : f32
    %490 = vector.broadcast %cst_242 : f32 to vector<16x256xf32>
    %491 = arith.addf %489, %490 : vector<16x256xf32>
    %492 = arith.mulf %491, %465 : vector<16x256xf32>
    %cst_243 = arith.constant -0.00737332925 : f32
    %493 = vector.broadcast %cst_243 : f32 to vector<16x256xf32>
    %494 = arith.addf %492, %493 : vector<16x256xf32>
    %495 = arith.mulf %494, %465 : vector<16x256xf32>
    %cst_244 = arith.constant -0.0142647391 : f32
    %496 = vector.broadcast %cst_244 : f32 to vector<16x256xf32>
    %497 = arith.addf %495, %496 : vector<16x256xf32>
    %498 = arith.mulf %464, %484 : vector<16x256xf32>
    %499 = arith.divf %498, %497 : vector<16x256xf32>
    %cst_245 = arith.constant 1.000000e+00 : f32
    %500 = vector.broadcast %cst_245 : f32 to vector<16x256xf32>
    %501 = arith.addf %500, %499 : vector<16x256xf32>
    %502 = arith.mulf %458, %501 : vector<16x256xf32>
    %c0_246 = arith.constant 0 : index
    %c0_247 = arith.constant 0 : index
    %503 = vector.load %arg7[%c0_246, %c0_247] : memref<8x16xf32, #tpu.memory_space<vmem>>, vector<8x16xf32>
    %cst_248 = arith.constant dense<0.000000e+00> : vector<8x256xf32>
    %504 = tpu.matmul %503, %502, %cst_248 {dimension_numbers = #tpu.dot_dimension_numbers<[1], [0], [0], [1], [0, 0, 1, 1], [], []>} : vector<8x16xf32>, vector<16x256xf32>, vector<8x256xf32> -> vector<8x256xf32>
    %c0_249 = arith.constant 0 : index
    %c0_250 = arith.constant 0 : index
    %505 = vector.load %arg8[%c0_249, %c0_250] : memref<8x1xf32, #tpu.memory_space<vmem>>, vector<8x1xf32>
    %506 = vector.broadcast %505 : vector<8x1xf32> to vector<8x256xf32>
    %507 = arith.addf %504, %506 : vector<8x256xf32>
    %508 = math.tanh %507 : vector<8x256xf32>
    %509 = vector.extract_strided_slice %508 {offsets = [0, 0], sizes = [3, 256], strides = [1, 1]} : vector<8x256xf32> to vector<3x256xf32>
    %c0_251 = arith.constant 0 : index
    %c0_252 = arith.constant 0 : index
    %c0_253 = arith.constant 0 : index
    %510 = vector.load %arg9[%c0_251, %c0_252, %c0_253] : memref<1x3x256xf32, #tpu.memory_space<vmem>>, vector<1x3x256xf32>
    %511 = vector.shape_cast %510 : vector<1x3x256xf32> to vector<3x256xf32>
    %512 = vector.shape_cast %509 : vector<3x256xf32> to vector<1x3x256xf32>
    tpu.vector_store %arg9[%c0_251, %c0_252, %c0_253], %512 {strides = array<i32>} : memref<1x3x256xf32, #tpu.memory_space<vmem>>, vector<1x3x256xf32>,
    return
  }
  func.func @transform_0(%arg0: i32) -> (i32, i32, i32) {
    %c0_i32 = arith.constant 0 : i32
    %c0_i32_0 = arith.constant 0 : i32
    %c0_i32_1 = arith.constant 0 : i32
    return %arg0, %c0_i32, %c0_i32_0 : i32, i32, i32
  }
  func.func @transform_1(%arg0: i32) -> (i32, i32, i32) {
    %c0_i32 = arith.constant 0 : i32
    %c0_i32_0 = arith.constant 0 : i32
    %c0_i32_1 = arith.constant 0 : i32
    return %arg0, %c0_i32, %c0_i32_0 : i32, i32, i32
  }
  func.func @transform_2(%arg0: i32) -> (i32, i32) {
    %c0_i32 = arith.constant 0 : i32
    %c0_i32_0 = arith.constant 0 : i32
    %c0_i32_1 = arith.constant 0 : i32
    return %c0_i32, %c0_i32_0 : i32, i32
  }
  func.func @transform_3(%arg0: i32) -> (i32, i32, i32) {
    %c0_i32 = arith.constant 0 : i32
    %c0_i32_0 = arith.constant 0 : i32
    %c0_i32_1 = arith.constant 0 : i32
    %c0_i32_2 = arith.constant 0 : i32
    return %c0_i32, %c0_i32_0, %c0_i32_1 : i32, i32, i32
  }
  func.func @transform_4(%arg0: i32) -> (i32, i32, i32) {
    %c0_i32 = arith.constant 0 : i32
    %c0_i32_0 = arith.constant 0 : i32
    %c0_i32_1 = arith.constant 0 : i32
    %c0_i32_2 = arith.constant 0 : i32
    return %c0_i32, %c0_i32_0, %c0_i32_1 : i32, i32, i32
  }
  func.func @transform_5(%arg0: i32) -> (i32, i32, i32) {
    %c0_i32 = arith.constant 0 : i32
    %c0_i32_0 = arith.constant 0 : i32
    %c0_i32_1 = arith.constant 0 : i32
    %c0_i32_2 = arith.constant 0 : i32
    return %c0_i32, %c0_i32_0, %c0_i32_1 : i32, i32, i32
  }
  func.func @transform_6(%arg0: i32) -> (i32, i32) {
    %c0_i32 = arith.constant 0 : i32
    %c0_i32_0 = arith.constant 0 : i32
    %c0_i32_1 = arith.constant 0 : i32
    return %c0_i32, %c0_i32_0 : i32, i32
  }
  func.func @transform_7(%arg0: i32) -> (i32, i32) {
    %c0_i32 = arith.constant 0 : i32
    %c0_i32_0 = arith.constant 0 : i32
    %c0_i32_1 = arith.constant 0 : i32
    return %c0_i32, %c0_i32_0 : i32, i32
  }
  func.func @transform_8(%arg0: i32) -> (i32, i32, i32) {
    %c0_i32 = arith.constant 0 : i32
    %c0_i32_0 = arith.constant 0 : i32
    %c0_i32_1 = arith.constant 0 : i32
    return %arg0, %c0_i32, %c0_i32_0 : i32, i32, i32
  }
}

</mosaic_0001>

<llo_original>
// kernel: hidden_encoder_forward.1
$region0: #{hidden_encoder_forward.1}
  #allocation0 [shape = 'u32[]', space=smem, size = 0x4, offset = 0x4, fixed_abs, tag = 'smem constant byte address 0x4 - core index']
  #allocation1 [shape = 'u32[144,128]{1,0:T(1,128)}', space=vmem, size = 0x12000, scoped, tag = 'internal scratch']
  #allocation2 [shape = 'f32[248,256]{1,0:T(8,128)}', space=vmem, size = 0x3e000, scoped, tag = 'scratch operand']
  %s0 = inlined_call_operand.vmem [shape: f32[2,8,1], index: 0, kind: input, shape index: {}]
  %s1 = inlined_call_operand.vmem [shape: f32[2,3,256], index: 1, kind: input, shape index: {}]
  %s2 = inlined_call_operand.vmem [shape: f32[9,256], index: 2, kind: input, shape index: {}]
  %s3 = inlined_call_operand.vmem [shape: f32[5,16,248], index: 3, kind: input, shape index: {}]
  %s4 = inlined_call_operand.vmem [shape: f32[5,16,1], index: 4, kind: input, shape index: {}]
  %s5 = inlined_call_operand.vmem [shape: f32[5,16,1], index: 5, kind: input, shape index: {}]
  %s6 = inlined_call_operand.vmem [shape: f32[8,16], index: 6, kind: input, shape index: {}]
  %s7 = inlined_call_operand.vmem [shape: f32[8,1], index: 7, kind: input, shape index: {}]
  %s8 = inlined_call_operand.vmem [shape: f32[2,3,256], index: 8, kind: output, shape index: {}]
  %s9 = sld [smem:[#allocation0]]
  $region65: #{hidden_encoder_forward.1} parent=0
    _
  %s11 = ssub.s32 1, %s9
  %s12 = scalar_select 0, %s11, %s9
  loop: start=0, step=1, limit=4
  $region2: #{hidden_encoder_forward.1} parent=0 // loop_pre_header
    _
  $region3: #{hidden_encoder_forward.1} parent=0 // loop_header
    %s14 = sphi 0, %s18
    %p15 = scmp.ge.s32.totalorder %s14, 4
    %s24 = sphi 0, %s26
    %s27 = sphi 0, %s24
    %s28 = sphi 0, %s27
    %s44 = sphi 0, %s28
    %s50 = sphi 0, %s52
    %s53 = sphi 0, %s50
    %s54 = sphi 0, %s53
    %s70 = sphi 0, %s54
    %s74 = sphi 0, %s74
    %s76 = sphi 0, %s74
    %s77 = sphi 0, %s76
    %s91 = sphi 0, %s77
    %s95 = sphi 0, %s95
    %s97 = sphi 0, %s95
    %s98 = sphi 0, %s97
    %s112 = sphi 0, %s98
    %s116 = sphi 0, %s116
    %s118 = sphi 0, %s116
    %s119 = sphi 0, %s118
    %s133 = sphi 0, %s119
    %s137 = sphi 0, %s137
    %s139 = sphi 0, %s137
    %s140 = sphi 0, %s139
    %s154 = sphi 0, %s140
    %s158 = sphi 0, %s158
    %s160 = sphi 0, %s158
    %s161 = sphi 0, %s160
    %s175 = sphi 0, %s161
    %s179 = sphi 0, %s179
    %s181 = sphi 0, %s179
    %s182 = sphi 0, %s181
    %s196 = sphi 0, %s182
    %s202 = sphi 0, %s204
    %s205 = sphi 0, %s202
    %s206 = sphi 0, %s205
    %s222 = sphi 0, %s206
  $region4: #{hidden_encoder_forward.1} parent=0 // loop_header_branch
    %17 = sbr.rel (%p15) target = $region8
  $region5: #{hidden_encoder_forward.1} parent=0 // loop_body
    %s19 = ssub.s32 %s14, 1
    %s20 = ssub.s32 %s14, 2
    %s21 = sadd.s32 %s14, 1
    %s22 = ssub.s32 %s14, %s21
    %p23 = scmp.eq.s32.totalorder %s22, 0
    %s25 = sadd.s32 %s24, 1
    %s26 = scalar_select %p23, %s24, %s25
    %p29 = pneg %p23
    %p30 = scmp.eq.s32.totalorder %s14, 1
    %p31 = por %p29, %p30
    %p32 = scmp.ne.s32.totalorder %s24, %s27
    %p33 = scmp.eq.s32.totalorder %s14, 0
    %p34 = por %p32, %p33
    %p35 = scmp.ne.s32.totalorder %s24, %s27
    %p36 = scmp.eq.s32.totalorder %s19, 1
    %p37 = por %p35, %p36
    %p38 = scmp.ne.s32.totalorder %s27, %s28
    %p39 = scmp.eq.s32.totalorder %s19, 0
    %p40 = por %p38, %p39
    %p41 = scmp.ne.s32.totalorder %s27, %s28
    %p42 = scmp.eq.s32.totalorder %s20, 1
    %p43 = por %p41, %p42
    %p45 = scmp.ne.s32.totalorder %s28, %s44
    %p46 = scmp.eq.s32.totalorder %s20, 0
    %p47 = por %p45, %p46
    %s48 = ssub.s32 %s14, %s21
    %p49 = scmp.eq.s32.totalorder %s48, 0
    %s51 = sadd.s32 %s50, 1
    %s52 = scalar_select %p49, %s50, %s51
    %p55 = pneg %p49
    %p56 = scmp.eq.s32.totalorder %s14, 1
    %p57 = por %p55, %p56
    %p58 = scmp.ne.s32.totalorder %s50, %s53
    %p59 = scmp.eq.s32.totalorder %s14, 0
    %p60 = por %p58, %p59
    %p61 = scmp.ne.s32.totalorder %s50, %s53
    %p62 = scmp.eq.s32.totalorder %s19, 1
    %p63 = por %p61, %p62
    %p64 = scmp.ne.s32.totalorder %s53, %s54
    %p65 = scmp.eq.s32.totalorder %s19, 0
    %p66 = por %p64, %p65
    %p67 = scmp.ne.s32.totalorder %s53, %s54
    %p68 = scmp.eq.s32.totalorder %s20, 1
    %p69 = por %p67, %p68
    %p71 = scmp.ne.s32.totalorder %s54, %s70
    %p72 = scmp.eq.s32.totalorder %s20, 0
    %p73 = por %p71, %p72
    %s75 = sadd.s32 %s74, 1
    %p78 = scmp.eq.s32.totalorder %s14, 1
    %p79 = scmp.ne.s32.totalorder %s74, %s76
    %p80 = scmp.eq.s32.totalorder %s14, 0
    %p81 = por %p79, %p80
    %p82 = scmp.ne.s32.totalorder %s74, %s76
    %p83 = scmp.eq.s32.totalorder %s19, 1
    %p84 = por %p82, %p83
    %p85 = scmp.ne.s32.totalorder %s76, %s77
    %p86 = scmp.eq.s32.totalorder %s19, 0
    %p87 = por %p85, %p86
    %p88 = scmp.ne.s32.totalorder %s76, %s77
    %p89 = scmp.eq.s32.totalorder %s20, 1
    %p90 = por %p88, %p89
    %p92 = scmp.ne.s32.totalorder %s77, %s91
    %p93 = scmp.eq.s32.totalorder %s20, 0
    %p94 = por %p92, %p93
    %s96 = sadd.s32 %s95, 1
    %p99 = scmp.eq.s32.totalorder %s14, 1
    %p100 = scmp.ne.s32.totalorder %s95, %s97
    %p101 = scmp.eq.s32.totalorder %s14, 0
    %p102 = por %p100, %p101
    %p103 = scmp.ne.s32.totalorder %s95, %s97
    %p104 = scmp.eq.s32.totalorder %s19, 1
    %p105 = por %p103, %p104
    %p106 = scmp.ne.s32.totalorder %s97, %s98
    %p107 = scmp.eq.s32.totalorder %s19, 0
    %p108 = por %p106, %p107
    %p109 = scmp.ne.s32.totalorder %s97, %s98
    %p110 = scmp.eq.s32.totalorder %s20, 1
    %p111 = por %p109, %p110
    %p113 = scmp.ne.s32.totalorder %s98, %s112
    %p114 = scmp.eq.s32.totalorder %s20, 0
    %p115 = por %p113, %p114
    %s117 = sadd.s32 %s116, 1
    %p120 = scmp.eq.s32.totalorder %s14, 1
    %p121 = scmp.ne.s32.totalorder %s116, %s118
    %p122 = scmp.eq.s32.totalorder %s14, 0
    %p123 = por %p121, %p122
    %p124 = scmp.ne.s32.totalorder %s116, %s118
    %p125 = scmp.eq.s32.totalorder %s19, 1
    %p126 = por %p124, %p125
    %p127 = scmp.ne.s32.totalorder %s118, %s119
    %p128 = scmp.eq.s32.totalorder %s19, 0
    %p129 = por %p127, %p128
    %p130 = scmp.ne.s32.totalorder %s118, %s119
    %p131 = scmp.eq.s32.totalorder %s20, 1
    %p132 = por %p130, %p131
    %p134 = scmp.ne.s32.totalorder %s119, %s133
    %p135 = scmp.eq.s32.totalorder %s20, 0
    %p136 = por %p134, %p135
    %s138 = sadd.s32 %s137, 1
    %p141 = scmp.eq.s32.totalorder %s14, 1
    %p142 = scmp.ne.s32.totalorder %s137, %s139
    %p143 = scmp.eq.s32.totalorder %s14, 0
    %p144 = por %p142, %p143
    %p145 = scmp.ne.s32.totalorder %s137, %s139
    %p146 = scmp.eq.s32.totalorder %s19, 1
    %p147 = por %p145, %p146
    %p148 = scmp.ne.s32.totalorder %s139, %s140
    %p149 = scmp.eq.s32.totalorder %s19, 0
    %p150 = por %p148, %p149
    %p151 = scmp.ne.s32.totalorder %s139, %s140
    %p152 = scmp.eq.s32.totalorder %s20, 1
    %p153 = por %p151, %p152
    %p155 = scmp.ne.s32.totalorder %s140, %s154
    %p156 = scmp.eq.s32.totalorder %s20, 0
    %p157 = por %p155, %p156
    %s159 = sadd.s32 %s158, 1
    %p162 = scmp.eq.s32.totalorder %s14, 1
    %p163 = scmp.ne.s32.totalorder %s158, %s160
    %p164 = scmp.eq.s32.totalorder %s14, 0
    %p165 = por %p163, %p164
    %p166 = scmp.ne.s32.totalorder %s158, %s160
    %p167 = scmp.eq.s32.totalorder %s19, 1
    %p168 = por %p166, %p167
    %p169 = scmp.ne.s32.totalorder %s160, %s161
    %p170 = scmp.eq.s32.totalorder %s19, 0
    %p171 = por %p169, %p170
    %p172 = scmp.ne.s32.totalorder %s160, %s161
    %p173 = scmp.eq.s32.totalorder %s20, 1
    %p174 = por %p172, %p173
    %p176 = scmp.ne.s32.totalorder %s161, %s175
    %p177 = scmp.eq.s32.totalorder %s20, 0
    %p178 = por %p176, %p177
    %s180 = sadd.s32 %s179, 1
    %p183 = scmp.eq.s32.totalorder %s14, 1
    %p184 = scmp.ne.s32.totalorder %s179, %s181
    %p185 = scmp.eq.s32.totalorder %s14, 0
    %p186 = por %p184, %p185
    %p187 = scmp.ne.s32.totalorder %s179, %s181
    %p188 = scmp.eq.s32.totalorder %s19, 1
    %p189 = por %p187, %p188
    %p190 = scmp.ne.s32.totalorder %s181, %s182
    %p191 = scmp.eq.s32.totalorder %s19, 0
    %p192 = por %p190, %p191
    %p193 = scmp.ne.s32.totalorder %s181, %s182
    %p194 = scmp.eq.s32.totalorder %s20, 1
    %p195 = por %p193, %p194
    %p197 = scmp.ne.s32.totalorder %s182, %s196
    %p198 = scmp.eq.s32.totalorder %s20, 0
    %p199 = por %p197, %p198
    %s200 = ssub.s32 %s14, %s21
    %p201 = scmp.eq.s32.totalorder %s200, 0
    %s203 = sadd.s32 %s202, 1
    %s204 = scalar_select %p201, %s202, %s203
    %p207 = pneg %p201
    %p208 = scmp.eq.s32.totalorder %s14, 1
    %p209 = por %p207, %p208
    %p210 = scmp.ne.s32.totalorder %s202, %s205
    %p211 = scmp.eq.s32.totalorder %s14, 0
    %p212 = por %p210, %p211
    %p213 = scmp.ne.s32.totalorder %s202, %s205
    %p214 = scmp.eq.s32.totalorder %s19, 1
    %p215 = por %p213, %p214
    %p216 = scmp.ne.s32.totalorder %s205, %s206
    %p217 = scmp.eq.s32.totalorder %s19, 0
    %p218 = por %p216, %p217
    %p219 = scmp.ne.s32.totalorder %s205, %s206
    %p220 = scmp.eq.s32.totalorder %s20, 1
    %p221 = por %p219, %p220
    %p223 = scmp.ne.s32.totalorder %s206, %s222
    %p224 = scmp.eq.s32.totalorder %s20, 0
    %p225 = por %p223, %p224
    %p226 = scmp.le.s32.totalorder 1, %s14
    %p227 = scmp.lt.s32.totalorder %s14, 3
    %p228 = pnand %p226, %p227
    %p229 = pneg %p228
    // Predicated region
    $region9: #{hidden_encoder_forward.1} parent=5 // pred_check
      _
    $region10: #{hidden_encoder_forward.1} parent=5 // pred_check_branch
      %231 = sbr.rel (%p228) target = $region12
    $region11: #{hidden_encoder_forward.1} parent=5 // pred_region
      %s232 = ssub.s32 %s14, 1
      // Predicated region
      $region13: #{hidden_encoder_forward.1} parent=11 // pred_check
        %p233 = pneg %p87
      $region14: #{hidden_encoder_forward.1} parent=11 // pred_check_branch
        %235 = sbr.rel (%p233) target = $region16
      $region15: #{hidden_encoder_forward.1} parent=11 // pred_region
        _
      $region16: #{hidden_encoder_forward.1} parent=11 // pred_fallthru
        _
      // Predicated region
      $region17: #{hidden_encoder_forward.1} parent=11 // pred_check
        %p236 = pneg %p108
      $region18: #{hidden_encoder_forward.1} parent=11 // pred_check_branch
        %238 = sbr.rel (%p236) target = $region20
      $region19: #{hidden_encoder_forward.1} parent=11 // pred_region
        _
      $region20: #{hidden_encoder_forward.1} parent=11 // pred_fallthru
        _
      // Predicated region
      $region21: #{hidden_encoder_forward.1} parent=11 // pred_check
        %p239 = pneg %p129
      $region22: #{hidden_encoder_forward.1} parent=11 // pred_check_branch
        %241 = sbr.rel (%p239) target = $region24
      $region23: #{hidden_encoder_forward.1} parent=11 // pred_region
        _
      $region24: #{hidden_encoder_forward.1} parent=11 // pred_fallthru
        _
      // Predicated region
      $region25: #{hidden_encoder_forward.1} parent=11 // pred_check
        %p242 = pneg %p150
      $region26: #{hidden_encoder_forward.1} parent=11 // pred_check_branch
        %244 = sbr.rel (%p242) target = $region28
      $region27: #{hidden_encoder_forward.1} parent=11 // pred_region
        _
      $region28: #{hidden_encoder_forward.1} parent=11 // pred_fallthru
        _
      // Predicated region
      $region29: #{hidden_encoder_forward.1} parent=11 // pred_check
        %p245 = pneg %p171
      $region30: #{hidden_encoder_forward.1} parent=11 // pred_check_branch
        %247 = sbr.rel (%p245) target = $region32
      $region31: #{hidden_encoder_forward.1} parent=11 // pred_region
        _
      $region32: #{hidden_encoder_forward.1} parent=11 // pred_fallthru
        _
      // Predicated region
      $region33: #{hidden_encoder_forward.1} parent=11 // pred_check
        %p248 = pneg %p192
      $region34: #{hidden_encoder_forward.1} parent=11 // pred_check_branch
        %250 = sbr.rel (%p248) target = $region36
      $region35: #{hidden_encoder_forward.1} parent=11 // pred_region
        _
      $region36: #{hidden_encoder_forward.1} parent=11 // pred_fallthru
        _
    $region12: #{hidden_encoder_forward.1} parent=5 // pred_fallthru
      _
    %p251 = scmp.lt.s32.totalorder %s14, 2
    // Predicated region
    $region37: #{hidden_encoder_forward.1} parent=5 // pred_check
      %p252 = pneg %p251
    $region38: #{hidden_encoder_forward.1} parent=5 // pred_check_branch
      %254 = sbr.rel (%p252) target = $region40
    $region39: #{hidden_encoder_forward.1} parent=5 // pred_region
      // Predicated region
      $region41: #{hidden_encoder_forward.1} parent=39 // pred_check
        %p255 = pneg %p34
      $region42: #{hidden_encoder_forward.1} parent=39 // pred_check_branch
        %257 = sbr.rel (%p255) target = $region44
      $region43: #{hidden_encoder_forward.1} parent=39 // pred_region
        %p258 = scmp.lt.s32.totalorder %s14, 1
        %s259 = scalar_select %p258, %s14, 1
        %s260 = smul.addr %s259, 8
        %s261 = scalar_lea.vmem %s0, %s260
      $region44: #{hidden_encoder_forward.1} parent=39 // pred_fallthru
        _
      // Predicated region
      $region45: #{hidden_encoder_forward.1} parent=39 // pred_check
        %p262 = pneg %p60
      $region46: #{hidden_encoder_forward.1} parent=39 // pred_check_branch
        %264 = sbr.rel (%p262) target = $region48
      $region47: #{hidden_encoder_forward.1} parent=39 // pred_region
        %p265 = scmp.lt.s32.totalorder %s14, 1
        %s266 = scalar_select %p265, %s14, 1
        %s267 = smul.addr %s266, 2
        %s268 = smul.addr %s267, 4
        %s269 = scalar_lea.vmem %s1, %s268
      $region48: #{hidden_encoder_forward.1} parent=39 // pred_fallthru
        _
    $region40: #{hidden_encoder_forward.1} parent=5 // pred_fallthru
      _
    %p270 = scmp.le.s32.totalorder 1, %s14
    %p271 = scmp.lt.s32.totalorder %s14, 3
    %p272 = pnand %p270, %p271
    %p273 = pneg %p272
    // Predicated region
    $region49: #{hidden_encoder_forward.1} parent=5 // pred_check
      _
    $region50: #{hidden_encoder_forward.1} parent=5 // pred_check_branch
      %275 = sbr.rel (%p272) target = $region52
    $region51: #{hidden_encoder_forward.1} parent=5 // pred_region
      %s276 = ssub.s32 %s14, 1
      %p277 = scmp.lt.s32.totalorder %s19, 1
      %s278 = scalar_select %p277, %s19, 1
      %s279 = smul.addr %s278, 8
      %s280 = scalar_lea.vmem %s0, %s279
      %p281 = pneg %p40
      %p282 = pneg %p37
      %p283 = scmp.lt.s32.totalorder %s19, 1
      %s284 = scalar_select %p283, %s19, 1
      %s285 = smul.addr %s284, 2
      %s286 = smul.addr %s285, 4
      %s287 = scalar_lea.vmem %s1, %s286
      %p288 = pneg %p66
      %p289 = pneg %p63
      %p290 = pneg %p87
      %p291 = pneg %p84
      %p292 = pneg %p108
      %p293 = pneg %p105
      %p294 = pneg %p129
      %p295 = pneg %p126
      %p296 = pneg %p150
      %p297 = pneg %p147
      %p298 = pneg %p171
      %p299 = pneg %p168
      %p300 = pneg %p192
      %p301 = pneg %p189
      %p302 = pneg %p218
      %p303 = pneg %p215
      %p304 = scmp.lt.s32.totalorder %s19, 1
      %s305 = scalar_select %p304, %s19, 1
      %s306 = smul.addr %s305, 2
      %s307 = smul.addr %s306, 4
      %s308 = scalar_lea.vmem %s8, %s307
      %p309 = scmp.lt.s32.totalorder %s19, 1
      %s310 = scalar_select %p309, %s19, 1
      %s311 = smul.addr %s310, 8
      %s312 = scalar_lea.vmem %s0, %s311
      %p313 = scmp.lt.s32.totalorder %s19, 1
      %s314 = scalar_select %p313, %s19, 1
      %s315 = smul.addr %s314, 2
      %s316 = smul.addr %s315, 4
      %s317 = scalar_lea.vmem %s1, %s316
      %p318 = scmp.lt.s32.totalorder %s19, 1
      %s319 = scalar_select %p318, %s19, 1
      %s320 = smul.addr %s319, 2
      %s321 = smul.addr %s320, 4
      %s322 = scalar_lea.vmem %s8, %s321
      %v323 = vld [vmem:[%s2] sm:$0xff]
      %v324 = vld [vmem:[%s2 + $0x8] sm:$0xff]
      %v325 = vld [vmem:[%s2 + $0x10] sm:$0x1]
      %v326 = vld [vmem:[%s2 + $0x18] sm:$0x1]
      %v327 = vld [vmem:[%s317] sm:$0x77]
      %v329 = vcombine.high %v327, %v327
      %331 = vrot.lane.b32.xlu0 %v327, 17
      %v332 = vpop.permute.xlu0 %331
      %333 = vrot.lane.b32.xlu0 %v329, 17
      %v334 = vpop.permute.xlu0 %333
      %v335 = vlaneseq
      %v336 = vand.u32 %v335, 127
      %vm337 = vcmp.lt.s32.totalorder %v336, 17
      %v338 = vsel %vm337, %v332, %v334
      %v339 = vsel %vm337, %v334, %v332
      %v340 = vlaneseq
      %v341 = vshrl.u32 %v340, 7
      %v342 = vsub.s32 0, %v341
      %v343 = vrot.slane %v323, %v342
      %v344 = vlaneseq
      %v345 = vshrl.u32 %v344, 7
      %v346 = vsub.s32 0, %v345
      %v347 = vrot.slane %v324, %v346
      %v348 = vmul.f32 %v339, %v343
      %v349 = vmul.f32 %v338, %v347
      %350 = vst [vmem:[#allocation2] sm:$0x7] %v348
      %351 = vst [vmem:[#allocation2 + $0x8] sm:$0x7] %v349
      %352 = vrot.lane.b32.xlu0 %v327, 16
      %v353 = vpop.permute.xlu0 %352
      %354 = vrot.lane.b32.xlu0 %v329, 16
      %v355 = vpop.permute.xlu0 %354
      %vm356 = vcmp.lt.s32.totalorder %v336, 16
      %v357 = vsel %vm356, %v353, %v355
      %v358 = vsel %vm356, %v355, %v353
      %v359 = vlaneseq
      %v360 = vshrl.u32 %v359, 7
      %v361 = vsub.s32 1, %v360
      %v362 = vrot.slane %v323, %v361
      %v363 = vlaneseq
      %v364 = vshrl.u32 %v363, 7
      %v365 = vsub.s32 1, %v364
      %v366 = vrot.slane %v324, %v365
      %v367 = vmul.f32 %v358, %v362
      %v368 = vmul.f32 %v357, %v366
      %v371 = vrot.slane %v367, 5
      %v372 = vrot.slane %v368, 5
      %375 = vst [vmem:[#allocation2] sm:$0x38] %v371
      %376 = vst [vmem:[#allocation2 + $0x8] sm:$0x38] %v372
      %377 = vrot.lane.b32.xlu0 %v327, 15
      %v378 = vpop.permute.xlu0 %377
      %379 = vrot.lane.b32.xlu0 %v329, 15
      %v380 = vpop.permute.xlu0 %379
      %vm381 = vcmp.lt.s32.totalorder %v336, 15
      %v382 = vsel %vm381, %v378, %v380
      %v383 = vsel %vm381, %v380, %v378
      %v384 = vlaneseq
      %v385 = vshrl.u32 %v384, 7
      %v386 = vsub.s32 2, %v385
      %v387 = vrot.slane %v323, %v386
      %v388 = vlaneseq
      %v389 = vshrl.u32 %v388, 7
      %v390 = vsub.s32 2, %v389
      %v391 = vrot.slane %v324, %v390
      %v392 = vmul.f32 %v383, %v387
      %v393 = vmul.f32 %v382, %v391
      %v396 = vrot.slane %v392, 2
      %v397 = vrot.slane %v393, 2
      %400 = vst [vmem:[#allocation2] sm:$0xc0] %v396
      %401 = vst [vmem:[#allocation2 + $0x8] sm:$0xc0] %v397
      %402 = vst [vmem:[#allocation2 + $0x10] sm:$0x1] %v396
      %403 = vst [vmem:[#allocation2 + $0x18] sm:$0x1] %v397
      %404 = vrot.lane.b32.xlu0 %v327, 1
      %v405 = vpop.permute.xlu0 %404
      %406 = vrot.lane.b32.xlu0 %v329, 1
      %v407 = vpop.permute.xlu0 %406
      %vm408 = vcmp.lt.s32.totalorder %v336, 1
      %v409 = vsel %vm408, %v405, %v407
      %v410 = vsel %vm408, %v407, %v405
      %v411 = vlaneseq
      %v412 = vshrl.u32 %v411, 7
      %v413 = vsub.s32 3, %v412
      %v414 = vrot.slane %v323, %v413
      %v415 = vlaneseq
      %v416 = vshrl.u32 %v415, 7
      %v417 = vsub.s32 3, %v416
      %v418 = vrot.slane %v324, %v417
      %v419 = vmul.f32 %v410, %v414
      %v420 = vmul.f32 %v409, %v418
      %v423 = vrot.slane %v419, 7
      %v424 = vrot.slane %v420, 7
      %427 = vst [vmem:[#allocation2 + $0x10] sm:$0xe] %v423
      %428 = vst [vmem:[#allocation2 + $0x18] sm:$0xe] %v424
      %v429 = vcombine.low %v327, %v327
      %431 = vst [vmem:[#allocation2 + $0x10] sm:$0x70] %v429
      %432 = vst [vmem:[#allocation2 + $0x18] sm:$0x70] %v327
      %433 = vrot.lane.b32.xlu0 %v327, 127
      %v434 = vpop.permute.xlu0 %433
      %435 = vrot.lane.b32.xlu0 %v329, 127
      %v436 = vpop.permute.xlu0 %435
      %vm437 = vcmp.lt.s32.totalorder %v336, 127
      %v438 = vsel %vm437, %v434, %v436
      %v439 = vsel %vm437, %v436, %v434
      %v440 = vlaneseq
      %v441 = vshrl.u32 %v440, 7
      %v442 = vsub.s32 5, %v441
      %v443 = vrot.slane %v323, %v442
      %v444 = vlaneseq
      %v445 = vshrl.u32 %v444, 7
      %v446 = vsub.s32 5, %v445
      %v447 = vrot.slane %v324, %v446
      %v448 = vmul.f32 %v438, %v443
      %v449 = vmul.f32 %v439, %v447
      %v452 = vrot.slane %v448, 1
      %v453 = vrot.slane %v449, 1
      %456 = vst [vmem:[#allocation2 + $0x10] sm:$0x80] %v452
      %457 = vst [vmem:[#allocation2 + $0x18] sm:$0x80] %v453
      %458 = vst [vmem:[#allocation2 + $0x20] sm:$0x3] %v452
      %459 = vst [vmem:[#allocation2 + $0x28] sm:$0x3] %v453
      %460 = vrot.lane.b32.xlu0 %v327, 113
      %v461 = vpop.permute.xlu0 %460
      %462 = vrot.lane.b32.xlu0 %v329, 113
      %v463 = vpop.permute.xlu0 %462
      %vm464 = vcmp.lt.s32.totalorder %v336, 113
      %v465 = vsel %vm464, %v461, %v463
      %v466 = vsel %vm464, %v463, %v461
      %v467 = vlaneseq
      %v468 = vshrl.u32 %v467, 7
      %v469 = vsub.s32 6, %v468
      %v470 = vrot.slane %v323, %v469
      %v471 = vlaneseq
      %v472 = vshrl.u32 %v471, 7
      %v473 = vsub.s32 6, %v472
      %v474 = vrot.slane %v324, %v473
      %v475 = vmul.f32 %v465, %v470
      %v476 = vmul.f32 %v466, %v474
      %v479 = vrot.slane %v475, 6
      %v480 = vrot.slane %v476, 6
      %483 = vst [vmem:[#allocation2 + $0x20] sm:$0x1c] %v479
      %484 = vst [vmem:[#allocation2 + $0x28] sm:$0x1c] %v480
      %485 = vrot.lane.b32.xlu0 %v327, 112
      %v486 = vpop.permute.xlu0 %485
      %487 = vrot.lane.b32.xlu0 %v329, 112
      %v488 = vpop.permute.xlu0 %487
      %vm489 = vcmp.lt.s32.totalorder %v336, 112
      %v490 = vsel %vm489, %v486, %v488
      %v491 = vsel %vm489, %v488, %v486
      %v492 = vlaneseq
      %v493 = vshrl.u32 %v492, 7
      %v494 = vsub.s32 7, %v493
      %v495 = vrot.slane %v323, %v494
      %v496 = vlaneseq
      %v497 = vshrl.u32 %v496, 7
      %v498 = vsub.s32 7, %v497
      %v499 = vrot.slane %v324, %v498
      %v500 = vmul.f32 %v490, %v495
      %v501 = vmul.f32 %v491, %v499
      %v504 = vrot.slane %v500, 3
      %v505 = vrot.slane %v501, 3
      %508 = vst [vmem:[#allocation2 + $0x20] sm:$0xe0] %v504
      %509 = vst [vmem:[#allocation2 + $0x28] sm:$0xe0] %v505
      %510 = vrot.lane.b32.xlu0 %v327, 111
      %v511 = vpop.permute.xlu0 %510
      %512 = vrot.lane.b32.xlu0 %v329, 111
      %v513 = vpop.permute.xlu0 %512
      %vm514 = vcmp.lt.s32.totalorder %v336, 111
      %v515 = vsel %vm514, %v511, %v513
      %v516 = vsel %vm514, %v513, %v511
      %v517 = vlaneseq
      %v518 = vshrl.u32 %v517, 7
      %v519 = vsub.s32 0, %v518
      %v520 = vrot.slane %v325, %v519
      %v521 = vlaneseq
      %v522 = vshrl.u32 %v521, 7
      %v523 = vsub.s32 0, %v522
      %v524 = vrot.slane %v326, %v523
      %v525 = vmul.f32 %v515, %v520
      %v526 = vmul.f32 %v516, %v524
      %527 = vst [vmem:[#allocation2 + $0x30] sm:$0x7] %v525
      %528 = vst [vmem:[#allocation2 + $0x38] sm:$0x7] %v526
      %v529 = vld [vmem:[%s3] sm:$0xff]
      %v530 = vld [vmem:[%s3 + $0x10] sm:$0xff]
      %v531 = vld [vmem:[#allocation2] sm:$0xff]
      %v532 = vld [vmem:[#allocation2 + $0x8] sm:$0xff]
      %v533 = vld [vmem:[#allocation2 + $0x10] sm:$0xff]
      %v534 = vld [vmem:[#allocation2 + $0x18] sm:$0xff]
      %v535 = vld [vmem:[#allocation2 + $0x20] sm:$0xff]
      %v536 = vld [vmem:[#allocation2 + $0x28] sm:$0xff]
      %v537 = vld [vmem:[#allocation2 + $0x30] sm:$0x7]
      %v538 = vld [vmem:[#allocation2 + $0x38] sm:$0x7]
      %vm539 = vcmask 220160
      %v541 = vsel %vm539, %v529, 0
      %v544 = vsel %vm539, %v530, 0
      %vm546 = vcmask 1042432
      %v548 = vsel %vm546, %v537, 0
      %v551 = vsel %vm546, %v538, 0
      %553 = vmatprep.subr.mxu0 %v532
      %554 = vmatpush1.msra.mxu0 %v531
      %555 = vmatprep.subr.mxu0 %v534
      %556 = vmatpush1.msra.mxu0 %v533
      %557 = vmatprep.subr.mxu0 %v536
      %558 = vmatpush1.msra.mxu0 %v535
      %559 = vmatprep.subr.mxu0 %v551
      %560 = vmatpush1.msra.mxu0 %v548
      %561 = vmatprep.subr.mxu0 0.0
      %562 = vmatpush1.msra.mxu0 0.0
      %563 = vmatprep.subr.mxu0 0.0
      %564 = vmatpush1.msra.mxu0 0.0
      %565 = vmatprep.subr.mxu0 0.0
      %566 = vmatpush1.msra.mxu0 0.0
      %567 = vmatprep.subr.mxu0 0.0
      %568 = vmatpush1.msra.mxu0 0.0
      %569 = vmatprep.subr.mxu0 0.0
      %570 = vmatpush1.msra.mxu0 0.0
      %571 = vmatprep.subr.mxu0 0.0
      %572 = vmatpush1.msra.mxu0 0.0
      %573 = vmatprep.subr.mxu0 0.0
      %574 = vmatpush1.msra.mxu0 0.0
      %575 = vmatprep.subr.mxu0 0.0
      %576 = vmatpush1.msra.mxu0 0.0
      %577 = vmatprep.subr.mxu0 0.0
      %578 = vmatpush1.msra.mxu0 0.0
      %579 = vmatprep.subr.mxu0 0.0
      %580 = vmatpush1.msra.mxu0 0.0
      %581 = vmatprep.subr.mxu0 0.0
      %582 = vmatpush1.msra.mxu0 0.0
      %583 = vmatprep.subr.mxu0 0.0
      %584 = vmatpush1.msra.mxu0 0.0
      %585 = vmatprep.subr.mxu0 0.0
      %586 = vmatpush1.msra.mxu0 0.0
      %587 = vmatprep.subr.mxu0 0.0
      %588 = vmatpush1.msra.mxu0 0.0
      %589 = vmatprep.subr.mxu0 0.0
      %590 = vmatpush1.msra.mxu0 0.0
      %591 = vmatprep.subr.mxu0 0.0
      %592 = vmatpush1.msra.mxu0 0.0
      %593 = vmatprep.subr.mxu0 0.0
      %594 = vmatpush1.msra.mxu0 0.0
      %595 = vmatprep.subr.mxu0 0.0
      %596 = vmatpush1.msra.mxu0 0.0
      %597 = vmatprep.subr.mxu0 0.0
      %598 = vmatpush1.msra.mxu0 0.0
      %599 = vmatprep.subr.mxu0 0.0
      %600 = vmatpush1.msra.mxu0 0.0
      %601 = vmatprep.subr.mxu0 0.0
      %602 = vmatpush1.msra.mxu0 0.0
      %603 = vmatprep.subr.mxu0 0.0
      %604 = vmatpush1.msra.mxu0 0.0
      %605 = vmatprep.subr.mxu0 0.0
      %606 = vmatpush1.msra.mxu0 0.0
      %607 = vmatprep.subr.mxu0 0.0
      %608 = vmatpush1.msra.mxu0 0.0
      %609 = vmatprep.subr.mxu0 0.0
      %610 = vmatpush1.msra.mxu0 0.0
      %611 = vmatprep.subr.mxu0 0.0
      %612 = vmatpush1.msra.mxu0 0.0
      %613 = vmatprep.subr.mxu0 0.0
      %614 = vmatpush1.msra.mxu0 0.0
      %615 = vmatprep.subr.mxu0 0.0
      %616 = vmatpush1.msra.mxu0 0.0
      %617 = vmatprep.mubr.f32.mxu0 0.0
      %618 = vmatmul.mubr.f32.gmra.mrb[0].mxu0 %v541
      %v619 = vpop.f32.mrb[0].mxu0
      %v620 = vadd.f32 0.0, %v619
      %v621 = vpop.f32.mrb[0].mxu0
      %v622 = vadd.f32 0.0, %v621
      %623 = vmatprep.mubr.f32.mxu0 0.0
      %624 = vmatmul.mubr.f32.gmra.mrb[0].mxu0 %v544
      %v625 = vpop.f32.mrb[0].mxu0
      %v626 = vadd.f32 0.0, %v625
      %v627 = vpop.f32.mrb[0].mxu0
      %v628 = vadd.f32 0.0, %v627
      %629 = vdwg.mxu0
      %v630 = vld [vmem:[%s4] sm:$0xff]
      %v631 = vld [vmem:[%s4 + $0x8] sm:$0xff]
      %633 = vset.pattern.permute.xlu0 0
      %634 = vperm.xlu0 %633, %v630
      %v635 = vpop.permute.xlu0 %634
      %638 = vset.pattern.permute.xlu0 0
      %639 = vperm.xlu0 %638, %v631
      %v640 = vpop.permute.xlu0 %639
      %v642 = vmul.f32 %v620, %v635
      %v643 = vmul.f32 %v622, %v635
      %v644 = vmul.f32 %v626, %v640
      %v645 = vmul.f32 %v628, %v640
      %v646 = vld [vmem:[%s5] sm:$0xff]
      %v647 = vld [vmem:[%s5 + $0x8] sm:$0xff]
      %649 = vset.pattern.permute.xlu0 0
      %650 = vperm.xlu0 %649, %v646
      %v651 = vpop.permute.xlu0 %650
      %654 = vset.pattern.permute.xlu0 0
      %655 = vperm.xlu0 %654, %v647
      %v656 = vpop.permute.xlu0 %655
      %v658 = vadd.f32 %v642, %v651
      %v659 = vadd.f32 %v643, %v651
      %v660 = vadd.f32 %v644, %v656
      %v661 = vadd.f32 %v645, %v656
      %v662 = vmul.f32 %v658, 0.5
      %v663 = vmul.f32 %v659, 0.5
      %v664 = vmul.f32 %v660, 0.5
      %v665 = vmul.f32 %v661, 0.5
      %v666 = vmul.f32 %v658, 0.70710677
      %v667 = vmul.f32 %v659, 0.70710677
      %v668 = vmul.f32 %v660, 0.70710677
      %v669 = vmul.f32 %v661, 0.70710677
      %v670 = vmax.f32 %v666, -3.925
      %v671 = vmax.f32 %v667, -3.925
      %v672 = vmax.f32 %v668, -3.925
      %v673 = vmax.f32 %v669, -3.925
      %v674 = vmin.f32 %v670, 3.925
      %v675 = vmin.f32 %v671, 3.925
      %v676 = vmin.f32 %v672, 3.925
      %v677 = vmin.f32 %v673, 3.925
      %v678 = vmul.f32 %v674, %v674
      %v679 = vmul.f32 %v675, %v675
      %v680 = vmul.f32 %v676, %v676
      %v681 = vmul.f32 %v677, %v677
      %v682 = vmul.f32 %v678, -2.7261424e-10
      %v683 = vmul.f32 %v679, -2.7261424e-10
      %v684 = vmul.f32 %v680, -2.7261424e-10
      %v685 = vmul.f32 %v681, -2.7261424e-10
      %v686 = vadd.f32 %v682, 2.7706815e-08
      %v687 = vadd.f32 %v683, 2.7706815e-08
      %v688 = vadd.f32 %v684, 2.7706815e-08
      %v689 = vadd.f32 %v685, 2.7706815e-08
      %v690 = vmul.f32 %v686, %v678
      %v691 = vmul.f32 %v687, %v679
      %v692 = vmul.f32 %v688, %v680
      %v693 = vmul.f32 %v689, %v681
      %v694 = vadd.f32 %v690, -2.101024e-06
      %v695 = vadd.f32 %v691, -2.101024e-06
      %v696 = vadd.f32 %v692, -2.101024e-06
      %v697 = vadd.f32 %v693, -2.101024e-06
      %v698 = vmul.f32 %v694, %v678
      %v699 = vmul.f32 %v695, %v679
      %v700 = vmul.f32 %v696, %v680
      %v701 = vmul.f32 %v697, %v681
      %v702 = vadd.f32 %v698, -5.6925062e-05
      %v703 = vadd.f32 %v699, -5.6925062e-05
      %v704 = vadd.f32 %v700, -5.6925062e-05
      %v705 = vadd.f32 %v701, -5.6925062e-05
      %v706 = vmul.f32 %v702, %v678
      %v707 = vmul.f32 %v703, %v679
      %v708 = vmul.f32 %v704, %v680
      %v709 = vmul.f32 %v705, %v681
      %v710 = vadd.f32 %v706, -0.00073499064
      %v711 = vadd.f32 %v707, -0.00073499064
      %v712 = vadd.f32 %v708, -0.00073499064
      %v713 = vadd.f32 %v709, -0.00073499064
      %v714 = vmul.f32 %v710, %v678
      %v715 = vmul.f32 %v711, %v679
      %v716 = vmul.f32 %v712, %v680
      %v717 = vmul.f32 %v713, %v681
      %v718 = vadd.f32 %v714, -0.0029546
      %v719 = vadd.f32 %v715, -0.0029546
      %v720 = vadd.f32 %v716, -0.0029546
      %v721 = vadd.f32 %v717, -0.0029546
      %v722 = vmul.f32 %v718, %v678
      %v723 = vmul.f32 %v719, %v679
      %v724 = vmul.f32 %v720, %v680
      %v725 = vmul.f32 %v721, %v681
      %v726 = vadd.f32 %v722, -0.016096033
      %v727 = vadd.f32 %v723, -0.016096033
      %v728 = vadd.f32 %v724, -0.016096033
      %v729 = vadd.f32 %v725, -0.016096033
      %v730 = vmul.f32 %v678, -1.45660715e-05
      %v731 = vmul.f32 %v679, -1.45660715e-05
      %v732 = vmul.f32 %v680, -1.45660715e-05
      %v733 = vmul.f32 %v681, -1.45660715e-05
      %v734 = vadd.f32 %v730, -0.00021337405
      %v735 = vadd.f32 %v731, -0.00021337405
      %v736 = vadd.f32 %v732, -0.00021337405
      %v737 = vadd.f32 %v733, -0.00021337405
      %v738 = vmul.f32 %v734, %v678
      %v739 = vmul.f32 %v735, %v679
      %v740 = vmul.f32 %v736, %v680
      %v741 = vmul.f32 %v737, %v681
      %v742 = vadd.f32 %v738, -0.001682827
      %v743 = vadd.f32 %v739, -0.001682827
      %v744 = vadd.f32 %v740, -0.001682827
      %v745 = vadd.f32 %v741, -0.001682827
      %v746 = vmul.f32 %v742, %v678
      %v747 = vmul.f32 %v743, %v679
      %v748 = vmul.f32 %v744, %v680
      %v749 = vmul.f32 %v745, %v681
      %v750 = vadd.f32 %v746, -0.0073733293
      %v751 = vadd.f32 %v747, -0.0073733293
      %v752 = vadd.f32 %v748, -0.0073733293
      %v753 = vadd.f32 %v749, -0.0073733293
      %v754 = vmul.f32 %v750, %v678
      %v755 = vmul.f32 %v751, %v679
      %v756 = vmul.f32 %v752, %v680
      %v757 = vmul.f32 %v753, %v681
      %v758 = vadd.f32 %v754, -0.014264739
      %v759 = vadd.f32 %v755, -0.014264739
      %v760 = vadd.f32 %v756, -0.014264739
      %v761 = vadd.f32 %v757, -0.014264739
      %v762 = vmul.f32 %v674, %v726
      %v763 = vmul.f32 %v675, %v727
      %v764 = vmul.f32 %v676, %v728
      %v765 = vmul.f32 %v677, %v729
      %v766 = vrcp.pop %v758
      %v767 = vmul.f32 %v762, %v766
      %v768 = vrcp.pop %v759
      %v769 = vmul.f32 %v763, %v768
      %v770 = vrcp.pop %v760
      %v771 = vmul.f32 %v764, %v770
      %v772 = vrcp.pop %v761
      %v773 = vmul.f32 %v765, %v772
      %v774 = vadd.f32 %v767, 1.0
      %v775 = vadd.f32 %v769, 1.0
      %v776 = vadd.f32 %v771, 1.0
      %v777 = vadd.f32 %v773, 1.0
      %v778 = vmul.f32 %v662, %v774
      %v779 = vmul.f32 %v663, %v775
      %v780 = vmul.f32 %v664, %v776
      %v781 = vmul.f32 %v665, %v777
      %782 = vrot.lane.b32.xlu0 %v778, 17
      %v783 = vpop.permute.xlu0 %782
      %784 = vrot.lane.b32.xlu0 %v780, 17
      %v785 = vpop.permute.xlu0 %784
      %786 = vrot.lane.b32.xlu0 %v779, 17
      %v787 = vpop.permute.xlu0 %786
      %788 = vrot.lane.b32.xlu0 %v781, 17
      %v789 = vpop.permute.xlu0 %788
      %v790 = vsel %vm337, %v783, %v787
      %v791 = vsel %vm337, %v785, %v789
      %v792 = vsel %vm337, %v787, %v783
      %v793 = vsel %vm337, %v789, %v785
      %v794 = vmul.f32 %v792, %v343
      %v795 = vmul.f32 %v790, %v347
      %v796 = vmul.f32 %v793, %v343
      %v797 = vmul.f32 %v791, %v347
      %798 = vst [vmem:[#allocation2] sm:$0xff] %v794
      %799 = vst [vmem:[#allocation2 + $0x8] sm:$0xff] %v795
      %800 = vst [vmem:[#allocation2 + $0x10] sm:$0xff] %v796
      %801 = vst [vmem:[#allocation2 + $0x18] sm:$0xff] %v797
      %802 = vrot.lane.b32.xlu0 %v778, 16
      %v803 = vpop.permute.xlu0 %802
      %804 = vrot.lane.b32.xlu0 %v780, 16
      %v805 = vpop.permute.xlu0 %804
      %806 = vrot.lane.b32.xlu0 %v779, 16
      %v807 = vpop.permute.xlu0 %806
      %808 = vrot.lane.b32.xlu0 %v781, 16
      %v809 = vpop.permute.xlu0 %808
      %v810 = vsel %vm356, %v803, %v807
      %v811 = vsel %vm356, %v805, %v809
      %v812 = vsel %vm356, %v807, %v803
      %v813 = vsel %vm356, %v809, %v805
      %v814 = vmul.f32 %v812, %v362
      %v815 = vmul.f32 %v810, %v366
      %v816 = vmul.f32 %v813, %v362
      %v817 = vmul.f32 %v811, %v366
      %818 = vst [vmem:[#allocation2 + $0x20] sm:$0xff] %v814
      %819 = vst [vmem:[#allocation2 + $0x28] sm:$0xff] %v815
      %820 = vst [vmem:[#allocation2 + $0x30] sm:$0xff] %v816
      %821 = vst [vmem:[#allocation2 + $0x38] sm:$0xff] %v817
      %822 = vrot.lane.b32.xlu0 %v778, 15
      %v823 = vpop.permute.xlu0 %822
      %824 = vrot.lane.b32.xlu0 %v780, 15
      %v825 = vpop.permute.xlu0 %824
      %826 = vrot.lane.b32.xlu0 %v779, 15
      %v827 = vpop.permute.xlu0 %826
      %828 = vrot.lane.b32.xlu0 %v781, 15
      %v829 = vpop.permute.xlu0 %828
      %v830 = vsel %vm381, %v823, %v827
      %v831 = vsel %vm381, %v825, %v829
      %v832 = vsel %vm381, %v827, %v823
      %v833 = vsel %vm381, %v829, %v825
      %v834 = vmul.f32 %v832, %v387
      %v835 = vmul.f32 %v830, %v391
      %v836 = vmul.f32 %v833, %v387
      %v837 = vmul.f32 %v831, %v391
      %838 = vst [vmem:[#allocation2 + $0x40] sm:$0xff] %v834
      %839 = vst [vmem:[#allocation2 + $0x48] sm:$0xff] %v835
      %840 = vst [vmem:[#allocation2 + $0x50] sm:$0xff] %v836
      %841 = vst [vmem:[#allocation2 + $0x58] sm:$0xff] %v837
      %842 = vrot.lane.b32.xlu0 %v778, 1
      %v843 = vpop.permute.xlu0 %842
      %844 = vrot.lane.b32.xlu0 %v780, 1
      %v845 = vpop.permute.xlu0 %844
      %846 = vrot.lane.b32.xlu0 %v779, 1
      %v847 = vpop.permute.xlu0 %846
      %848 = vrot.lane.b32.xlu0 %v781, 1
      %v849 = vpop.permute.xlu0 %848
      %v850 = vsel %vm408, %v843, %v847
      %v851 = vsel %vm408, %v845, %v849
      %v852 = vsel %vm408, %v847, %v843
      %v853 = vsel %vm408, %v849, %v845
      %v854 = vmul.f32 %v852, %v414
      %v855 = vmul.f32 %v850, %v418
      %v856 = vmul.f32 %v853, %v414
      %v857 = vmul.f32 %v851, %v418
      %858 = vst [vmem:[#allocation2 + $0x60] sm:$0xff] %v854
      %859 = vst [vmem:[#allocation2 + $0x68] sm:$0xff] %v855
      %860 = vst [vmem:[#allocation2 + $0x70] sm:$0xff] %v856
      %861 = vst [vmem:[#allocation2 + $0x78] sm:$0xff] %v857
      %862 = vst [vmem:[#allocation2 + $0x80] sm:$0xff] %v778
      %863 = vst [vmem:[#allocation2 + $0x88] sm:$0xff] %v779
      %864 = vst [vmem:[#allocation2 + $0x90] sm:$0xff] %v780
      %865 = vst [vmem:[#allocation2 + $0x98] sm:$0xff] %v781
      %866 = vrot.lane.b32.xlu0 %v778, 127
      %v867 = vpop.permute.xlu0 %866
      %868 = vrot.lane.b32.xlu0 %v780, 127
      %v869 = vpop.permute.xlu0 %868
      %870 = vrot.lane.b32.xlu0 %v779, 127
      %v871 = vpop.permute.xlu0 %870
      %872 = vrot.lane.b32.xlu0 %v781, 127
      %v873 = vpop.permute.xlu0 %872
      %v874 = vsel %vm437, %v867, %v871
      %v875 = vsel %vm437, %v869, %v873
      %v876 = vsel %vm437, %v871, %v867
      %v877 = vsel %vm437, %v873, %v869
      %v878 = vmul.f32 %v874, %v443
      %v879 = vmul.f32 %v876, %v447
      %v880 = vmul.f32 %v875, %v443
      %v881 = vmul.f32 %v877, %v447
      %882 = vst [vmem:[#allocation2 + $0xa0] sm:$0xff] %v878
      %883 = vst [vmem:[#allocation2 + $0xa8] sm:$0xff] %v879
      %884 = vst [vmem:[#allocation2 + $0xb0] sm:$0xff] %v880
      %885 = vst [vmem:[#allocation2 + $0xb8] sm:$0xff] %v881
      %886 = vrot.lane.b32.xlu0 %v778, 113
      %v887 = vpop.permute.xlu0 %886
      %888 = vrot.lane.b32.xlu0 %v780, 113
      %v889 = vpop.permute.xlu0 %888
      %890 = vrot.lane.b32.xlu0 %v779, 113
      %v891 = vpop.permute.xlu0 %890
      %892 = vrot.lane.b32.xlu0 %v781, 113
      %v893 = vpop.permute.xlu0 %892
      %v894 = vsel %vm464, %v887, %v891
      %v895 = vsel %vm464, %v889, %v893
      %v896 = vsel %vm464, %v891, %v887
      %v897 = vsel %vm464, %v893, %v889
      %v898 = vmul.f32 %v894, %v470
      %v899 = vmul.f32 %v896, %v474
      %v900 = vmul.f32 %v895, %v470
      %v901 = vmul.f32 %v897, %v474
      %902 = vst [vmem:[#allocation2 + $0xc0] sm:$0xff] %v898
      %903 = vst [vmem:[#allocation2 + $0xc8] sm:$0xff] %v899
      %904 = vst [vmem:[#allocation2 + $0xd0] sm:$0xff] %v900
      %905 = vst [vmem:[#allocation2 + $0xd8] sm:$0xff] %v901
      %906 = vrot.lane.b32.xlu0 %v778, 112
      %v907 = vpop.permute.xlu0 %906
      %908 = vrot.lane.b32.xlu0 %v780, 112
      %v909 = vpop.permute.xlu0 %908
      %910 = vrot.lane.b32.xlu0 %v779, 112
      %v911 = vpop.permute.xlu0 %910
      %912 = vrot.lane.b32.xlu0 %v781, 112
      %v913 = vpop.permute.xlu0 %912
      %v914 = vsel %vm489, %v907, %v911
      %v915 = vsel %vm489, %v909, %v913
      %v916 = vsel %vm489, %v911, %v907
      %v917 = vsel %vm489, %v913, %v909
      %v918 = vmul.f32 %v914, %v495
      %v919 = vmul.f32 %v916, %v499
      %v920 = vmul.f32 %v915, %v495
      %v921 = vmul.f32 %v917, %v499
      %922 = vst [vmem:[#allocation2 + $0xe0] sm:$0xff] %v918
      %923 = vst [vmem:[#allocation2 + $0xe8] sm:$0xff] %v919
      %924 = vst [vmem:[#allocation2 + $0xf0] sm:$0xff] %v920
      %925 = vst [vmem:[#allocation2 + $0xf8] sm:$0xff] %v921
      %926 = vrot.lane.b32.xlu0 %v778, 111
      %v927 = vpop.permute.xlu0 %926
      %928 = vrot.lane.b32.xlu0 %v780, 111
      %v929 = vpop.permute.xlu0 %928
      %930 = vrot.lane.b32.xlu0 %v779, 111
      %v931 = vpop.permute.xlu0 %930
      %932 = vrot.lane.b32.xlu0 %v781, 111
      %v933 = vpop.permute.xlu0 %932
      %v934 = vsel %vm514, %v927, %v931
      %v935 = vsel %vm514, %v929, %v933
      %v936 = vsel %vm514, %v931, %v927
      %v937 = vsel %vm514, %v933, %v929
      %v938 = vmul.f32 %v934, %v520
      %v939 = vmul.f32 %v936, %v524
      %v940 = vmul.f32 %v935, %v520
      %v941 = vmul.f32 %v937, %v524
      %942 = vst [vmem:[#allocation2 + $0x100] sm:$0xff] %v938
      %943 = vst [vmem:[#allocation2 + $0x108] sm:$0xff] %v939
      %944 = vst [vmem:[#allocation2 + $0x110] sm:$0xff] %v940
      %945 = vst [vmem:[#allocation2 + $0x118] sm:$0xff] %v941
      %s946 = scalar_lea.vmem %s3, 32
      %v947 = vld [vmem:[%s946] sm:$0xff]
      %v948 = vld [vmem:[%s946 + $0x8] sm:$0xff]
      %v949 = vld [vmem:[%s946 + $0x10] sm:$0xff]
      %v950 = vld [vmem:[%s946 + $0x18] sm:$0xff]
      %v951 = vld [vmem:[#allocation2] sm:$0xff]
      %v952 = vld [vmem:[#allocation2 + $0x8] sm:$0xff]
      %v953 = vld [vmem:[#allocation2 + $0x10] sm:$0xff]
      %v954 = vld [vmem:[#allocation2 + $0x18] sm:$0xff]
      %v955 = vld [vmem:[#allocation2 + $0x20] sm:$0xff]
      %v956 = vld [vmem:[#allocation2 + $0x28] sm:$0xff]
      %v957 = vld [vmem:[#allocation2 + $0x30] sm:$0xff]
      %v958 = vld [vmem:[#allocation2 + $0x38] sm:$0xff]
      %v959 = vld [vmem:[#allocation2 + $0x40] sm:$0xff]
      %v960 = vld [vmem:[#allocation2 + $0x48] sm:$0xff]
      %v961 = vld [vmem:[#allocation2 + $0x50] sm:$0xff]
      %v962 = vld [vmem:[#allocation2 + $0x58] sm:$0xff]
      %v963 = vld [vmem:[#allocation2 + $0x60] sm:$0xff]
      %v964 = vld [vmem:[#allocation2 + $0x68] sm:$0xff]
      %v965 = vld [vmem:[#allocation2 + $0x70] sm:$0xff]
      %v966 = vld [vmem:[#allocation2 + $0x78] sm:$0xff]
      %v967 = vld [vmem:[#allocation2 + $0x80] sm:$0xff]
      %v968 = vld [vmem:[#allocation2 + $0x88] sm:$0xff]
      %v969 = vld [vmem:[#allocation2 + $0x90] sm:$0xff]
      %v970 = vld [vmem:[#allocation2 + $0x98] sm:$0xff]
      %v971 = vld [vmem:[#allocation2 + $0xa0] sm:$0xff]
      %v972 = vld [vmem:[#allocation2 + $0xa8] sm:$0xff]
      %v973 = vld [vmem:[#allocation2 + $0xb0] sm:$0xff]
      %v974 = vld [vmem:[#allocation2 + $0xb8] sm:$0xff]
      %v975 = vld [vmem:[#allocation2 + $0xc0] sm:$0xff]
      %v976 = vld [vmem:[#allocation2 + $0xc8] sm:$0xff]
      %v977 = vld [vmem:[#allocation2 + $0xd0] sm:$0xff]
      %v978 = vld [vmem:[#allocation2 + $0xd8] sm:$0xff]
      %v979 = vld [vmem:[#allocation2 + $0xe0] sm:$0xff]
      %v980 = vld [vmem:[#allocation2 + $0xe8] sm:$0xff]
      %v981 = vld [vmem:[#allocation2 + $0xf0] sm:$0xff]
      %v982 = vld [vmem:[#allocation2 + $0xf8] sm:$0xff]
      %v983 = vld [vmem:[#allocation2 + $0x100] sm:$0xff]
      %v984 = vld [vmem:[#allocation2 + $0x108] sm:$0xff]
      %v985 = vld [vmem:[#allocation2 + $0x110] sm:$0xff]
      %v986 = vld [vmem:[#allocation2 + $0x118] sm:$0xff]
      %vm987 = vcmask 130048
      %v989 = vsel %vm987, %v948, 0
      %v992 = vsel %vm987, %v950, 0
      %994 = vmatprep.subr.mxu0 %v952
      %995 = vmatpush1.msra.mxu0 %v951
      %996 = vmatprep.subr.mxu0 %v954
      %997 = vmatpush1.msra.mxu0 %v953
      %998 = vmatprep.subr.mxu0 %v956
      %999 = vmatpush1.msra.mxu0 %v955
      %1000 = vmatprep.subr.mxu0 %v958
      %1001 = vmatpush1.msra.mxu0 %v957
      %1002 = vmatprep.subr.mxu0 %v960
      %1003 = vmatpush1.msra.mxu0 %v959
      %1004 = vmatprep.subr.mxu0 %v962
      %1005 = vmatpush1.msra.mxu0 %v961
      %1006 = vmatprep.subr.mxu0 %v964
      %1007 = vmatpush1.msra.mxu0 %v963
      %1008 = vmatprep.subr.mxu0 %v966
      %1009 = vmatpush1.msra.mxu0 %v965
      %1010 = vmatprep.subr.mxu0 %v968
      %1011 = vmatpush1.msra.mxu0 %v967
      %1012 = vmatprep.subr.mxu0 %v970
      %1013 = vmatpush1.msra.mxu0 %v969
      %1014 = vmatprep.subr.mxu0 %v972
      %1015 = vmatpush1.msra.mxu0 %v971
      %1016 = vmatprep.subr.mxu0 %v974
      %1017 = vmatpush1.msra.mxu0 %v973
      %1018 = vmatprep.subr.mxu0 %v976
      %1019 = vmatpush1.msra.mxu0 %v975
      %1020 = vmatprep.subr.mxu0 %v978
      %1021 = vmatpush1.msra.mxu0 %v977
      %1022 = vmatprep.subr.mxu0 %v980
      %1023 = vmatpush1.msra.mxu0 %v979
      %1024 = vmatprep.subr.mxu0 %v982
      %1025 = vmatpush1.msra.mxu0 %v981
      %1026 = vmatprep.subr.mxu0 %v984
      %1027 = vmatpush1.msra.mxu0 %v983
      %1028 = vmatprep.subr.mxu0 %v986
      %1029 = vmatpush1.msra.mxu0 %v985
      %1030 = vmatprep.subr.mxu0 0.0
      %1031 = vmatpush1.msra.mxu0 0.0
      %1032 = vmatprep.subr.mxu0 0.0
      %1033 = vmatpush1.msra.mxu0 0.0
      %1034 = vmatprep.subr.mxu0 0.0
      %1035 = vmatpush1.msra.mxu0 0.0
      %1036 = vmatprep.subr.mxu0 0.0
      %1037 = vmatpush1.msra.mxu0 0.0
      %1038 = vmatprep.subr.mxu0 0.0
      %1039 = vmatpush1.msra.mxu0 0.0
      %1040 = vmatprep.subr.mxu0 0.0
      %1041 = vmatpush1.msra.mxu0 0.0
      %1042 = vmatprep.subr.mxu0 0.0
      %1043 = vmatpush1.msra.mxu0 0.0
      %1044 = vmatprep.subr.mxu0 0.0
      %1045 = vmatpush1.msra.mxu0 0.0
      %1046 = vmatprep.subr.mxu0 0.0
      %1047 = vmatpush1.msra.mxu0 0.0
      %1048 = vmatprep.subr.mxu0 0.0
      %1049 = vmatpush1.msra.mxu0 0.0
      %1050 = vmatprep.subr.mxu0 0.0
      %1051 = vmatpush1.msra.mxu0 0.0
      %1052 = vmatprep.subr.mxu0 0.0
      %1053 = vmatpush1.msra.mxu0 0.0
      %1054 = vmatprep.subr.mxu0 0.0
      %1055 = vmatpush1.msra.mxu0 0.0
      %1056 = vmatprep.subr.mxu0 0.0
      %1057 = vmatpush1.msra.mxu0 0.0
      %1058 = vmatprep.mubr.f32.mxu0 %v989
      %1059 = vmatmul.mubr.f32.gmra.mrb[0].mxu0 %v947
      %v1060 = vpop.f32.mrb[0].mxu0
      %v1061 = vadd.f32 0.0, %v1060
      %v1062 = vpop.f32.mrb[0].mxu0
      %v1063 = vadd.f32 0.0, %v1062
      %1064 = vmatprep.mubr.f32.mxu0 %v992
      %1065 = vmatmul.mubr.f32.gmra.mrb[0].mxu0 %v949
      %v1066 = vpop.f32.mrb[0].mxu0
      %v1067 = vadd.f32 0.0, %v1066
      %v1068 = vpop.f32.mrb[0].mxu0
      %v1069 = vadd.f32 0.0, %v1068
      %1070 = vdwg.mxu0
      %s1071 = scalar_lea.vmem %s4, 16
      %v1072 = vld [vmem:[%s1071] sm:$0xff]
      %v1073 = vld [vmem:[%s1071 + $0x8] sm:$0xff]
      %1075 = vset.pattern.permute.xlu0 0
      %1076 = vperm.xlu0 %1075, %v1072
      %v1077 = vpop.permute.xlu0 %1076
      %1080 = vset.pattern.permute.xlu0 0
      %1081 = vperm.xlu0 %1080, %v1073
      %v1082 = vpop.permute.xlu0 %1081
      %v1084 = vmul.f32 %v1061, %v1077
      %v1085 = vmul.f32 %v1063, %v1077
      %v1086 = vmul.f32 %v1067, %v1082
      %v1087 = vmul.f32 %v1069, %v1082
      %s1088 = scalar_lea.vmem %s5, 16
      %v1089 = vld [vmem:[%s1088] sm:$0xff]
      %v1090 = vld [vmem:[%s1088 + $0x8] sm:$0xff]
      %1092 = vset.pattern.permute.xlu0 0
      %1093 = vperm.xlu0 %1092, %v1089
      %v1094 = vpop.permute.xlu0 %1093
      %1097 = vset.pattern.permute.xlu0 0
      %1098 = vperm.xlu0 %1097, %v1090
      %v1099 = vpop.permute.xlu0 %1098
      %v1101 = vadd.f32 %v1084, %v1094
      %v1102 = vadd.f32 %v1085, %v1094
      %v1103 = vadd.f32 %v1086, %v1099
      %v1104 = vadd.f32 %v1087, %v1099
      %v1105 = vmul.f32 %v1101, 0.5
      %v1106 = vmul.f32 %v1102, 0.5
      %v1107 = vmul.f32 %v1103, 0.5
      %v1108 = vmul.f32 %v1104, 0.5
      %v1109 = vmul.f32 %v1101, 0.70710677
      %v1110 = vmul.f32 %v1102, 0.70710677
      %v1111 = vmul.f32 %v1103, 0.70710677
      %v1112 = vmul.f32 %v1104, 0.70710677
      %v1113 = vmax.f32 %v1109, -3.925
      %v1114 = vmax.f32 %v1110, -3.925
      %v1115 = vmax.f32 %v1111, -3.925
      %v1116 = vmax.f32 %v1112, -3.925
      %v1117 = vmin.f32 %v1113, 3.925
      %v1118 = vmin.f32 %v1114, 3.925
      %v1119 = vmin.f32 %v1115, 3.925
      %v1120 = vmin.f32 %v1116, 3.925
      %v1121 = vmul.f32 %v1117, %v1117
      %v1122 = vmul.f32 %v1118, %v1118
      %v1123 = vmul.f32 %v1119, %v1119
      %v1124 = vmul.f32 %v1120, %v1120
      %v1125 = vmul.f32 %v1121, -2.7261424e-10
      %v1126 = vmul.f32 %v1122, -2.7261424e-10
      %v1127 = vmul.f32 %v1123, -2.7261424e-10
      %v1128 = vmul.f32 %v1124, -2.7261424e-10
      %v1129 = vadd.f32 %v1125, 2.7706815e-08
      %v1130 = vadd.f32 %v1126, 2.7706815e-08
      %v1131 = vadd.f32 %v1127, 2.7706815e-08
      %v1132 = vadd.f32 %v1128, 2.7706815e-08
      %v1133 = vmul.f32 %v1129, %v1121
      %v1134 = vmul.f32 %v1130, %v1122
      %v1135 = vmul.f32 %v1131, %v1123
      %v1136 = vmul.f32 %v1132, %v1124
      %v1137 = vadd.f32 %v1133, -2.101024e-06
      %v1138 = vadd.f32 %v1134, -2.101024e-06
      %v1139 = vadd.f32 %v1135, -2.101024e-06
      %v1140 = vadd.f32 %v1136, -2.101024e-06
      %v1141 = vmul.f32 %v1137, %v1121
      %v1142 = vmul.f32 %v1138, %v1122
      %v1143 = vmul.f32 %v1139, %v1123
      %v1144 = vmul.f32 %v1140, %v1124
      %v1145 = vadd.f32 %v1141, -5.6925062e-05
      %v1146 = vadd.f32 %v1142, -5.6925062e-05
      %v1147 = vadd.f32 %v1143, -5.6925062e-05
      %v1148 = vadd.f32 %v1144, -5.6925062e-05
      %v1149 = vmul.f32 %v1145, %v1121
      %v1150 = vmul.f32 %v1146, %v1122
      %v1151 = vmul.f32 %v1147, %v1123
      %v1152 = vmul.f32 %v1148, %v1124
      %v1153 = vadd.f32 %v1149, -0.00073499064
      %v1154 = vadd.f32 %v1150, -0.00073499064
      %v1155 = vadd.f32 %v1151, -0.00073499064
      %v1156 = vadd.f32 %v1152, -0.00073499064
      %v1157 = vmul.f32 %v1153, %v1121
      %v1158 = vmul.f32 %v1154, %v1122
      %v1159 = vmul.f32 %v1155, %v1123
      %v1160 = vmul.f32 %v1156, %v1124
      %v1161 = vadd.f32 %v1157, -0.0029546
      %v1162 = vadd.f32 %v1158, -0.0029546
      %v1163 = vadd.f32 %v1159, -0.0029546
      %v1164 = vadd.f32 %v1160, -0.0029546
      %v1165 = vmul.f32 %v1161, %v1121
      %v1166 = vmul.f32 %v1162, %v1122
      %v1167 = vmul.f32 %v1163, %v1123
      %v1168 = vmul.f32 %v1164, %v1124
      %v1169 = vadd.f32 %v1165, -0.016096033
      %v1170 = vadd.f32 %v1166, -0.016096033
      %v1171 = vadd.f32 %v1167, -0.016096033
      %v1172 = vadd.f32 %v1168, -0.016096033
      %v1173 = vmul.f32 %v1121, -1.45660715e-05
      %v1174 = vmul.f32 %v1122, -1.45660715e-05
      %v1175 = vmul.f32 %v1123, -1.45660715e-05
      %v1176 = vmul.f32 %v1124, -1.45660715e-05
      %v1177 = vadd.f32 %v1173, -0.00021337405
      %v1178 = vadd.f32 %v1174, -0.00021337405
      %v1179 = vadd.f32 %v1175, -0.00021337405
      %v1180 = vadd.f32 %v1176, -0.00021337405
      %v1181 = vmul.f32 %v1177, %v1121
      %v1182 = vmul.f32 %v1178, %v1122
      %v1183 = vmul.f32 %v1179, %v1123
      %v1184 = vmul.f32 %v1180, %v1124
      %v1185 = vadd.f32 %v1181, -0.001682827
      %v1186 = vadd.f32 %v1182, -0.001682827
      %v1187 = vadd.f32 %v1183, -0.001682827
      %v1188 = vadd.f32 %v1184, -0.001682827
      %v1189 = vmul.f32 %v1185, %v1121
      %v1190 = vmul.f32 %v1186, %v1122
      %v1191 = vmul.f32 %v1187, %v1123
      %v1192 = vmul.f32 %v1188, %v1124
      %v1193 = vadd.f32 %v1189, -0.0073733293
      %v1194 = vadd.f32 %v1190, -0.0073733293
      %v1195 = vadd.f32 %v1191, -0.0073733293
      %v1196 = vadd.f32 %v1192, -0.0073733293
      %v1197 = vmul.f32 %v1193, %v1121
      %v1198 = vmul.f32 %v1194, %v1122
      %v1199 = vmul.f32 %v1195, %v1123
      %v1200 = vmul.f32 %v1196, %v1124
      %v1201 = vadd.f32 %v1197, -0.014264739
      %v1202 = vadd.f32 %v1198, -0.014264739
      %v1203 = vadd.f32 %v1199, -0.014264739
      %v1204 = vadd.f32 %v1200, -0.014264739
      %v1205 = vmul.f32 %v1117, %v1169
      %v1206 = vmul.f32 %v1118, %v1170
      %v1207 = vmul.f32 %v1119, %v1171
      %v1208 = vmul.f32 %v1120, %v1172
      %v1209 = vrcp.pop %v1201
      %v1210 = vmul.f32 %v1205, %v1209
      %v1211 = vrcp.pop %v1202
      %v1212 = vmul.f32 %v1206, %v1211
      %v1213 = vrcp.pop %v1203
      %v1214 = vmul.f32 %v1207, %v1213
      %v1215 = vrcp.pop %v1204
      %v1216 = vmul.f32 %v1208, %v1215
      %v1217 = vadd.f32 %v1210, 1.0
      %v1218 = vadd.f32 %v1212, 1.0
      %v1219 = vadd.f32 %v1214, 1.0
      %v1220 = vadd.f32 %v1216, 1.0
      %v1221 = vmul.f32 %v1105, %v1217
      %v1222 = vmul.f32 %v1106, %v1218
      %v1223 = vmul.f32 %v1107, %v1219
      %v1224 = vmul.f32 %v1108, %v1220
      %1225 = vrot.lane.b32.xlu0 %v1221, 17
      %v1226 = vpop.permute.xlu0 %1225
      %1227 = vrot.lane.b32.xlu0 %v1223, 17
      %v1228 = vpop.permute.xlu0 %1227
      %1229 = vrot.lane.b32.xlu0 %v1222, 17
      %v1230 = vpop.permute.xlu0 %1229
      %1231 = vrot.lane.b32.xlu0 %v1224, 17
      %v1232 = vpop.permute.xlu0 %1231
      %v1233 = vsel %vm337, %v1226, %v1230
      %v1234 = vsel %vm337, %v1228, %v1232
      %v1235 = vsel %vm337, %v1230, %v1226
      %v1236 = vsel %vm337, %v1232, %v1228
      %v1237 = vmul.f32 %v1235, %v343
      %v1238 = vmul.f32 %v1233, %v347
      %v1239 = vmul.f32 %v1236, %v343
      %v1240 = vmul.f32 %v1234, %v347
      %1241 = vst [vmem:[#allocation2] sm:$0xff] %v1237
      %1242 = vst [vmem:[#allocation2 + $0x8] sm:$0xff] %v1238
      %1243 = vst [vmem:[#allocation2 + $0x10] sm:$0xff] %v1239
      %1244 = vst [vmem:[#allocation2 + $0x18] sm:$0xff] %v1240
      %1245 = vrot.lane.b32.xlu0 %v1221, 16
      %v1246 = vpop.permute.xlu0 %1245
      %1247 = vrot.lane.b32.xlu0 %v1223, 16
      %v1248 = vpop.permute.xlu0 %1247
      %1249 = vrot.lane.b32.xlu0 %v1222, 16
      %v1250 = vpop.permute.xlu0 %1249
      %1251 = vrot.lane.b32.xlu0 %v1224, 16
      %v1252 = vpop.permute.xlu0 %1251
      %v1253 = vsel %vm356, %v1246, %v1250
      %v1254 = vsel %vm356, %v1248, %v1252
      %v1255 = vsel %vm356, %v1250, %v1246
      %v1256 = vsel %vm356, %v1252, %v1248
      %v1257 = vmul.f32 %v1255, %v362
      %v1258 = vmul.f32 %v1253, %v366
      %v1259 = vmul.f32 %v1256, %v362
      %v1260 = vmul.f32 %v1254, %v366
      %1261 = vst [vmem:[#allocation2 + $0x20] sm:$0xff] %v1257
      %1262 = vst [vmem:[#allocation2 + $0x28] sm:$0xff] %v1258
      %1263 = vst [vmem:[#allocation2 + $0x30] sm:$0xff] %v1259
      %1264 = vst [vmem:[#allocation2 + $0x38] sm:$0xff] %v1260
      %1265 = vrot.lane.b32.xlu0 %v1221, 15
      %v1266 = vpop.permute.xlu0 %1265
      %1267 = vrot.lane.b32.xlu0 %v1223, 15
      %v1268 = vpop.permute.xlu0 %1267
      %1269 = vrot.lane.b32.xlu0 %v1222, 15
      %v1270 = vpop.permute.xlu0 %1269
      %1271 = vrot.lane.b32.xlu0 %v1224, 15
      %v1272 = vpop.permute.xlu0 %1271
      %v1273 = vsel %vm381, %v1266, %v1270
      %v1274 = vsel %vm381, %v1268, %v1272
      %v1275 = vsel %vm381, %v1270, %v1266
      %v1276 = vsel %vm381, %v1272, %v1268
      %v1277 = vmul.f32 %v1275, %v387
      %v1278 = vmul.f32 %v1273, %v391
      %v1279 = vmul.f32 %v1276, %v387
      %v1280 = vmul.f32 %v1274, %v391
      %1281 = vst [vmem:[#allocation2 + $0x40] sm:$0xff] %v1277
      %1282 = vst [vmem:[#allocation2 + $0x48] sm:$0xff] %v1278
      %1283 = vst [vmem:[#allocation2 + $0x50] sm:$0xff] %v1279
      %1284 = vst [vmem:[#allocation2 + $0x58] sm:$0xff] %v1280
      %1285 = vrot.lane.b32.xlu0 %v1221, 1
      %v1286 = vpop.permute.xlu0 %1285
      %1287 = vrot.lane.b32.xlu0 %v1223, 1
      %v1288 = vpop.permute.xlu0 %1287
      %1289 = vrot.lane.b32.xlu0 %v1222, 1
      %v1290 = vpop.permute.xlu0 %1289
      %1291 = vrot.lane.b32.xlu0 %v1224, 1
      %v1292 = vpop.permute.xlu0 %1291
      %v1293 = vsel %vm408, %v1286, %v1290
      %v1294 = vsel %vm408, %v1288, %v1292
      %v1295 = vsel %vm408, %v1290, %v1286
      %v1296 = vsel %vm408, %v1292, %v1288
      %v1297 = vmul.f32 %v1295, %v414
      %v1298 = vmul.f32 %v1293, %v418
      %v1299 = vmul.f32 %v1296, %v414
      %v1300 = vmul.f32 %v1294, %v418
      %1301 = vst [vmem:[#allocation2 + $0x60] sm:$0xff] %v1297
      %1302 = vst [vmem:[#allocation2 + $0x68] sm:$0xff] %v1298
      %1303 = vst [vmem:[#allocation2 + $0x70] sm:$0xff] %v1299
      %1304 = vst [vmem:[#allocation2 + $0x78] sm:$0xff] %v1300
      %1305 = vst [vmem:[#allocation2 + $0x80] sm:$0xff] %v1221
      %1306 = vst [vmem:[#allocation2 + $0x88] sm:$0xff] %v1222
      %1307 = vst [vmem:[#allocation2 + $0x90] sm:$0xff] %v1223
      %1308 = vst [vmem:[#allocation2 + $0x98] sm:$0xff] %v1224
      %1309 = vrot.lane.b32.xlu0 %v1221, 127
      %v1310 = vpop.permute.xlu0 %1309
      %1311 = vrot.lane.b32.xlu0 %v1223, 127
      %v1312 = vpop.permute.xlu0 %1311
      %1313 = vrot.lane.b32.xlu0 %v1222, 127
      %v1314 = vpop.permute.xlu0 %1313
      %1315 = vrot.lane.b32.xlu0 %v1224, 127
      %v1316 = vpop.permute.xlu0 %1315
      %v1317 = vsel %vm437, %v1310, %v1314
      %v1318 = vsel %vm437, %v1312, %v1316
      %v1319 = vsel %vm437, %v1314, %v1310
      %v1320 = vsel %vm437, %v1316, %v1312
      %v1321 = vmul.f32 %v1317, %v443
      %v1322 = vmul.f32 %v1319, %v447
      %v1323 = vmul.f32 %v1318, %v443
      %v1324 = vmul.f32 %v1320, %v447
      %1325 = vst [vmem:[#allocation2 + $0xa0] sm:$0xff] %v1321
      %1326 = vst [vmem:[#allocation2 + $0xa8] sm:$0xff] %v1322
      %1327 = vst [vmem:[#allocation2 + $0xb0] sm:$0xff] %v1323
      %1328 = vst [vmem:[#allocation2 + $0xb8] sm:$0xff] %v1324
      %1329 = vrot.lane.b32.xlu0 %v1221, 113
      %v1330 = vpop.permute.xlu0 %1329
      %1331 = vrot.lane.b32.xlu0 %v1223, 113
      %v1332 = vpop.permute.xlu0 %1331
      %1333 = vrot.lane.b32.xlu0 %v1222, 113
      %v1334 = vpop.permute.xlu0 %1333
      %1335 = vrot.lane.b32.xlu0 %v1224, 113
      %v1336 = vpop.permute.xlu0 %1335
      %v1337 = vsel %vm464, %v1330, %v1334
      %v1338 = vsel %vm464, %v1332, %v1336
      %v1339 = vsel %vm464, %v1334, %v1330
      %v1340 = vsel %vm464, %v1336, %v1332
      %v1341 = vmul.f32 %v1337, %v470
      %v1342 = vmul.f32 %v1339, %v474
      %v1343 = vmul.f32 %v1338, %v470
      %v1344 = vmul.f32 %v1340, %v474
      %1345 = vst [vmem:[#allocation2 + $0xc0] sm:$0xff] %v1341
      %1346 = vst [vmem:[#allocation2 + $0xc8] sm:$0xff] %v1342
      %1347 = vst [vmem:[#allocation2 + $0xd0] sm:$0xff] %v1343
      %1348 = vst [vmem:[#allocation2 + $0xd8] sm:$0xff] %v1344
      %1349 = vrot.lane.b32.xlu0 %v1221, 112
      %v1350 = vpop.permute.xlu0 %1349
      %1351 = vrot.lane.b32.xlu0 %v1223, 112
      %v1352 = vpop.permute.xlu0 %1351
      %1353 = vrot.lane.b32.xlu0 %v1222, 112
      %v1354 = vpop.permute.xlu0 %1353
      %1355 = vrot.lane.b32.xlu0 %v1224, 112
      %v1356 = vpop.permute.xlu0 %1355
      %v1357 = vsel %vm489, %v1350, %v1354
      %v1358 = vsel %vm489, %v1352, %v1356
      %v1359 = vsel %vm489, %v1354, %v1350
      %v1360 = vsel %vm489, %v1356, %v1352
      %v1361 = vmul.f32 %v1357, %v495
      %v1362 = vmul.f32 %v1359, %v499
      %v1363 = vmul.f32 %v1358, %v495
      %v1364 = vmul.f32 %v1360, %v499
      %1365 = vst [vmem:[#allocation2 + $0xe0] sm:$0xff] %v1361
      %1366 = vst [vmem:[#allocation2 + $0xe8] sm:$0xff] %v1362
      %1367 = vst [vmem:[#allocation2 + $0xf0] sm:$0xff] %v1363
      %1368 = vst [vmem:[#allocation2 + $0xf8] sm:$0xff] %v1364
      %1369 = vrot.lane.b32.xlu0 %v1221, 111
      %v1370 = vpop.permute.xlu0 %1369
      %1371 = vrot.lane.b32.xlu0 %v1223, 111
      %v1372 = vpop.permute.xlu0 %1371
      %1373 = vrot.lane.b32.xlu0 %v1222, 111
      %v1374 = vpop.permute.xlu0 %1373
      %1375 = vrot.lane.b32.xlu0 %v1224, 111
      %v1376 = vpop.permute.xlu0 %1375
      %v1377 = vsel %vm514, %v1370, %v1374
      %v1378 = vsel %vm514, %v1372, %v1376
      %v1379 = vsel %vm514, %v1374, %v1370
      %v1380 = vsel %vm514, %v1376, %v1372
      %v1381 = vmul.f32 %v1377, %v520
      %v1382 = vmul.f32 %v1379, %v524
      %v1383 = vmul.f32 %v1378, %v520
      %v1384 = vmul.f32 %v1380, %v524
      %1385 = vst [vmem:[#allocation2 + $0x100] sm:$0xff] %v1381
      %1386 = vst [vmem:[#allocation2 + $0x108] sm:$0xff] %v1382
      %1387 = vst [vmem:[#allocation2 + $0x110] sm:$0xff] %v1383
      %1388 = vst [vmem:[#allocation2 + $0x118] sm:$0xff] %v1384
      %s1389 = scalar_lea.vmem %s3, 64
      %v1390 = vld [vmem:[%s1389] sm:$0xff]
      %v1391 = vld [vmem:[%s1389 + $0x8] sm:$0xff]
      %v1392 = vld [vmem:[%s1389 + $0x10] sm:$0xff]
      %v1393 = vld [vmem:[%s1389 + $0x18] sm:$0xff]
      %v1394 = vld [vmem:[#allocation2] sm:$0xff]
      %v1395 = vld [vmem:[#allocation2 + $0x8] sm:$0xff]
      %v1396 = vld [vmem:[#allocation2 + $0x10] sm:$0xff]
      %v1397 = vld [vmem:[#allocation2 + $0x18] sm:$0xff]
      %v1398 = vld [vmem:[#allocation2 + $0x20] sm:$0xff]
      %v1399 = vld [vmem:[#allocation2 + $0x28] sm:$0xff]
      %v1400 = vld [vmem:[#allocation2 + $0x30] sm:$0xff]
      %v1401 = vld [vmem:[#allocation2 + $0x38] sm:$0xff]
      %v1402 = vld [vmem:[#allocation2 + $0x40] sm:$0xff]
      %v1403 = vld [vmem:[#allocation2 + $0x48] sm:$0xff]
      %v1404 = vld [vmem:[#allocation2 + $0x50] sm:$0xff]
      %v1405 = vld [vmem:[#allocation2 + $0x58] sm:$0xff]
      %v1406 = vld [vmem:[#allocation2 + $0x60] sm:$0xff]
      %v1407 = vld [vmem:[#allocation2 + $0x68] sm:$0xff]
      %v1408 = vld [vmem:[#allocation2 + $0x70] sm:$0xff]
      %v1409 = vld [vmem:[#allocation2 + $0x78] sm:$0xff]
      %v1410 = vld [vmem:[#allocation2 + $0x80] sm:$0xff]
      %v1411 = vld [vmem:[#allocation2 + $0x88] sm:$0xff]
      %v1412 = vld [vmem:[#allocation2 + $0x90] sm:$0xff]
      %v1413 = vld [vmem:[#allocation2 + $0x98] sm:$0xff]
      %v1414 = vld [vmem:[#allocation2 + $0xa0] sm:$0xff]
      %v1415 = vld [vmem:[#allocation2 + $0xa8] sm:$0xff]
      %v1416 = vld [vmem:[#allocation2 + $0xb0] sm:$0xff]
      %v1417 = vld [vmem:[#allocation2 + $0xb8] sm:$0xff]
      %v1418 = vld [vmem:[#allocation2 + $0xc0] sm:$0xff]
      %v1419 = vld [vmem:[#allocation2 + $0xc8] sm:$0xff]
      %v1420 = vld [vmem:[#allocation2 + $0xd0] sm:$0xff]
      %v1421 = vld [vmem:[#allocation2 + $0xd8] sm:$0xff]
      %v1422 = vld [vmem:[#allocation2 + $0xe0] sm:$0xff]
      %v1423 = vld [vmem:[#allocation2 + $0xe8] sm:$0xff]
      %v1424 = vld [vmem:[#allocation2 + $0xf0] sm:$0xff]
      %v1425 = vld [vmem:[#allocation2 + $0xf8] sm:$0xff]
      %v1426 = vld [vmem:[#allocation2 + $0x100] sm:$0xff]
      %v1427 = vld [vmem:[#allocation2 + $0x108] sm:$0xff]
      %v1428 = vld [vmem:[#allocation2 + $0x110] sm:$0xff]
      %v1429 = vld [vmem:[#allocation2 + $0x118] sm:$0xff]
      %v1431 = vsel %vm987, %v1391, 0
      %v1434 = vsel %vm987, %v1393, 0
      %1436 = vmatprep.subr.mxu0 %v1395
      %1437 = vmatpush1.msra.mxu0 %v1394
      %1438 = vmatprep.subr.mxu0 %v1397
      %1439 = vmatpush1.msra.mxu0 %v1396
      %1440 = vmatprep.subr.mxu0 %v1399
      %1441 = vmatpush1.msra.mxu0 %v1398
      %1442 = vmatprep.subr.mxu0 %v1401
      %1443 = vmatpush1.msra.mxu0 %v1400
      %1444 = vmatprep.subr.mxu0 %v1403
      %1445 = vmatpush1.msra.mxu0 %v1402
      %1446 = vmatprep.subr.mxu0 %v1405
      %1447 = vmatpush1.msra.mxu0 %v1404
      %1448 = vmatprep.subr.mxu0 %v1407
      %1449 = vmatpush1.msra.mxu0 %v1406
      %1450 = vmatprep.subr.mxu0 %v1409
      %1451 = vmatpush1.msra.mxu0 %v1408
      %1452 = vmatprep.subr.mxu0 %v1411
      %1453 = vmatpush1.msra.mxu0 %v1410
      %1454 = vmatprep.subr.mxu0 %v1413
      %1455 = vmatpush1.msra.mxu0 %v1412
      %1456 = vmatprep.subr.mxu0 %v1415
      %1457 = vmatpush1.msra.mxu0 %v1414
      %1458 = vmatprep.subr.mxu0 %v1417
      %1459 = vmatpush1.msra.mxu0 %v1416
      %1460 = vmatprep.subr.mxu0 %v1419
      %1461 = vmatpush1.msra.mxu0 %v1418
      %1462 = vmatprep.subr.mxu0 %v1421
      %1463 = vmatpush1.msra.mxu0 %v1420
      %1464 = vmatprep.subr.mxu0 %v1423
      %1465 = vmatpush1.msra.mxu0 %v1422
      %1466 = vmatprep.subr.mxu0 %v1425
      %1467 = vmatpush1.msra.mxu0 %v1424
      %1468 = vmatprep.subr.mxu0 %v1427
      %1469 = vmatpush1.msra.mxu0 %v1426
      %1470 = vmatprep.subr.mxu0 %v1429
      %1471 = vmatpush1.msra.mxu0 %v1428
      %1472 = vmatprep.subr.mxu0 0.0
      %1473 = vmatpush1.msra.mxu0 0.0
      %1474 = vmatprep.subr.mxu0 0.0
      %1475 = vmatpush1.msra.mxu0 0.0
      %1476 = vmatprep.subr.mxu0 0.0
      %1477 = vmatpush1.msra.mxu0 0.0
      %1478 = vmatprep.subr.mxu0 0.0
      %1479 = vmatpush1.msra.mxu0 0.0
      %1480 = vmatprep.subr.mxu0 0.0
      %1481 = vmatpush1.msra.mxu0 0.0
      %1482 = vmatprep.subr.mxu0 0.0
      %1483 = vmatpush1.msra.mxu0 0.0
      %1484 = vmatprep.subr.mxu0 0.0
      %1485 = vmatpush1.msra.mxu0 0.0
      %1486 = vmatprep.subr.mxu0 0.0
      %1487 = vmatpush1.msra.mxu0 0.0
      %1488 = vmatprep.subr.mxu0 0.0
      %1489 = vmatpush1.msra.mxu0 0.0
      %1490 = vmatprep.subr.mxu0 0.0
      %1491 = vmatpush1.msra.mxu0 0.0
      %1492 = vmatprep.subr.mxu0 0.0
      %1493 = vmatpush1.msra.mxu0 0.0
      %1494 = vmatprep.subr.mxu0 0.0
      %1495 = vmatpush1.msra.mxu0 0.0
      %1496 = vmatprep.subr.mxu0 0.0
      %1497 = vmatpush1.msra.mxu0 0.0
      %1498 = vmatprep.subr.mxu0 0.0
      %1499 = vmatpush1.msra.mxu0 0.0
      %1500 = vmatprep.mubr.f32.mxu0 %v1431
      %1501 = vmatmul.mubr.f32.gmra.mrb[0].mxu0 %v1390
      %v1502 = vpop.f32.mrb[0].mxu0
      %v1503 = vadd.f32 0.0, %v1502
      %v1504 = vpop.f32.mrb[0].mxu0
      %v1505 = vadd.f32 0.0, %v1504
      %1506 = vmatprep.mubr.f32.mxu0 %v1434
      %1507 = vmatmul.mubr.f32.gmra.mrb[0].mxu0 %v1392
      %v1508 = vpop.f32.mrb[0].mxu0
      %v1509 = vadd.f32 0.0, %v1508
      %v1510 = vpop.f32.mrb[0].mxu0
      %v1511 = vadd.f32 0.0, %v1510
      %1512 = vdwg.mxu0
      %s1513 = scalar_lea.vmem %s4, 32
      %v1514 = vld [vmem:[%s1513] sm:$0xff]
      %v1515 = vld [vmem:[%s1513 + $0x8] sm:$0xff]
      %1517 = vset.pattern.permute.xlu0 0
      %1518 = vperm.xlu0 %1517, %v1514
      %v1519 = vpop.permute.xlu0 %1518
      %1522 = vset.pattern.permute.xlu0 0
      %1523 = vperm.xlu0 %1522, %v1515
      %v1524 = vpop.permute.xlu0 %1523
      %v1526 = vmul.f32 %v1503, %v1519
      %v1527 = vmul.f32 %v1505, %v1519
      %v1528 = vmul.f32 %v1509, %v1524
      %v1529 = vmul.f32 %v1511, %v1524
      %s1530 = scalar_lea.vmem %s5, 32
      %v1531 = vld [vmem:[%s1530] sm:$0xff]
      %v1532 = vld [vmem:[%s1530 + $0x8] sm:$0xff]
      %1534 = vset.pattern.permute.xlu0 0
      %1535 = vperm.xlu0 %1534, %v1531
      %v1536 = vpop.permute.xlu0 %1535
      %1539 = vset.pattern.permute.xlu0 0
      %1540 = vperm.xlu0 %1539, %v1532
      %v1541 = vpop.permute.xlu0 %1540
      %v1543 = vadd.f32 %v1526, %v1536
      %v1544 = vadd.f32 %v1527, %v1536
      %v1545 = vadd.f32 %v1528, %v1541
      %v1546 = vadd.f32 %v1529, %v1541
      %v1547 = vmul.f32 %v1543, 0.5
      %v1548 = vmul.f32 %v1544, 0.5
      %v1549 = vmul.f32 %v1545, 0.5
      %v1550 = vmul.f32 %v1546, 0.5
      %v1551 = vmul.f32 %v1543, 0.70710677
      %v1552 = vmul.f32 %v1544, 0.70710677
      %v1553 = vmul.f32 %v1545, 0.70710677
      %v1554 = vmul.f32 %v1546, 0.70710677
      %v1555 = vmax.f32 %v1551, -3.925
      %v1556 = vmax.f32 %v1552, -3.925
      %v1557 = vmax.f32 %v1553, -3.925
      %v1558 = vmax.f32 %v1554, -3.925
      %v1559 = vmin.f32 %v1555, 3.925
      %v1560 = vmin.f32 %v1556, 3.925
      %v1561 = vmin.f32 %v1557, 3.925
      %v1562 = vmin.f32 %v1558, 3.925
      %v1563 = vmul.f32 %v1559, %v1559
      %v1564 = vmul.f32 %v1560, %v1560
      %v1565 = vmul.f32 %v1561, %v1561
      %v1566 = vmul.f32 %v1562, %v1562
      %v1567 = vmul.f32 %v1563, -2.7261424e-10
      %v1568 = vmul.f32 %v1564, -2.7261424e-10
      %v1569 = vmul.f32 %v1565, -2.7261424e-10
      %v1570 = vmul.f32 %v1566, -2.7261424e-10
      %v1571 = vadd.f32 %v1567, 2.7706815e-08
      %v1572 = vadd.f32 %v1568, 2.7706815e-08
      %v1573 = vadd.f32 %v1569, 2.7706815e-08
      %v1574 = vadd.f32 %v1570, 2.7706815e-08
      %v1575 = vmul.f32 %v1571, %v1563
      %v1576 = vmul.f32 %v1572, %v1564
      %v1577 = vmul.f32 %v1573, %v1565
      %v1578 = vmul.f32 %v1574, %v1566
      %v1579 = vadd.f32 %v1575, -2.101024e-06
      %v1580 = vadd.f32 %v1576, -2.101024e-06
      %v1581 = vadd.f32 %v1577, -2.101024e-06
      %v1582 = vadd.f32 %v1578, -2.101024e-06
      %v1583 = vmul.f32 %v1579, %v1563
      %v1584 = vmul.f32 %v1580, %v1564
      %v1585 = vmul.f32 %v1581, %v1565
      %v1586 = vmul.f32 %v1582, %v1566
      %v1587 = vadd.f32 %v1583, -5.6925062e-05
      %v1588 = vadd.f32 %v1584, -5.6925062e-05
      %v1589 = vadd.f32 %v1585, -5.6925062e-05
      %v1590 = vadd.f32 %v1586, -5.6925062e-05
      %v1591 = vmul.f32 %v1587, %v1563
      %v1592 = vmul.f32 %v1588, %v1564
      %v1593 = vmul.f32 %v1589, %v1565
      %v1594 = vmul.f32 %v1590, %v1566
      %v1595 = vadd.f32 %v1591, -0.00073499064
      %v1596 = vadd.f32 %v1592, -0.00073499064
      %v1597 = vadd.f32 %v1593, -0.00073499064
      %v1598 = vadd.f32 %v1594, -0.00073499064
      %v1599 = vmul.f32 %v1595, %v1563
      %v1600 = vmul.f32 %v1596, %v1564
      %v1601 = vmul.f32 %v1597, %v1565
      %v1602 = vmul.f32 %v1598, %v1566
      %v1603 = vadd.f32 %v1599, -0.0029546
      %v1604 = vadd.f32 %v1600, -0.0029546
      %v1605 = vadd.f32 %v1601, -0.0029546
      %v1606 = vadd.f32 %v1602, -0.0029546
      %v1607 = vmul.f32 %v1603, %v1563
      %v1608 = vmul.f32 %v1604, %v1564
      %v1609 = vmul.f32 %v1605, %v1565
      %v1610 = vmul.f32 %v1606, %v1566
      %v1611 = vadd.f32 %v1607, -0.016096033
      %v1612 = vadd.f32 %v1608, -0.016096033
      %v1613 = vadd.f32 %v1609, -0.016096033
      %v1614 = vadd.f32 %v1610, -0.016096033
      %v1615 = vmul.f32 %v1563, -1.45660715e-05
      %v1616 = vmul.f32 %v1564, -1.45660715e-05
      %v1617 = vmul.f32 %v1565, -1.45660715e-05
      %v1618 = vmul.f32 %v1566, -1.45660715e-05
      %v1619 = vadd.f32 %v1615, -0.00021337405
      %v1620 = vadd.f32 %v1616, -0.00021337405
      %v1621 = vadd.f32 %v1617, -0.00021337405
      %v1622 = vadd.f32 %v1618, -0.00021337405
      %v1623 = vmul.f32 %v1619, %v1563
      %v1624 = vmul.f32 %v1620, %v1564
      %v1625 = vmul.f32 %v1621, %v1565
      %v1626 = vmul.f32 %v1622, %v1566
      %v1627 = vadd.f32 %v1623, -0.001682827
      %v1628 = vadd.f32 %v1624, -0.001682827
      %v1629 = vadd.f32 %v1625, -0.001682827
      %v1630 = vadd.f32 %v1626, -0.001682827
      %v1631 = vmul.f32 %v1627, %v1563
      %v1632 = vmul.f32 %v1628, %v1564
      %v1633 = vmul.f32 %v1629, %v1565
      %v1634 = vmul.f32 %v1630, %v1566
      %v1635 = vadd.f32 %v1631, -0.0073733293
      %v1636 = vadd.f32 %v1632, -0.0073733293
      %v1637 = vadd.f32 %v1633, -0.0073733293
      %v1638 = vadd.f32 %v1634, -0.0073733293
      %v1639 = vmul.f32 %v1635, %v1563
      %v1640 = vmul.f32 %v1636, %v1564
      %v1641 = vmul.f32 %v1637, %v1565
      %v1642 = vmul.f32 %v1638, %v1566
      %v1643 = vadd.f32 %v1639, -0.014264739
      %v1644 = vadd.f32 %v1640, -0.014264739
      %v1645 = vadd.f32 %v1641, -0.014264739
      %v1646 = vadd.f32 %v1642, -0.014264739
      %v1647 = vmul.f32 %v1559, %v1611
      %v1648 = vmul.f32 %v1560, %v1612
      %v1649 = vmul.f32 %v1561, %v1613
      %v1650 = vmul.f32 %v1562, %v1614
      %v1651 = vrcp.pop %v1643
      %v1652 = vmul.f32 %v1647, %v1651
      %v1653 = vrcp.pop %v1644
      %v1654 = vmul.f32 %v1648, %v1653
      %v1655 = vrcp.pop %v1645
      %v1656 = vmul.f32 %v1649, %v1655
      %v1657 = vrcp.pop %v1646
      %v1658 = vmul.f32 %v1650, %v1657
      %v1659 = vadd.f32 %v1652, 1.0
      %v1660 = vadd.f32 %v1654, 1.0
      %v1661 = vadd.f32 %v1656, 1.0
      %v1662 = vadd.f32 %v1658, 1.0
      %v1663 = vmul.f32 %v1547, %v1659
      %v1664 = vmul.f32 %v1548, %v1660
      %v1665 = vmul.f32 %v1549, %v1661
      %v1666 = vmul.f32 %v1550, %v1662
      %1667 = vrot.lane.b32.xlu0 %v1663, 17
      %v1668 = vpop.permute.xlu0 %1667
      %1669 = vrot.lane.b32.xlu0 %v1665, 17
      %v1670 = vpop.permute.xlu0 %1669
      %1671 = vrot.lane.b32.xlu0 %v1664, 17
      %v1672 = vpop.permute.xlu0 %1671
      %1673 = vrot.lane.b32.xlu0 %v1666, 17
      %v1674 = vpop.permute.xlu0 %1673
      %v1675 = vsel %vm337, %v1668, %v1672
      %v1676 = vsel %vm337, %v1670, %v1674
      %v1677 = vsel %vm337, %v1672, %v1668
      %v1678 = vsel %vm337, %v1674, %v1670
      %v1679 = vmul.f32 %v1677, %v343
      %v1680 = vmul.f32 %v1675, %v347
      %v1681 = vmul.f32 %v1678, %v343
      %v1682 = vmul.f32 %v1676, %v347
      %1683 = vst [vmem:[#allocation2] sm:$0xff] %v1679
      %1684 = vst [vmem:[#allocation2 + $0x8] sm:$0xff] %v1680
      %1685 = vst [vmem:[#allocation2 + $0x10] sm:$0xff] %v1681
      %1686 = vst [vmem:[#allocation2 + $0x18] sm:$0xff] %v1682
      %1687 = vrot.lane.b32.xlu0 %v1663, 16
      %v1688 = vpop.permute.xlu0 %1687
      %1689 = vrot.lane.b32.xlu0 %v1665, 16
      %v1690 = vpop.permute.xlu0 %1689
      %1691 = vrot.lane.b32.xlu0 %v1664, 16
      %v1692 = vpop.permute.xlu0 %1691
      %1693 = vrot.lane.b32.xlu0 %v1666, 16
      %v1694 = vpop.permute.xlu0 %1693
      %v1695 = vsel %vm356, %v1688, %v1692
      %v1696 = vsel %vm356, %v1690, %v1694
      %v1697 = vsel %vm356, %v1692, %v1688
      %v1698 = vsel %vm356, %v1694, %v1690
      %v1699 = vmul.f32 %v1697, %v362
      %v1700 = vmul.f32 %v1695, %v366
      %v1701 = vmul.f32 %v1698, %v362
      %v1702 = vmul.f32 %v1696, %v366
      %1703 = vst [vmem:[#allocation2 + $0x20] sm:$0xff] %v1699
      %1704 = vst [vmem:[#allocation2 + $0x28] sm:$0xff] %v1700
      %1705 = vst [vmem:[#allocation2 + $0x30] sm:$0xff] %v1701
      %1706 = vst [vmem:[#allocation2 + $0x38] sm:$0xff] %v1702
      %1707 = vrot.lane.b32.xlu0 %v1663, 15
      %v1708 = vpop.permute.xlu0 %1707
      %1709 = vrot.lane.b32.xlu0 %v1665, 15
      %v1710 = vpop.permute.xlu0 %1709
      %1711 = vrot.lane.b32.xlu0 %v1664, 15
      %v1712 = vpop.permute.xlu0 %1711
      %1713 = vrot.lane.b32.xlu0 %v1666, 15
      %v1714 = vpop.permute.xlu0 %1713
      %v1715 = vsel %vm381, %v1708, %v1712
      %v1716 = vsel %vm381, %v1710, %v1714
      %v1717 = vsel %vm381, %v1712, %v1708
      %v1718 = vsel %vm381, %v1714, %v1710
      %v1719 = vmul.f32 %v1717, %v387
      %v1720 = vmul.f32 %v1715, %v391
      %v1721 = vmul.f32 %v1718, %v387
      %v1722 = vmul.f32 %v1716, %v391
      %1723 = vst [vmem:[#allocation2 + $0x40] sm:$0xff] %v1719
      %1724 = vst [vmem:[#allocation2 + $0x48] sm:$0xff] %v1720
      %1725 = vst [vmem:[#allocation2 + $0x50] sm:$0xff] %v1721
      %1726 = vst [vmem:[#allocation2 + $0x58] sm:$0xff] %v1722
      %1727 = vrot.lane.b32.xlu0 %v1663, 1
      %v1728 = vpop.permute.xlu0 %1727
      %1729 = vrot.lane.b32.xlu0 %v1665, 1
      %v1730 = vpop.permute.xlu0 %1729
      %1731 = vrot.lane.b32.xlu0 %v1664, 1
      %v1732 = vpop.permute.xlu0 %1731
      %1733 = vrot.lane.b32.xlu0 %v1666, 1
      %v1734 = vpop.permute.xlu0 %1733
      %v1735 = vsel %vm408, %v1728, %v1732
      %v1736 = vsel %vm408, %v1730, %v1734
      %v1737 = vsel %vm408, %v1732, %v1728
      %v1738 = vsel %vm408, %v1734, %v1730
      %v1739 = vmul.f32 %v1737, %v414
      %v1740 = vmul.f32 %v1735, %v418
      %v1741 = vmul.f32 %v1738, %v414
      %v1742 = vmul.f32 %v1736, %v418
      %1743 = vst [vmem:[#allocation2 + $0x60] sm:$0xff] %v1739
      %1744 = vst [vmem:[#allocation2 + $0x68] sm:$0xff] %v1740
      %1745 = vst [vmem:[#allocation2 + $0x70] sm:$0xff] %v1741
      %1746 = vst [vmem:[#allocation2 + $0x78] sm:$0xff] %v1742
      %1747 = vst [vmem:[#allocation2 + $0x80] sm:$0xff] %v1663
      %1748 = vst [vmem:[#allocation2 + $0x88] sm:$0xff] %v1664
      %1749 = vst [vmem:[#allocation2 + $0x90] sm:$0xff] %v1665
      %1750 = vst [vmem:[#allocation2 + $0x98] sm:$0xff] %v1666
      %1751 = vrot.lane.b32.xlu0 %v1663, 127
      %v1752 = vpop.permute.xlu0 %1751
      %1753 = vrot.lane.b32.xlu0 %v1665, 127
      %v1754 = vpop.permute.xlu0 %1753
      %1755 = vrot.lane.b32.xlu0 %v1664, 127
      %v1756 = vpop.permute.xlu0 %1755
      %1757 = vrot.lane.b32.xlu0 %v1666, 127
      %v1758 = vpop.permute.xlu0 %1757
      %v1759 = vsel %vm437, %v1752, %v1756
      %v1760 = vsel %vm437, %v1754, %v1758
      %v1761 = vsel %vm437, %v1756, %v1752
      %v1762 = vsel %vm437, %v1758, %v1754
      %v1763 = vmul.f32 %v1759, %v443
      %v1764 = vmul.f32 %v1761, %v447
      %v1765 = vmul.f32 %v1760, %v443
      %v1766 = vmul.f32 %v1762, %v447
      %1767 = vst [vmem:[#allocation2 + $0xa0] sm:$0xff] %v1763
      %1768 = vst [vmem:[#allocation2 + $0xa8] sm:$0xff] %v1764
      %1769 = vst [vmem:[#allocation2 + $0xb0] sm:$0xff] %v1765
      %1770 = vst [vmem:[#allocation2 + $0xb8] sm:$0xff] %v1766
      %1771 = vrot.lane.b32.xlu0 %v1663, 113
      %v1772 = vpop.permute.xlu0 %1771
      %1773 = vrot.lane.b32.xlu0 %v1665, 113
      %v1774 = vpop.permute.xlu0 %1773
      %1775 = vrot.lane.b32.xlu0 %v1664, 113
      %v1776 = vpop.permute.xlu0 %1775
      %1777 = vrot.lane.b32.xlu0 %v1666, 113
      %v1778 = vpop.permute.xlu0 %1777
      %v1779 = vsel %vm464, %v1772, %v1776
      %v1780 = vsel %vm464, %v1774, %v1778
      %v1781 = vsel %vm464, %v1776, %v1772
      %v1782 = vsel %vm464, %v1778, %v1774
      %v1783 = vmul.f32 %v1779, %v470
      %v1784 = vmul.f32 %v1781, %v474
      %v1785 = vmul.f32 %v1780, %v470
      %v1786 = vmul.f32 %v1782, %v474
      %1787 = vst [vmem:[#allocation2 + $0xc0] sm:$0xff] %v1783
      %1788 = vst [vmem:[#allocation2 + $0xc8] sm:$0xff] %v1784
      %1789 = vst [vmem:[#allocation2 + $0xd0] sm:$0xff] %v1785
      %1790 = vst [vmem:[#allocation2 + $0xd8] sm:$0xff] %v1786
      %1791 = vrot.lane.b32.xlu0 %v1663, 112
      %v1792 = vpop.permute.xlu0 %1791
      %1793 = vrot.lane.b32.xlu0 %v1665, 112
      %v1794 = vpop.permute.xlu0 %1793
      %1795 = vrot.lane.b32.xlu0 %v1664, 112
      %v1796 = vpop.permute.xlu0 %1795
      %1797 = vrot.lane.b32.xlu0 %v1666, 112
      %v1798 = vpop.permute.xlu0 %1797
      %v1799 = vsel %vm489, %v1792, %v1796
      %v1800 = vsel %vm489, %v1794, %v1798
      %v1801 = vsel %vm489, %v1796, %v1792
      %v1802 = vsel %vm489, %v1798, %v1794
      %v1803 = vmul.f32 %v1799, %v495
      %v1804 = vmul.f32 %v1801, %v499
      %v1805 = vmul.f32 %v1800, %v495
      %v1806 = vmul.f32 %v1802, %v499
      %1807 = vst [vmem:[#allocation2 + $0xe0] sm:$0xff] %v1803
      %1808 = vst [vmem:[#allocation2 + $0xe8] sm:$0xff] %v1804
      %1809 = vst [vmem:[#allocation2 + $0xf0] sm:$0xff] %v1805
      %1810 = vst [vmem:[#allocation2 + $0xf8] sm:$0xff] %v1806
      %1811 = vrot.lane.b32.xlu0 %v1663, 111
      %v1812 = vpop.permute.xlu0 %1811
      %1813 = vrot.lane.b32.xlu0 %v1665, 111
      %v1814 = vpop.permute.xlu0 %1813
      %1815 = vrot.lane.b32.xlu0 %v1664, 111
      %v1816 = vpop.permute.xlu0 %1815
      %1817 = vrot.lane.b32.xlu0 %v1666, 111
      %v1818 = vpop.permute.xlu0 %1817
      %v1819 = vsel %vm514, %v1812, %v1816
      %v1820 = vsel %vm514, %v1814, %v1818
      %v1821 = vsel %vm514, %v1816, %v1812
      %v1822 = vsel %vm514, %v1818, %v1814
      %v1823 = vmul.f32 %v1819, %v520
      %v1824 = vmul.f32 %v1821, %v524
      %v1825 = vmul.f32 %v1820, %v520
      %v1826 = vmul.f32 %v1822, %v524
      %1827 = vst [vmem:[#allocation2 + $0x100] sm:$0xff] %v1823
      %1828 = vst [vmem:[#allocation2 + $0x108] sm:$0xff] %v1824
      %1829 = vst [vmem:[#allocation2 + $0x110] sm:$0xff] %v1825
      %1830 = vst [vmem:[#allocation2 + $0x118] sm:$0xff] %v1826
      %s1831 = scalar_lea.vmem %s3, 96
      %v1832 = vld [vmem:[%s1831] sm:$0xff]
      %v1833 = vld [vmem:[%s1831 + $0x8] sm:$0xff]
      %v1834 = vld [vmem:[%s1831 + $0x10] sm:$0xff]
      %v1835 = vld [vmem:[%s1831 + $0x18] sm:$0xff]
      %v1836 = vld [vmem:[#allocation2] sm:$0xff]
      %v1837 = vld [vmem:[#allocation2 + $0x8] sm:$0xff]
      %v1838 = vld [vmem:[#allocation2 + $0x10] sm:$0xff]
      %v1839 = vld [vmem:[#allocation2 + $0x18] sm:$0xff]
      %v1840 = vld [vmem:[#allocation2 + $0x20] sm:$0xff]
      %v1841 = vld [vmem:[#allocation2 + $0x28] sm:$0xff]
      %v1842 = vld [vmem:[#allocation2 + $0x30] sm:$0xff]
      %v1843 = vld [vmem:[#allocation2 + $0x38] sm:$0xff]
      %v1844 = vld [vmem:[#allocation2 + $0x40] sm:$0xff]
      %v1845 = vld [vmem:[#allocation2 + $0x48] sm:$0xff]
      %v1846 = vld [vmem:[#allocation2 + $0x50] sm:$0xff]
      %v1847 = vld [vmem:[#allocation2 + $0x58] sm:$0xff]
      %v1848 = vld [vmem:[#allocation2 + $0x60] sm:$0xff]
      %v1849 = vld [vmem:[#allocation2 + $0x68] sm:$0xff]
      %v1850 = vld [vmem:[#allocation2 + $0x70] sm:$0xff]
      %v1851 = vld [vmem:[#allocation2 + $0x78] sm:$0xff]
      %v1852 = vld [vmem:[#allocation2 + $0x80] sm:$0xff]
      %v1853 = vld [vmem:[#allocation2 + $0x88] sm:$0xff]
      %v1854 = vld [vmem:[#allocation2 + $0x90] sm:$0xff]
      %v1855 = vld [vmem:[#allocation2 + $0x98] sm:$0xff]
      %v1856 = vld [vmem:[#allocation2 + $0xa0] sm:$0xff]
      %v1857 = vld [vmem:[#allocation2 + $0xa8] sm:$0xff]
      %v1858 = vld [vmem:[#allocation2 + $0xb0] sm:$0xff]
      %v1859 = vld [vmem:[#allocation2 + $0xb8] sm:$0xff]
      %v1860 = vld [vmem:[#allocation2 + $0xc0] sm:$0xff]
      %v1861 = vld [vmem:[#allocation2 + $0xc8] sm:$0xff]
      %v1862 = vld [vmem:[#allocation2 + $0xd0] sm:$0xff]
      %v1863 = vld [vmem:[#allocation2 + $0xd8] sm:$0xff]
      %v1864 = vld [vmem:[#allocation2 + $0xe0] sm:$0xff]
      %v1865 = vld [vmem:[#allocation2 + $0xe8] sm:$0xff]
      %v1866 = vld [vmem:[#allocation2 + $0xf0] sm:$0xff]
      %v1867 = vld [vmem:[#allocation2 + $0xf8] sm:$0xff]
      %v1868 = vld [vmem:[#allocation2 + $0x100] sm:$0xff]
      %v1869 = vld [vmem:[#allocation2 + $0x108] sm:$0xff]
      %v1870 = vld [vmem:[#allocation2 + $0x110] sm:$0xff]
      %v1871 = vld [vmem:[#allocation2 + $0x118] sm:$0xff]
      %v1873 = vsel %vm987, %v1833, 0
      %v1876 = vsel %vm987, %v1835, 0
      %1878 = vmatprep.subr.mxu0 %v1837
      %1879 = vmatpush1.msra.mxu0 %v1836
      %1880 = vmatprep.subr.mxu0 %v1839
      %1881 = vmatpush1.msra.mxu0 %v1838
      %1882 = vmatprep.subr.mxu0 %v1841
      %1883 = vmatpush1.msra.mxu0 %v1840
      %1884 = vmatprep.subr.mxu0 %v1843
      %1885 = vmatpush1.msra.mxu0 %v1842
      %1886 = vmatprep.subr.mxu0 %v1845
      %1887 = vmatpush1.msra.mxu0 %v1844
      %1888 = vmatprep.subr.mxu0 %v1847
      %1889 = vmatpush1.msra.mxu0 %v1846
      %1890 = vmatprep.subr.mxu0 %v1849
      %1891 = vmatpush1.msra.mxu0 %v1848
      %1892 = vmatprep.subr.mxu0 %v1851
      %1893 = vmatpush1.msra.mxu0 %v1850
      %1894 = vmatprep.subr.mxu0 %v1853
      %1895 = vmatpush1.msra.mxu0 %v1852
      %1896 = vmatprep.subr.mxu0 %v1855
      %1897 = vmatpush1.msra.mxu0 %v1854
      %1898 = vmatprep.subr.mxu0 %v1857
      %1899 = vmatpush1.msra.mxu0 %v1856
      %1900 = vmatprep.subr.mxu0 %v1859
      %1901 = vmatpush1.msra.mxu0 %v1858
      %1902 = vmatprep.subr.mxu0 %v1861
      %1903 = vmatpush1.msra.mxu0 %v1860
      %1904 = vmatprep.subr.mxu0 %v1863
      %1905 = vmatpush1.msra.mxu0 %v1862
      %1906 = vmatprep.subr.mxu0 %v1865
      %1907 = vmatpush1.msra.mxu0 %v1864
      %1908 = vmatprep.subr.mxu0 %v1867
      %1909 = vmatpush1.msra.mxu0 %v1866
      %1910 = vmatprep.subr.mxu0 %v1869
      %1911 = vmatpush1.msra.mxu0 %v1868
      %1912 = vmatprep.subr.mxu0 %v1871
      %1913 = vmatpush1.msra.mxu0 %v1870
      %1914 = vmatprep.subr.mxu0 0.0
      %1915 = vmatpush1.msra.mxu0 0.0
      %1916 = vmatprep.subr.mxu0 0.0
      %1917 = vmatpush1.msra.mxu0 0.0
      %1918 = vmatprep.subr.mxu0 0.0
      %1919 = vmatpush1.msra.mxu0 0.0
      %1920 = vmatprep.subr.mxu0 0.0
      %1921 = vmatpush1.msra.mxu0 0.0
      %1922 = vmatprep.subr.mxu0 0.0
      %1923 = vmatpush1.msra.mxu0 0.0
      %1924 = vmatprep.subr.mxu0 0.0
      %1925 = vmatpush1.msra.mxu0 0.0
      %1926 = vmatprep.subr.mxu0 0.0
      %1927 = vmatpush1.msra.mxu0 0.0
      %1928 = vmatprep.subr.mxu0 0.0
      %1929 = vmatpush1.msra.mxu0 0.0
      %1930 = vmatprep.subr.mxu0 0.0
      %1931 = vmatpush1.msra.mxu0 0.0
      %1932 = vmatprep.subr.mxu0 0.0
      %1933 = vmatpush1.msra.mxu0 0.0
      %1934 = vmatprep.subr.mxu0 0.0
      %1935 = vmatpush1.msra.mxu0 0.0
      %1936 = vmatprep.subr.mxu0 0.0
      %1937 = vmatpush1.msra.mxu0 0.0
      %1938 = vmatprep.subr.mxu0 0.0
      %1939 = vmatpush1.msra.mxu0 0.0
      %1940 = vmatprep.subr.mxu0 0.0
      %1941 = vmatpush1.msra.mxu0 0.0
      %1942 = vmatprep.mubr.f32.mxu0 %v1873
      %1943 = vmatmul.mubr.f32.gmra.mrb[0].mxu0 %v1832
      %v1944 = vpop.f32.mrb[0].mxu0
      %v1945 = vadd.f32 0.0, %v1944
      %v1946 = vpop.f32.mrb[0].mxu0
      %v1947 = vadd.f32 0.0, %v1946
      %1948 = vmatprep.mubr.f32.mxu0 %v1876
      %1949 = vmatmul.mubr.f32.gmra.mrb[0].mxu0 %v1834
      %v1950 = vpop.f32.mrb[0].mxu0
      %v1951 = vadd.f32 0.0, %v1950
      %v1952 = vpop.f32.mrb[0].mxu0
      %v1953 = vadd.f32 0.0, %v1952
      %1954 = vdwg.mxu0
      %s1955 = scalar_lea.vmem %s4, 48
      %v1956 = vld [vmem:[%s1955] sm:$0xff]
      %v1957 = vld [vmem:[%s1955 + $0x8] sm:$0xff]
      %1959 = vset.pattern.permute.xlu0 0
      %1960 = vperm.xlu0 %1959, %v1956
      %v1961 = vpop.permute.xlu0 %1960
      %1964 = vset.pattern.permute.xlu0 0
      %1965 = vperm.xlu0 %1964, %v1957
      %v1966 = vpop.permute.xlu0 %1965
      %v1968 = vmul.f32 %v1945, %v1961
      %v1969 = vmul.f32 %v1947, %v1961
      %v1970 = vmul.f32 %v1951, %v1966
      %v1971 = vmul.f32 %v1953, %v1966
      %s1972 = scalar_lea.vmem %s5, 48
      %v1973 = vld [vmem:[%s1972] sm:$0xff]
      %v1974 = vld [vmem:[%s1972 + $0x8] sm:$0xff]
      %1976 = vset.pattern.permute.xlu0 0
      %1977 = vperm.xlu0 %1976, %v1973
      %v1978 = vpop.permute.xlu0 %1977
      %1981 = vset.pattern.permute.xlu0 0
      %1982 = vperm.xlu0 %1981, %v1974
      %v1983 = vpop.permute.xlu0 %1982
      %v1985 = vadd.f32 %v1968, %v1978
      %v1986 = vadd.f32 %v1969, %v1978
      %v1987 = vadd.f32 %v1970, %v1983
      %v1988 = vadd.f32 %v1971, %v1983
      %v1989 = vmul.f32 %v1985, 0.5
      %v1990 = vmul.f32 %v1986, 0.5
      %v1991 = vmul.f32 %v1987, 0.5
      %v1992 = vmul.f32 %v1988, 0.5
      %v1993 = vmul.f32 %v1985, 0.70710677
      %v1994 = vmul.f32 %v1986, 0.70710677
      %v1995 = vmul.f32 %v1987, 0.70710677
      %v1996 = vmul.f32 %v1988, 0.70710677
      %v1997 = vmax.f32 %v1993, -3.925
      %v1998 = vmax.f32 %v1994, -3.925
      %v1999 = vmax.f32 %v1995, -3.925
      %v2000 = vmax.f32 %v1996, -3.925
      %v2001 = vmin.f32 %v1997, 3.925
      %v2002 = vmin.f32 %v1998, 3.925
      %v2003 = vmin.f32 %v1999, 3.925
      %v2004 = vmin.f32 %v2000, 3.925
      %v2005 = vmul.f32 %v2001, %v2001
      %v2006 = vmul.f32 %v2002, %v2002
      %v2007 = vmul.f32 %v2003, %v2003
      %v2008 = vmul.f32 %v2004, %v2004
      %v2009 = vmul.f32 %v2005, -2.7261424e-10
      %v2010 = vmul.f32 %v2006, -2.7261424e-10
      %v2011 = vmul.f32 %v2007, -2.7261424e-10
      %v2012 = vmul.f32 %v2008, -2.7261424e-10
      %v2013 = vadd.f32 %v2009, 2.7706815e-08
      %v2014 = vadd.f32 %v2010, 2.7706815e-08
      %v2015 = vadd.f32 %v2011, 2.7706815e-08
      %v2016 = vadd.f32 %v2012, 2.7706815e-08
      %v2017 = vmul.f32 %v2013, %v2005
      %v2018 = vmul.f32 %v2014, %v2006
      %v2019 = vmul.f32 %v2015, %v2007
      %v2020 = vmul.f32 %v2016, %v2008
      %v2021 = vadd.f32 %v2017, -2.101024e-06
      %v2022 = vadd.f32 %v2018, -2.101024e-06
      %v2023 = vadd.f32 %v2019, -2.101024e-06
      %v2024 = vadd.f32 %v2020, -2.101024e-06
      %v2025 = vmul.f32 %v2021, %v2005
      %v2026 = vmul.f32 %v2022, %v2006
      %v2027 = vmul.f32 %v2023, %v2007
      %v2028 = vmul.f32 %v2024, %v2008
      %v2029 = vadd.f32 %v2025, -5.6925062e-05
      %v2030 = vadd.f32 %v2026, -5.6925062e-05
      %v2031 = vadd.f32 %v2027, -5.6925062e-05
      %v2032 = vadd.f32 %v2028, -5.6925062e-05
      %v2033 = vmul.f32 %v2029, %v2005
      %v2034 = vmul.f32 %v2030, %v2006
      %v2035 = vmul.f32 %v2031, %v2007
      %v2036 = vmul.f32 %v2032, %v2008
      %v2037 = vadd.f32 %v2033, -0.00073499064
      %v2038 = vadd.f32 %v2034, -0.00073499064
      %v2039 = vadd.f32 %v2035, -0.00073499064
      %v2040 = vadd.f32 %v2036, -0.00073499064
      %v2041 = vmul.f32 %v2037, %v2005
      %v2042 = vmul.f32 %v2038, %v2006
      %v2043 = vmul.f32 %v2039, %v2007
      %v2044 = vmul.f32 %v2040, %v2008
      %v2045 = vadd.f32 %v2041, -0.0029546
      %v2046 = vadd.f32 %v2042, -0.0029546
      %v2047 = vadd.f32 %v2043, -0.0029546
      %v2048 = vadd.f32 %v2044, -0.0029546
      %v2049 = vmul.f32 %v2045, %v2005
      %v2050 = vmul.f32 %v2046, %v2006
      %v2051 = vmul.f32 %v2047, %v2007
      %v2052 = vmul.f32 %v2048, %v2008
      %v2053 = vadd.f32 %v2049, -0.016096033
      %v2054 = vadd.f32 %v2050, -0.016096033
      %v2055 = vadd.f32 %v2051, -0.016096033
      %v2056 = vadd.f32 %v2052, -0.016096033
      %v2057 = vmul.f32 %v2005, -1.45660715e-05
      %v2058 = vmul.f32 %v2006, -1.45660715e-05
      %v2059 = vmul.f32 %v2007, -1.45660715e-05
      %v2060 = vmul.f32 %v2008, -1.45660715e-05
      %v2061 = vadd.f32 %v2057, -0.00021337405
      %v2062 = vadd.f32 %v2058, -0.00021337405
      %v2063 = vadd.f32 %v2059, -0.00021337405
      %v2064 = vadd.f32 %v2060, -0.00021337405
      %v2065 = vmul.f32 %v2061, %v2005
      %v2066 = vmul.f32 %v2062, %v2006
      %v2067 = vmul.f32 %v2063, %v2007
      %v2068 = vmul.f32 %v2064, %v2008
      %v2069 = vadd.f32 %v2065, -0.001682827
      %v2070 = vadd.f32 %v2066, -0.001682827
      %v2071 = vadd.f32 %v2067, -0.001682827
      %v2072 = vadd.f32 %v2068, -0.001682827
      %v2073 = vmul.f32 %v2069, %v2005
      %v2074 = vmul.f32 %v2070, %v2006
      %v2075 = vmul.f32 %v2071, %v2007
      %v2076 = vmul.f32 %v2072, %v2008
      %v2077 = vadd.f32 %v2073, -0.0073733293
      %v2078 = vadd.f32 %v2074, -0.0073733293
      %v2079 = vadd.f32 %v2075, -0.0073733293
      %v2080 = vadd.f32 %v2076, -0.0073733293
      %v2081 = vmul.f32 %v2077, %v2005
      %v2082 = vmul.f32 %v2078, %v2006
      %v2083 = vmul.f32 %v2079, %v2007
      %v2084 = vmul.f32 %v2080, %v2008
      %v2085 = vadd.f32 %v2081, -0.014264739
      %v2086 = vadd.f32 %v2082, -0.014264739
      %v2087 = vadd.f32 %v2083, -0.014264739
      %v2088 = vadd.f32 %v2084, -0.014264739
      %v2089 = vmul.f32 %v2001, %v2053
      %v2090 = vmul.f32 %v2002, %v2054
      %v2091 = vmul.f32 %v2003, %v2055
      %v2092 = vmul.f32 %v2004, %v2056
      %v2093 = vrcp.pop %v2085
      %v2094 = vmul.f32 %v2089, %v2093
      %v2095 = vrcp.pop %v2086
      %v2096 = vmul.f32 %v2090, %v2095
      %v2097 = vrcp.pop %v2087
      %v2098 = vmul.f32 %v2091, %v2097
      %v2099 = vrcp.pop %v2088
      %v2100 = vmul.f32 %v2092, %v2099
      %v2101 = vadd.f32 %v2094, 1.0
      %v2102 = vadd.f32 %v2096, 1.0
      %v2103 = vadd.f32 %v2098, 1.0
      %v2104 = vadd.f32 %v2100, 1.0
      %v2105 = vmul.f32 %v1989, %v2101
      %v2106 = vmul.f32 %v1990, %v2102
      %v2107 = vmul.f32 %v1991, %v2103
      %v2108 = vmul.f32 %v1992, %v2104
      %v2109 = vld [vmem:[%s312] sm:$0xff]
      %2111 = vset.pattern.permute.xlu0 0
      %2112 = vperm.xlu0 %2111, %v2109
      %v2113 = vpop.permute.xlu0 %2112
      %2115 = vrot.lane.b32.xlu0 %v2113, 17
      %v2116 = vpop.permute.xlu0 %2115
      %2117 = vrot.lane.b32.xlu0 %v2105, 17
      %v2118 = vpop.permute.xlu0 %2117
      %2119 = vrot.lane.b32.xlu0 %v2107, 17
      %v2120 = vpop.permute.xlu0 %2119
      %2121 = vrot.lane.b32.xlu0 %v2106, 17
      %v2122 = vpop.permute.xlu0 %2121
      %2123 = vrot.lane.b32.xlu0 %v2108, 17
      %v2124 = vpop.permute.xlu0 %2123
      %v2125 = vsel %vm337, %v2118, %v2122
      %v2126 = vsel %vm337, %v2120, %v2124
      %v2127 = vsel %vm337, %v2122, %v2118
      %v2128 = vsel %vm337, %v2124, %v2120
      %v2129 = vmul.f32 %v2116, %v343
      %v2130 = vmul.f32 %v2116, %v347
      %v2131 = vmul.f32 %v2127, %v343
      %v2132 = vmul.f32 %v2125, %v347
      %v2133 = vmul.f32 %v2128, %v343
      %v2134 = vmul.f32 %v2126, %v347
      %2135 = vst [vmem:[#allocation2] sm:$0xff] %v2129
      %2136 = vst [vmem:[#allocation2 + $0x8] sm:$0xff] %v2130
      %2137 = vst [vmem:[#allocation2 + $0x10] sm:$0xff] %v2131
      %2138 = vst [vmem:[#allocation2 + $0x18] sm:$0xff] %v2132
      %2139 = vst [vmem:[#allocation2 + $0x20] sm:$0xff] %v2133
      %2140 = vst [vmem:[#allocation2 + $0x28] sm:$0xff] %v2134
      %2141 = vst [vmem:[#allocation2 + $0x30] sm:$0x7] %v348
      %2142 = vst [vmem:[#allocation2 + $0x38] sm:$0x7] %v349
      %2143 = vrot.lane.b32.xlu0 %v2113, 16
      %v2144 = vpop.permute.xlu0 %2143
      %2145 = vrot.lane.b32.xlu0 %v2105, 16
      %v2146 = vpop.permute.xlu0 %2145
      %2147 = vrot.lane.b32.xlu0 %v2107, 16
      %v2148 = vpop.permute.xlu0 %2147
      %2149 = vrot.lane.b32.xlu0 %v2106, 16
      %v2150 = vpop.permute.xlu0 %2149
      %2151 = vrot.lane.b32.xlu0 %v2108, 16
      %v2152 = vpop.permute.xlu0 %2151
      %v2153 = vsel %vm356, %v2146, %v2150
      %v2154 = vsel %vm356, %v2148, %v2152
      %v2155 = vsel %vm356, %v2150, %v2146
      %v2156 = vsel %vm356, %v2152, %v2148
      %v2157 = vmul.f32 %v2144, %v362
      %v2158 = vmul.f32 %v2144, %v366
      %v2159 = vmul.f32 %v2155, %v362
      %v2160 = vmul.f32 %v2153, %v366
      %v2161 = vmul.f32 %v2156, %v362
      %v2162 = vmul.f32 %v2154, %v366
      %v2169 = vrot.slane %v2157, 5
      %v2170 = vrot.slane %v2158, 5
      %v2171 = vrot.slane %v2159, 5
      %v2172 = vsel %vm546, %v2169, %v2171
      %v2173 = vrot.slane %v2160, 5
      %v2174 = vsel %vm546, %v2170, %v2173
      %v2175 = vrot.slane %v2161, 5
      %v2176 = vsel %vm546, %v2171, %v2175
      %v2177 = vrot.slane %v2162, 5
      %v2178 = vsel %vm546, %v2173, %v2177
      %v2179 = vsel %vm546, %v2175, %v371
      %v2180 = vsel %vm546, %v2177, %v372
      %2189 = vst [vmem:[#allocation2 + $0x30] sm:$0xf8] %v2169
      %2190 = vst [vmem:[#allocation2 + $0x38] sm:$0xf8] %v2170
      %2191 = vst [vmem:[#allocation2 + $0x40] sm:$0xff] %v2172
      %2192 = vst [vmem:[#allocation2 + $0x48] sm:$0xff] %v2174
      %2193 = vst [vmem:[#allocation2 + $0x50] sm:$0xff] %v2176
      %2194 = vst [vmem:[#allocation2 + $0x58] sm:$0xff] %v2178
      %2195 = vst [vmem:[#allocation2 + $0x60] sm:$0x3f] %v2179
      %2196 = vst [vmem:[#allocation2 + $0x68] sm:$0x3f] %v2180
      %2197 = vrot.lane.b32.xlu0 %v2113, 15
      %v2198 = vpop.permute.xlu0 %2197
      %2199 = vrot.lane.b32.xlu0 %v2105, 15
      %v2200 = vpop.permute.xlu0 %2199
      %2201 = vrot.lane.b32.xlu0 %v2107, 15
      %v2202 = vpop.permute.xlu0 %2201
      %2203 = vrot.lane.b32.xlu0 %v2106, 15
      %v2204 = vpop.permute.xlu0 %2203
      %2205 = vrot.lane.b32.xlu0 %v2108, 15
      %v2206 = vpop.permute.xlu0 %2205
      %v2207 = vsel %vm381, %v2200, %v2204
      %v2208 = vsel %vm381, %v2202, %v2206
      %v2209 = vsel %vm381, %v2204, %v2200
      %v2210 = vsel %vm381, %v2206, %v2202
      %v2211 = vmul.f32 %v2198, %v387
      %v2212 = vmul.f32 %v2198, %v391
      %v2213 = vmul.f32 %v2209, %v387
      %v2214 = vmul.f32 %v2207, %v391
      %v2215 = vmul.f32 %v2210, %v387
      %v2216 = vmul.f32 %v2208, %v391
      %vm2223 = vcmask 1045504
      %v2224 = vrot.slane %v2211, 2
      %v2225 = vrot.slane %v2212, 2
      %v2226 = vrot.slane %v2213, 2
      %v2227 = vsel %vm2223, %v2224, %v2226
      %v2228 = vrot.slane %v2214, 2
      %v2229 = vsel %vm2223, %v2225, %v2228
      %v2230 = vrot.slane %v2215, 2
      %v2231 = vsel %vm2223, %v2226, %v2230
      %v2232 = vrot.slane %v2216, 2
      %v2233 = vsel %vm2223, %v2228, %v2232
      %v2234 = vsel %vm2223, %v2230, %v396
      %v2235 = vsel %vm2223, %v2232, %v397
      %2244 = vst [vmem:[#allocation2 + $0x60] sm:$0xc0] %v2224
      %2245 = vst [vmem:[#allocation2 + $0x68] sm:$0xc0] %v2225
      %2246 = vst [vmem:[#allocation2 + $0x70] sm:$0xff] %v2227
      %2247 = vst [vmem:[#allocation2 + $0x78] sm:$0xff] %v2229
      %2248 = vst [vmem:[#allocation2 + $0x80] sm:$0xff] %v2231
      %2249 = vst [vmem:[#allocation2 + $0x88] sm:$0xff] %v2233
      %2250 = vst [vmem:[#allocation2 + $0x90] sm:$0xff] %v2234
      %2251 = vst [vmem:[#allocation2 + $0x98] sm:$0xff] %v2235
      %2252 = vst [vmem:[#allocation2 + $0xa0] sm:$0x1] %v396
      %2253 = vst [vmem:[#allocation2 + $0xa8] sm:$0x1] %v397
      %2254 = vrot.lane.b32.xlu0 %v2113, 1
      %v2255 = vpop.permute.xlu0 %2254
      %2256 = vrot.lane.b32.xlu0 %v2105, 1
      %v2257 = vpop.permute.xlu0 %2256
      %2258 = vrot.lane.b32.xlu0 %v2107, 1
      %v2259 = vpop.permute.xlu0 %2258
      %2260 = vrot.lane.b32.xlu0 %v2106, 1
      %v2261 = vpop.permute.xlu0 %2260
      %2262 = vrot.lane.b32.xlu0 %v2108, 1
      %v2263 = vpop.permute.xlu0 %2262
      %v2264 = vsel %vm408, %v2257, %v2261
      %v2265 = vsel %vm408, %v2259, %v2263
      %v2266 = vsel %vm408, %v2261, %v2257
      %v2267 = vsel %vm408, %v2263, %v2259
      %v2268 = vmul.f32 %v2255, %v414
      %v2269 = vmul.f32 %v2255, %v418
      %v2270 = vmul.f32 %v2266, %v414
      %v2271 = vmul.f32 %v2264, %v418
      %v2272 = vmul.f32 %v2267, %v414
      %v2273 = vmul.f32 %v2265, %v418
      %vm2280 = vcmask 1040384
      %v2281 = vrot.slane %v2268, 7
      %v2282 = vrot.slane %v2269, 7
      %v2283 = vrot.slane %v2270, 7
      %v2284 = vsel %vm2280, %v2281, %v2283
      %v2285 = vrot.slane %v2271, 7
      %v2286 = vsel %vm2280, %v2282, %v2285
      %v2287 = vrot.slane %v2272, 7
      %v2288 = vsel %vm2280, %v2283, %v2287
      %v2289 = vrot.slane %v2273, 7
      %v2290 = vsel %vm2280, %v2285, %v2289
      %v2291 = vsel %vm2280, %v2287, %v423
      %v2292 = vsel %vm2280, %v2289, %v424
      %2301 = vst [vmem:[#allocation2 + $0xa0] sm:$0xfe] %v2281
      %2302 = vst [vmem:[#allocation2 + $0xa8] sm:$0xfe] %v2282
      %2303 = vst [vmem:[#allocation2 + $0xb0] sm:$0xff] %v2284
      %2304 = vst [vmem:[#allocation2 + $0xb8] sm:$0xff] %v2286
      %2305 = vst [vmem:[#allocation2 + $0xc0] sm:$0xff] %v2288
      %2306 = vst [vmem:[#allocation2 + $0xc8] sm:$0xff] %v2290
      %2307 = vst [vmem:[#allocation2 + $0xd0] sm:$0xf] %v2291
      %2308 = vst [vmem:[#allocation2 + $0xd8] sm:$0xf] %v2292
      %vm2313 = vcmask 1043456
      %v2314 = vrot.slane %v2113, 4
      %v2315 = vrot.slane %v2105, 4
      %v2316 = vsel %vm2313, %v2314, %v2315
      %v2317 = vrot.slane %v2106, 4
      %v2318 = vsel %vm2313, %v2314, %v2317
      %v2319 = vrot.slane %v2107, 4
      %v2320 = vsel %vm2313, %v2315, %v2319
      %v2321 = vrot.slane %v2108, 4
      %v2322 = vsel %vm2313, %v2317, %v2321
      %v2323 = vrot.slane %v327, 4
      %v2324 = vsel %vm2313, %v2319, %v2323
      %v2325 = vrot.slane %v329, 4
      %v2326 = vsel %vm2313, %v2321, %v2325
      %2334 = vst [vmem:[#allocation2 + $0xd0] sm:$0xf0] %v2314
      %2335 = vst [vmem:[#allocation2 + $0xd8] sm:$0xf0] %v2314
      %2336 = vst [vmem:[#allocation2 + $0xe0] sm:$0xff] %v2316
      %2337 = vst [vmem:[#allocation2 + $0xe8] sm:$0xff] %v2318
      %2338 = vst [vmem:[#allocation2 + $0xf0] sm:$0xff] %v2320
      %2339 = vst [vmem:[#allocation2 + $0xf8] sm:$0xff] %v2322
      %2340 = vst [vmem:[#allocation2 + $0x100] sm:$0x7f] %v2324
      %2341 = vst [vmem:[#allocation2 + $0x108] sm:$0x7f] %v2326
      %2342 = vrot.lane.b32.xlu0 %v2113, 127
      %v2343 = vpop.permute.xlu0 %2342
      %2344 = vrot.lane.b32.xlu0 %v2105, 127
      %v2345 = vpop.permute.xlu0 %2344
      %2346 = vrot.lane.b32.xlu0 %v2107, 127
      %v2347 = vpop.permute.xlu0 %2346
      %2348 = vrot.lane.b32.xlu0 %v2106, 127
      %v2349 = vpop.permute.xlu0 %2348
      %2350 = vrot.lane.b32.xlu0 %v2108, 127
      %v2351 = vpop.permute.xlu0 %2350
      %v2352 = vsel %vm437, %v2345, %v2349
      %v2353 = vsel %vm437, %v2347, %v2351
      %v2354 = vsel %vm437, %v2349, %v2345
      %v2355 = vsel %vm437, %v2351, %v2347
      %v2356 = vmul.f32 %v2343, %v443
      %v2357 = vmul.f32 %v2343, %v447
      %v2358 = vmul.f32 %v2352, %v443
      %v2359 = vmul.f32 %v2354, %v447
      %v2360 = vmul.f32 %v2353, %v443
      %v2361 = vmul.f32 %v2355, %v447
      %vm2368 = vcmask 1046528
      %v2369 = vrot.slane %v2356, 1
      %v2370 = vrot.slane %v2357, 1
      %v2371 = vrot.slane %v2358, 1
      %v2372 = vsel %vm2368, %v2369, %v2371
      %v2373 = vrot.slane %v2359, 1
      %v2374 = vsel %vm2368, %v2370, %v2373
      %v2375 = vrot.slane %v2360, 1
      %v2376 = vsel %vm2368, %v2371, %v2375
      %v2377 = vrot.slane %v2361, 1
      %v2378 = vsel %vm2368, %v2373, %v2377
      %v2379 = vsel %vm2368, %v2375, %v452
      %v2380 = vsel %vm2368, %v2377, %v453
      %2389 = vst [vmem:[#allocation2 + $0x100] sm:$0x80] %v2369
      %2390 = vst [vmem:[#allocation2 + $0x108] sm:$0x80] %v2370
      %2391 = vst [vmem:[#allocation2 + $0x110] sm:$0xff] %v2372
      %2392 = vst [vmem:[#allocation2 + $0x118] sm:$0xff] %v2374
      %2393 = vst [vmem:[#allocation2 + $0x120] sm:$0xff] %v2376
      %2394 = vst [vmem:[#allocation2 + $0x128] sm:$0xff] %v2378
      %2395 = vst [vmem:[#allocation2 + $0x130] sm:$0xff] %v2379
      %2396 = vst [vmem:[#allocation2 + $0x138] sm:$0xff] %v2380
      %2397 = vst [vmem:[#allocation2 + $0x140] sm:$0x3] %v452
      %2398 = vst [vmem:[#allocation2 + $0x148] sm:$0x3] %v453
      %2399 = vrot.lane.b32.xlu0 %v2113, 113
      %v2400 = vpop.permute.xlu0 %2399
      %2401 = vrot.lane.b32.xlu0 %v2105, 113
      %v2402 = vpop.permute.xlu0 %2401
      %2403 = vrot.lane.b32.xlu0 %v2107, 113
      %v2404 = vpop.permute.xlu0 %2403
      %2405 = vrot.lane.b32.xlu0 %v2106, 113
      %v2406 = vpop.permute.xlu0 %2405
      %2407 = vrot.lane.b32.xlu0 %v2108, 113
      %v2408 = vpop.permute.xlu0 %2407
      %v2409 = vsel %vm464, %v2402, %v2406
      %v2410 = vsel %vm464, %v2404, %v2408
      %v2411 = vsel %vm464, %v2406, %v2402
      %v2412 = vsel %vm464, %v2408, %v2404
      %v2413 = vmul.f32 %v2400, %v470
      %v2414 = vmul.f32 %v2400, %v474
      %v2415 = vmul.f32 %v2409, %v470
      %v2416 = vmul.f32 %v2411, %v474
      %v2417 = vmul.f32 %v2410, %v470
      %v2418 = vmul.f32 %v2412, %v474
      %vm2425 = vcmask 1041408
      %v2426 = vrot.slane %v2413, 6
      %v2427 = vrot.slane %v2414, 6
      %v2428 = vrot.slane %v2415, 6
      %v2429 = vsel %vm2425, %v2426, %v2428
      %v2430 = vrot.slane %v2416, 6
      %v2431 = vsel %vm2425, %v2427, %v2430
      %v2432 = vrot.slane %v2417, 6
      %v2433 = vsel %vm2425, %v2428, %v2432
      %v2434 = vrot.slane %v2418, 6
      %v2435 = vsel %vm2425, %v2430, %v2434
      %v2436 = vsel %vm2425, %v2432, %v479
      %v2437 = vsel %vm2425, %v2434, %v480
      %2446 = vst [vmem:[#allocation2 + $0x140] sm:$0xfc] %v2426
      %2447 = vst [vmem:[#allocation2 + $0x148] sm:$0xfc] %v2427
      %2448 = vst [vmem:[#allocation2 + $0x150] sm:$0xff] %v2429
      %2449 = vst [vmem:[#allocation2 + $0x158] sm:$0xff] %v2431
      %2450 = vst [vmem:[#allocation2 + $0x160] sm:$0xff] %v2433
      %2451 = vst [vmem:[#allocation2 + $0x168] sm:$0xff] %v2435
      %2452 = vst [vmem:[#allocation2 + $0x170] sm:$0x1f] %v2436
      %2453 = vst [vmem:[#allocation2 + $0x178] sm:$0x1f] %v2437
      %2454 = vrot.lane.b32.xlu0 %v2113, 112
      %v2455 = vpop.permute.xlu0 %2454
      %2456 = vrot.lane.b32.xlu0 %v2105, 112
      %v2457 = vpop.permute.xlu0 %2456
      %2458 = vrot.lane.b32.xlu0 %v2107, 112
      %v2459 = vpop.permute.xlu0 %2458
      %2460 = vrot.lane.b32.xlu0 %v2106, 112
      %v2461 = vpop.permute.xlu0 %2460
      %2462 = vrot.lane.b32.xlu0 %v2108, 112
      %v2463 = vpop.permute.xlu0 %2462
      %v2464 = vsel %vm489, %v2457, %v2461
      %v2465 = vsel %vm489, %v2459, %v2463
      %v2466 = vsel %vm489, %v2461, %v2457
      %v2467 = vsel %vm489, %v2463, %v2459
      %v2468 = vmul.f32 %v2455, %v495
      %v2469 = vmul.f32 %v2455, %v499
      %v2470 = vmul.f32 %v2464, %v495
      %v2471 = vmul.f32 %v2466, %v499
      %v2472 = vmul.f32 %v2465, %v495
      %v2473 = vmul.f32 %v2467, %v499
      %vm2480 = vcmask 1044480
      %v2481 = vrot.slane %v2468, 3
      %v2482 = vrot.slane %v2469, 3
      %v2483 = vrot.slane %v2470, 3
      %v2484 = vsel %vm2480, %v2481, %v2483
      %v2485 = vrot.slane %v2471, 3
      %v2486 = vsel %vm2480, %v2482, %v2485
      %v2487 = vrot.slane %v2472, 3
      %v2488 = vsel %vm2480, %v2483, %v2487
      %v2489 = vrot.slane %v2473, 3
      %v2490 = vsel %vm2480, %v2485, %v2489
      %v2491 = vsel %vm2480, %v2487, %v504
      %v2492 = vsel %vm2480, %v2489, %v505
      %2501 = vst [vmem:[#allocation2 + $0x170] sm:$0xe0] %v2481
      %2502 = vst [vmem:[#allocation2 + $0x178] sm:$0xe0] %v2482
      %2503 = vst [vmem:[#allocation2 + $0x180] sm:$0xff] %v2484
      %2504 = vst [vmem:[#allocation2 + $0x188] sm:$0xff] %v2486
      %2505 = vst [vmem:[#allocation2 + $0x190] sm:$0xff] %v2488
      %2506 = vst [vmem:[#allocation2 + $0x198] sm:$0xff] %v2490
      %2507 = vst [vmem:[#allocation2 + $0x1a0] sm:$0xff] %v2491
      %2508 = vst [vmem:[#allocation2 + $0x1a8] sm:$0xff] %v2492
      %2509 = vrot.lane.b32.xlu0 %v2113, 111
      %v2510 = vpop.permute.xlu0 %2509
      %2511 = vrot.lane.b32.xlu0 %v2105, 111
      %v2512 = vpop.permute.xlu0 %2511
      %2513 = vrot.lane.b32.xlu0 %v2107, 111
      %v2514 = vpop.permute.xlu0 %2513
      %2515 = vrot.lane.b32.xlu0 %v2106, 111
      %v2516 = vpop.permute.xlu0 %2515
      %2517 = vrot.lane.b32.xlu0 %v2108, 111
      %v2518 = vpop.permute.xlu0 %2517
      %v2519 = vsel %vm514, %v2512, %v2516
      %v2520 = vsel %vm514, %v2514, %v2518
      %v2521 = vsel %vm514, %v2516, %v2512
      %v2522 = vsel %vm514, %v2518, %v2514
      %v2523 = vmul.f32 %v2510, %v520
      %v2524 = vmul.f32 %v2510, %v524
      %v2525 = vmul.f32 %v2519, %v520
      %v2526 = vmul.f32 %v2521, %v524
      %v2527 = vmul.f32 %v2520, %v520
      %v2528 = vmul.f32 %v2522, %v524
      %2529 = vst [vmem:[#allocation2 + $0x1b0] sm:$0xff] %v2523
      %2530 = vst [vmem:[#allocation2 + $0x1b8] sm:$0xff] %v2524
      %2531 = vst [vmem:[#allocation2 + $0x1c0] sm:$0xff] %v2525
      %2532 = vst [vmem:[#allocation2 + $0x1c8] sm:$0xff] %v2526
      %2533 = vst [vmem:[#allocation2 + $0x1d0] sm:$0xff] %v2527
      %2534 = vst [vmem:[#allocation2 + $0x1d8] sm:$0xff] %v2528
      %2535 = vst [vmem:[#allocation2 + $0x1e0] sm:$0x7] %v525
      %2536 = vst [vmem:[#allocation2 + $0x1e8] sm:$0x7] %v526
      %s2537 = scalar_lea.vmem %s3, 128
      %v2538 = vld [vmem:[%s2537] sm:$0xff]
      %v2539 = vld [vmem:[%s2537 + $0x8] sm:$0xff]
      %v2540 = vld [vmem:[%s2537 + $0x10] sm:$0xff]
      %v2541 = vld [vmem:[%s2537 + $0x18] sm:$0xff]
      %v2542 = vld [vmem:[#allocation2] sm:$0xff]
      %v2543 = vld [vmem:[#allocation2 + $0x8] sm:$0xff]
      %v2544 = vld [vmem:[#allocation2 + $0x10] sm:$0xff]
      %v2545 = vld [vmem:[#allocation2 + $0x18] sm:$0xff]
      %v2546 = vld [vmem:[#allocation2 + $0x20] sm:$0xff]
      %v2547 = vld [vmem:[#allocation2 + $0x28] sm:$0xff]
      %v2548 = vld [vmem:[#allocation2 + $0x30] sm:$0xff]
      %v2549 = vld [vmem:[#allocation2 + $0x38] sm:$0xff]
      %v2550 = vld [vmem:[#allocation2 + $0x40] sm:$0xff]
      %v2551 = vld [vmem:[#allocation2 + $0x48] sm:$0xff]
      %v2552 = vld [vmem:[#allocation2 + $0x50] sm:$0xff]
      %v2553 = vld [vmem:[#allocation2 + $0x58] sm:$0xff]
      %v2554 = vld [vmem:[#allocation2 + $0x60] sm:$0xff]
      %v2555 = vld [vmem:[#allocation2 + $0x68] sm:$0xff]
      %v2556 = vld [vmem:[#allocation2 + $0x70] sm:$0xff]
      %v2557 = vld [vmem:[#allocation2 + $0x78] sm:$0xff]
      %v2558 = vld [vmem:[#allocation2 + $0x80] sm:$0xff]
      %v2559 = vld [vmem:[#allocation2 + $0x88] sm:$0xff]
      %v2560 = vld [vmem:[#allocation2 + $0x90] sm:$0xff]
      %v2561 = vld [vmem:[#allocation2 + $0x98] sm:$0xff]
      %v2562 = vld [vmem:[#allocation2 + $0xa0] sm:$0xff]
      %v2563 = vld [vmem:[#allocation2 + $0xa8] sm:$0xff]
      %v2564 = vld [vmem:[#allocation2 + $0xb0] sm:$0xff]
      %v2565 = vld [vmem:[#allocation2 + $0xb8] sm:$0xff]
      %v2566 = vld [vmem:[#allocation2 + $0xc0] sm:$0xff]
      %v2567 = vld [vmem:[#allocation2 + $0xc8] sm:$0xff]
      %v2568 = vld [vmem:[#allocation2 + $0xd0] sm:$0xff]
      %v2569 = vld [vmem:[#allocation2 + $0xd8] sm:$0xff]
      %v2570 = vld [vmem:[#allocation2 + $0xe0] sm:$0xff]
      %v2571 = vld [vmem:[#allocation2 + $0xe8] sm:$0xff]
      %v2572 = vld [vmem:[#allocation2 + $0xf0] sm:$0xff]
      %v2573 = vld [vmem:[#allocation2 + $0xf8] sm:$0xff]
      %v2574 = vld [vmem:[#allocation2 + $0x100] sm:$0xff]
      %v2575 = vld [vmem:[#allocation2 + $0x108] sm:$0xff]
      %v2576 = vld [vmem:[#allocation2 + $0x110] sm:$0xff]
      %v2577 = vld [vmem:[#allocation2 + $0x118] sm:$0xff]
      %v2578 = vld [vmem:[#allocation2 + $0x120] sm:$0xff]
      %v2579 = vld [vmem:[#allocation2 + $0x128] sm:$0xff]
      %v2580 = vld [vmem:[#allocation2 + $0x130] sm:$0xff]
      %v2581 = vld [vmem:[#allocation2 + $0x138] sm:$0xff]
      %v2582 = vld [vmem:[#allocation2 + $0x140] sm:$0xff]
      %v2583 = vld [vmem:[#allocation2 + $0x148] sm:$0xff]
      %v2584 = vld [vmem:[#allocation2 + $0x150] sm:$0xff]
      %v2585 = vld [vmem:[#allocation2 + $0x158] sm:$0xff]
      %v2586 = vld [vmem:[#allocation2 + $0x160] sm:$0xff]
      %v2587 = vld [vmem:[#allocation2 + $0x168] sm:$0xff]
      %v2588 = vld [vmem:[#allocation2 + $0x170] sm:$0xff]
      %v2589 = vld [vmem:[#allocation2 + $0x178] sm:$0xff]
      %v2590 = vld [vmem:[#allocation2 + $0x180] sm:$0xff]
      %v2591 = vld [vmem:[#allocation2 + $0x188] sm:$0xff]
      %v2592 = vld [vmem:[#allocation2 + $0x190] sm:$0xff]
      %v2593 = vld [vmem:[#allocation2 + $0x198] sm:$0xff]
      %v2594 = vld [vmem:[#allocation2 + $0x1a0] sm:$0xff]
      %v2595 = vld [vmem:[#allocation2 + $0x1a8] sm:$0xff]
      %v2596 = vld [vmem:[#allocation2 + $0x1b0] sm:$0xff]
      %v2597 = vld [vmem:[#allocation2 + $0x1b8] sm:$0xff]
      %v2598 = vld [vmem:[#allocation2 + $0x1c0] sm:$0xff]
      %v2599 = vld [vmem:[#allocation2 + $0x1c8] sm:$0xff]
      %v2600 = vld [vmem:[#allocation2 + $0x1d0] sm:$0xff]
      %v2601 = vld [vmem:[#allocation2 + $0x1d8] sm:$0xff]
      %v2602 = vld [vmem:[#allocation2 + $0x1e0] sm:$0x7]
      %v2603 = vld [vmem:[#allocation2 + $0x1e8] sm:$0x7]
      %vm2604 = vcmask 941056
      %v2606 = vsel %vm2604, %v2539, 0
      %v2609 = vsel %vm2604, %v2541, 0
      %v2612 = vsel %vm546, %v2602, 0
      %v2615 = vsel %vm546, %v2603, 0
      %2617 = vmatprep.subr.mxu0 %v2543
      %2618 = vmatpush1.msra.mxu0 %v2542
      %2619 = vmatprep.subr.mxu0 %v2545
      %2620 = vmatpush1.msra.mxu0 %v2544
      %2621 = vmatprep.subr.mxu0 %v2547
      %2622 = vmatpush1.msra.mxu0 %v2546
      %2623 = vmatprep.subr.mxu0 %v2549
      %2624 = vmatpush1.msra.mxu0 %v2548
      %2625 = vmatprep.subr.mxu0 %v2551
      %2626 = vmatpush1.msra.mxu0 %v2550
      %2627 = vmatprep.subr.mxu0 %v2553
      %2628 = vmatpush1.msra.mxu0 %v2552
      %2629 = vmatprep.subr.mxu0 %v2555
      %2630 = vmatpush1.msra.mxu0 %v2554
      %2631 = vmatprep.subr.mxu0 %v2557
      %2632 = vmatpush1.msra.mxu0 %v2556
      %2633 = vmatprep.subr.mxu0 %v2559
      %2634 = vmatpush1.msra.mxu0 %v2558
      %2635 = vmatprep.subr.mxu0 %v2561
      %2636 = vmatpush1.msra.mxu0 %v2560
      %2637 = vmatprep.subr.mxu0 %v2563
      %2638 = vmatpush1.msra.mxu0 %v2562
      %2639 = vmatprep.subr.mxu0 %v2565
      %2640 = vmatpush1.msra.mxu0 %v2564
      %2641 = vmatprep.subr.mxu0 %v2567
      %2642 = vmatpush1.msra.mxu0 %v2566
      %2643 = vmatprep.subr.mxu0 %v2569
      %2644 = vmatpush1.msra.mxu0 %v2568
      %2645 = vmatprep.subr.mxu0 %v2571
      %2646 = vmatpush1.msra.mxu0 %v2570
      %2647 = vmatprep.subr.mxu0 %v2573
      %2648 = vmatpush1.msra.mxu0 %v2572
      %2649 = vmatprep.subr.mxu0 %v2575
      %2650 = vmatpush1.msra.mxu0 %v2574
      %2651 = vmatprep.subr.mxu0 %v2577
      %2652 = vmatpush1.msra.mxu0 %v2576
      %2653 = vmatprep.subr.mxu0 %v2579
      %2654 = vmatpush1.msra.mxu0 %v2578
      %2655 = vmatprep.subr.mxu0 %v2581
      %2656 = vmatpush1.msra.mxu0 %v2580
      %2657 = vmatprep.subr.mxu0 %v2583
      %2658 = vmatpush1.msra.mxu0 %v2582
      %2659 = vmatprep.subr.mxu0 %v2585
      %2660 = vmatpush1.msra.mxu0 %v2584
      %2661 = vmatprep.subr.mxu0 %v2587
      %2662 = vmatpush1.msra.mxu0 %v2586
      %2663 = vmatprep.subr.mxu0 %v2589
      %2664 = vmatpush1.msra.mxu0 %v2588
      %2665 = vmatprep.subr.mxu0 %v2591
      %2666 = vmatpush1.msra.mxu0 %v2590
      %2667 = vmatprep.subr.mxu0 %v2593
      %2668 = vmatpush1.msra.mxu0 %v2592
      %2669 = vmatprep.subr.mxu0 %v2595
      %2670 = vmatpush1.msra.mxu0 %v2594
      %2671 = vmatprep.subr.mxu0 %v2597
      %2672 = vmatpush1.msra.mxu0 %v2596
      %2673 = vmatprep.subr.mxu0 %v2599
      %2674 = vmatpush1.msra.mxu0 %v2598
      %2675 = vmatprep.subr.mxu0 %v2601
      %2676 = vmatpush1.msra.mxu0 %v2600
      %2677 = vmatprep.subr.mxu0 %v2615
      %2678 = vmatpush1.msra.mxu0 %v2612
      %2679 = vmatprep.subr.mxu0 0.0
      %2680 = vmatpush1.msra.mxu0 0.0
      %2681 = vmatprep.mubr.f32.mxu0 %v2606
      %2682 = vmatmul.mubr.f32.gmra.mrb[0].mxu0 %v2538
      %v2683 = vpop.f32.mrb[0].mxu0
      %v2684 = vadd.f32 0.0, %v2683
      %v2685 = vpop.f32.mrb[0].mxu0
      %v2686 = vadd.f32 0.0, %v2685
      %2687 = vmatprep.mubr.f32.mxu0 %v2609
      %2688 = vmatmul.mubr.f32.gmra.mrb[0].mxu0 %v2540
      %v2689 = vpop.f32.mrb[0].mxu0
      %v2690 = vadd.f32 0.0, %v2689
      %v2691 = vpop.f32.mrb[0].mxu0
      %v2692 = vadd.f32 0.0, %v2691
      %2693 = vdwg.mxu0
      %s2694 = scalar_lea.vmem %s4, 64
      %v2695 = vld [vmem:[%s2694] sm:$0xff]
      %v2696 = vld [vmem:[%s2694 + $0x8] sm:$0xff]
      %2698 = vset.pattern.permute.xlu0 0
      %2699 = vperm.xlu0 %2698, %v2695
      %v2700 = vpop.permute.xlu0 %2699
      %2703 = vset.pattern.permute.xlu0 0
      %2704 = vperm.xlu0 %2703, %v2696
      %v2705 = vpop.permute.xlu0 %2704
      %v2707 = vmul.f32 %v2684, %v2700
      %v2708 = vmul.f32 %v2686, %v2700
      %v2709 = vmul.f32 %v2690, %v2705
      %v2710 = vmul.f32 %v2692, %v2705
      %s2711 = scalar_lea.vmem %s5, 64
      %v2712 = vld [vmem:[%s2711] sm:$0xff]
      %v2713 = vld [vmem:[%s2711 + $0x8] sm:$0xff]
      %2715 = vset.pattern.permute.xlu0 0
      %2716 = vperm.xlu0 %2715, %v2712
      %v2717 = vpop.permute.xlu0 %2716
      %2720 = vset.pattern.permute.xlu0 0
      %2721 = vperm.xlu0 %2720, %v2713
      %v2722 = vpop.permute.xlu0 %2721
      %v2724 = vadd.f32 %v2707, %v2717
      %v2725 = vadd.f32 %v2708, %v2717
      %v2726 = vadd.f32 %v2709, %v2722
      %v2727 = vadd.f32 %v2710, %v2722
      %v2728 = vmul.f32 %v2724, 0.5
      %v2729 = vmul.f32 %v2725, 0.5
      %v2730 = vmul.f32 %v2726, 0.5
      %v2731 = vmul.f32 %v2727, 0.5
      %v2732 = vmul.f32 %v2724, 0.70710677
      %v2733 = vmul.f32 %v2725, 0.70710677
      %v2734 = vmul.f32 %v2726, 0.70710677
      %v2735 = vmul.f32 %v2727, 0.70710677
      %v2736 = vmax.f32 %v2732, -3.925
      %v2737 = vmax.f32 %v2733, -3.925
      %v2738 = vmax.f32 %v2734, -3.925
      %v2739 = vmax.f32 %v2735, -3.925
      %v2740 = vmin.f32 %v2736, 3.925
      %v2741 = vmin.f32 %v2737, 3.925
      %v2742 = vmin.f32 %v2738, 3.925
      %v2743 = vmin.f32 %v2739, 3.925
      %v2744 = vmul.f32 %v2740, %v2740
      %v2745 = vmul.f32 %v2741, %v2741
      %v2746 = vmul.f32 %v2742, %v2742
      %v2747 = vmul.f32 %v2743, %v2743
      %v2748 = vmul.f32 %v2744, -2.7261424e-10
      %v2749 = vmul.f32 %v2745, -2.7261424e-10
      %v2750 = vmul.f32 %v2746, -2.7261424e-10
      %v2751 = vmul.f32 %v2747, -2.7261424e-10
      %v2752 = vadd.f32 %v2748, 2.7706815e-08
      %v2753 = vadd.f32 %v2749, 2.7706815e-08
      %v2754 = vadd.f32 %v2750, 2.7706815e-08
      %v2755 = vadd.f32 %v2751, 2.7706815e-08
      %v2756 = vmul.f32 %v2752, %v2744
      %v2757 = vmul.f32 %v2753, %v2745
      %v2758 = vmul.f32 %v2754, %v2746
      %v2759 = vmul.f32 %v2755, %v2747
      %v2760 = vadd.f32 %v2756, -2.101024e-06
      %v2761 = vadd.f32 %v2757, -2.101024e-06
      %v2762 = vadd.f32 %v2758, -2.101024e-06
      %v2763 = vadd.f32 %v2759, -2.101024e-06
      %v2764 = vmul.f32 %v2760, %v2744
      %v2765 = vmul.f32 %v2761, %v2745
      %v2766 = vmul.f32 %v2762, %v2746
      %v2767 = vmul.f32 %v2763, %v2747
      %v2768 = vadd.f32 %v2764, -5.6925062e-05
      %v2769 = vadd.f32 %v2765, -5.6925062e-05
      %v2770 = vadd.f32 %v2766, -5.6925062e-05
      %v2771 = vadd.f32 %v2767, -5.6925062e-05
      %v2772 = vmul.f32 %v2768, %v2744
      %v2773 = vmul.f32 %v2769, %v2745
      %v2774 = vmul.f32 %v2770, %v2746
      %v2775 = vmul.f32 %v2771, %v2747
      %v2776 = vadd.f32 %v2772, -0.00073499064
      %v2777 = vadd.f32 %v2773, -0.00073499064
      %v2778 = vadd.f32 %v2774, -0.00073499064
      %v2779 = vadd.f32 %v2775, -0.00073499064
      %v2780 = vmul.f32 %v2776, %v2744
      %v2781 = vmul.f32 %v2777, %v2745
      %v2782 = vmul.f32 %v2778, %v2746
      %v2783 = vmul.f32 %v2779, %v2747
      %v2784 = vadd.f32 %v2780, -0.0029546
      %v2785 = vadd.f32 %v2781, -0.0029546
      %v2786 = vadd.f32 %v2782, -0.0029546
      %v2787 = vadd.f32 %v2783, -0.0029546
      %v2788 = vmul.f32 %v2784, %v2744
      %v2789 = vmul.f32 %v2785, %v2745
      %v2790 = vmul.f32 %v2786, %v2746
      %v2791 = vmul.f32 %v2787, %v2747
      %v2792 = vadd.f32 %v2788, -0.016096033
      %v2793 = vadd.f32 %v2789, -0.016096033
      %v2794 = vadd.f32 %v2790, -0.016096033
      %v2795 = vadd.f32 %v2791, -0.016096033
      %v2796 = vmul.f32 %v2744, -1.45660715e-05
      %v2797 = vmul.f32 %v2745, -1.45660715e-05
      %v2798 = vmul.f32 %v2746, -1.45660715e-05
      %v2799 = vmul.f32 %v2747, -1.45660715e-05
      %v2800 = vadd.f32 %v2796, -0.00021337405
      %v2801 = vadd.f32 %v2797, -0.00021337405
      %v2802 = vadd.f32 %v2798, -0.00021337405
      %v2803 = vadd.f32 %v2799, -0.00021337405
      %v2804 = vmul.f32 %v2800, %v2744
      %v2805 = vmul.f32 %v2801, %v2745
      %v2806 = vmul.f32 %v2802, %v2746
      %v2807 = vmul.f32 %v2803, %v2747
      %v2808 = vadd.f32 %v2804, -0.001682827
      %v2809 = vadd.f32 %v2805, -0.001682827
      %v2810 = vadd.f32 %v2806, -0.001682827
      %v2811 = vadd.f32 %v2807, -0.001682827
      %v2812 = vmul.f32 %v2808, %v2744
      %v2813 = vmul.f32 %v2809, %v2745
      %v2814 = vmul.f32 %v2810, %v2746
      %v2815 = vmul.f32 %v2811, %v2747
      %v2816 = vadd.f32 %v2812, -0.0073733293
      %v2817 = vadd.f32 %v2813, -0.0073733293
      %v2818 = vadd.f32 %v2814, -0.0073733293
      %v2819 = vadd.f32 %v2815, -0.0073733293
      %v2820 = vmul.f32 %v2816, %v2744
      %v2821 = vmul.f32 %v2817, %v2745
      %v2822 = vmul.f32 %v2818, %v2746
      %v2823 = vmul.f32 %v2819, %v2747
      %v2824 = vadd.f32 %v2820, -0.014264739
      %v2825 = vadd.f32 %v2821, -0.014264739
      %v2826 = vadd.f32 %v2822, -0.014264739
      %v2827 = vadd.f32 %v2823, -0.014264739
      %v2828 = vmul.f32 %v2740, %v2792
      %v2829 = vmul.f32 %v2741, %v2793
      %v2830 = vmul.f32 %v2742, %v2794
      %v2831 = vmul.f32 %v2743, %v2795
      %v2832 = vrcp.pop %v2824
      %v2833 = vmul.f32 %v2828, %v2832
      %v2834 = vrcp.pop %v2825
      %v2835 = vmul.f32 %v2829, %v2834
      %v2836 = vrcp.pop %v2826
      %v2837 = vmul.f32 %v2830, %v2836
      %v2838 = vrcp.pop %v2827
      %v2839 = vmul.f32 %v2831, %v2838
      %v2840 = vadd.f32 %v2833, 1.0
      %v2841 = vadd.f32 %v2835, 1.0
      %v2842 = vadd.f32 %v2837, 1.0
      %v2843 = vadd.f32 %v2839, 1.0
      %v2844 = vmul.f32 %v2728, %v2840
      %v2845 = vmul.f32 %v2729, %v2841
      %v2846 = vmul.f32 %v2730, %v2842
      %v2847 = vmul.f32 %v2731, %v2843
      %v2848 = vld [vmem:[%s6] sm:$0xff]
      %v2849 = vld [vmem:[%s7] sm:$0xff]
      %2851 = vset.pattern.permute.xlu0 0
      %2852 = vperm.xlu0 %2851, %v2849
      %v2853 = vpop.permute.xlu0 %2852
      %v2856 = vsel %vm987, %v2848, 0
      %2858 = vmatprep.subr.mxu0 %v2845
      %2859 = vmatpush1.msra.mxu0 %v2844
      %2860 = vmatprep.subr.mxu0 %v2847
      %2861 = vmatpush1.msra.mxu0 %v2846
      %2862 = vmatprep.subr.mxu0 0.0
      %2863 = vmatpush1.msra.mxu0 0.0
      %2864 = vmatprep.subr.mxu0 0.0
      %2865 = vmatpush1.msra.mxu0 0.0
      %2866 = vmatprep.subr.mxu0 0.0
      %2867 = vmatpush1.msra.mxu0 0.0
      %2868 = vmatprep.subr.mxu0 0.0
      %2869 = vmatpush1.msra.mxu0 0.0
      %2870 = vmatprep.subr.mxu0 0.0
      %2871 = vmatpush1.msra.mxu0 0.0
      %2872 = vmatprep.subr.mxu0 0.0
      %2873 = vmatpush1.msra.mxu0 0.0
      %2874 = vmatprep.subr.mxu0 0.0
      %2875 = vmatpush1.msra.mxu0 0.0
      %2876 = vmatprep.subr.mxu0 0.0
      %2877 = vmatpush1.msra.mxu0 0.0
      %2878 = vmatprep.subr.mxu0 0.0
      %2879 = vmatpush1.msra.mxu0 0.0
      %2880 = vmatprep.subr.mxu0 0.0
      %2881 = vmatpush1.msra.mxu0 0.0
      %2882 = vmatprep.subr.mxu0 0.0
      %2883 = vmatpush1.msra.mxu0 0.0
      %2884 = vmatprep.subr.mxu0 0.0
      %2885 = vmatpush1.msra.mxu0 0.0
      %2886 = vmatprep.subr.mxu0 0.0
      %2887 = vmatpush1.msra.mxu0 0.0
      %2888 = vmatprep.subr.mxu0 0.0
      %2889 = vmatpush1.msra.mxu0 0.0
      %2890 = vmatprep.subr.mxu0 0.0
      %2891 = vmatpush1.msra.mxu0 0.0
      %2892 = vmatprep.subr.mxu0 0.0
      %2893 = vmatpush1.msra.mxu0 0.0
      %2894 = vmatprep.subr.mxu0 0.0
      %2895 = vmatpush1.msra.mxu0 0.0
      %2896 = vmatprep.subr.mxu0 0.0
      %2897 = vmatpush1.msra.mxu0 0.0
      %2898 = vmatprep.subr.mxu0 0.0
      %2899 = vmatpush1.msra.mxu0 0.0
      %2900 = vmatprep.subr.mxu0 0.0
      %2901 = vmatpush1.msra.mxu0 0.0
      %2902 = vmatprep.subr.mxu0 0.0
      %2903 = vmatpush1.msra.mxu0 0.0
      %2904 = vmatprep.subr.mxu0 0.0
      %2905 = vmatpush1.msra.mxu0 0.0
      %2906 = vmatprep.subr.mxu0 0.0
      %2907 = vmatpush1.msra.mxu0 0.0
      %2908 = vmatprep.subr.mxu0 0.0
      %2909 = vmatpush1.msra.mxu0 0.0
      %2910 = vmatprep.subr.mxu0 0.0
      %2911 = vmatpush1.msra.mxu0 0.0
      %2912 = vmatprep.subr.mxu0 0.0
      %2913 = vmatpush1.msra.mxu0 0.0
      %2914 = vmatprep.subr.mxu0 0.0
      %2915 = vmatpush1.msra.mxu0 0.0
      %2916 = vmatprep.subr.mxu0 0.0
      %2917 = vmatpush1.msra.mxu0 0.0
      %2918 = vmatprep.subr.mxu0 0.0
      %2919 = vmatpush1.msra.mxu0 0.0
      %2920 = vmatprep.subr.mxu0 0.0
      %2921 = vmatpush1.msra.mxu0 0.0
      %2922 = vmatprep.mubr.f32.mxu0 0.0
      %2923 = vmatmul.mubr.f32.gmra.mrb[0].mxu0 %v2856
      %v2924 = vpop.f32.mrb[0].mxu0
      %v2925 = vadd.f32 %v2853, %v2924
      %v2926 = vpop.f32.mrb[0].mxu0
      %v2927 = vadd.f32 %v2853, %v2926
      %2928 = vdwg.mxu0
      %v2929 = vtanh.pop %v2925
      %v2930 = vtanh.pop %v2927
      %v2933 = vcombine.low %v2929, %v2930
      %2935 = vst [vmem:[%s322] sm:$0x77] %v2933
      %p2936 = scmp.lt.s32.totalorder %s19, 1
      %s2937 = scalar_select %p2936, %s19, 1
      %s2938 = smul.addr %s2937, 2
      %s2939 = smul.addr %s2938, 4
      %s2940 = scalar_lea.vmem %s8, %s2939
      // Predicated region
      $region53: #{hidden_encoder_forward.1} parent=51 // pred_check
        %p2941 = pneg %p215
      $region54: #{hidden_encoder_forward.1} parent=51 // pred_check_branch
        %2943 = sbr.rel (%p2941) target = $region56
      $region55: #{hidden_encoder_forward.1} parent=51 // pred_region
        _
      $region56: #{hidden_encoder_forward.1} parent=51 // pred_fallthru
        _
    $region52: #{hidden_encoder_forward.1} parent=5 // pred_fallthru
      _
    %p2944 = scmp.le.s32.totalorder 2, %s14
    // Predicated region
    $region57: #{hidden_encoder_forward.1} parent=5 // pred_check
      %p2945 = pneg %p2944
    $region58: #{hidden_encoder_forward.1} parent=5 // pred_check_branch
      %2947 = sbr.rel (%p2945) target = $region60
    $region59: #{hidden_encoder_forward.1} parent=5 // pred_region
      %s2948 = ssub.s32 %s14, 2
      // Predicated region
      $region61: #{hidden_encoder_forward.1} parent=59 // pred_check
        %p2949 = pneg %p221
      $region62: #{hidden_encoder_forward.1} parent=59 // pred_check_branch
        %2951 = sbr.rel (%p2949) target = $region64
      $region63: #{hidden_encoder_forward.1} parent=59 // pred_region
        %p2952 = scmp.lt.s32.totalorder %s20, 1
        %s2953 = scalar_select %p2952, %s20, 1
        %s2954 = smul.addr %s2953, 2
        %s2955 = smul.addr %s2954, 4
        %s2956 = scalar_lea.vmem %s8, %s2955
      $region64: #{hidden_encoder_forward.1} parent=59 // pred_fallthru
        _
    $region60: #{hidden_encoder_forward.1} parent=5 // pred_fallthru
      _
  $region6: #{hidden_encoder_forward.1} parent=0 // loop_footer
    %s18 = sadd.s32 1, %s14
  $region7: #{hidden_encoder_forward.1} parent=0 // loop_footer_branch
    %13 = sbr.rel target = $region3
  $region8: #{hidden_encoder_forward.1} parent=0 // loop_exit
    _

</llo_original>
